<compile_context>
chip_gen: v7x
topology: tpu7x:2x2x1
jax: 0.10.0
libtpu: 0.0.40
codegen_flags: <defaults>
</compile_context>

<pallas_src>
import jax
import jax.numpy as jnp
from jax import lax
from jax.experimental import pallas as pl
from jax.experimental.pallas import tpu as pltpu


LANE = 128
BTILE_ALIGN = 16   # multiple of the bf16 sublane tile -> aligned packed stores


def _round_up(x, m):
    return (x + m - 1) // m * m


# ----------------------------- Pallas kernel -------------------------------

def make_fused_rnn_kernel(num_layers, hidden_size, num_classes):
    """Fused multi-layer LSTM + Linear + LogSoftmax kernel (one batch tile)."""
    H = hidden_size

    def kernel(x_ref, wih_ref, whh_ref, b_ref, wfc_ref, bfc_ref, out_ref,
               zin_ref, hseq_ref):
        # x_ref   : (1, T*TB, P)  bf16 flattened embedded input slab
        # wih_ref : (L, P, Gp)    bf16 input weights (transposed, gate-packed)
        # whh_ref : (L, P, Gp)    bf16 recurrent weights
        # b_ref   : (L, 1, Gp)    f32 fused bias (b_ih + b_hh)
        # wfc_ref : (P, Cp)       bf16 FC weights (transposed, padded)
        # bfc_ref : (1, Cp)       f32 FC bias
        # out_ref : (TB, Cp)      f32 log-probs (padding sliced off outside)
        # zin_ref : (T*TB, Gp)    f32 VMEM scratch: hoisted input projection
        # hseq_ref: (T*TB, P)     bf16 VMEM scratch: inter-layer hidden states
        TBT, P = hseq_ref.shape
        TB = out_ref.shape[0]
        T = TBT // TB
        Gp = zin_ref.shape[-1]
        pad = P - H
        # Keep vreg pressure bounded at large batch tiles.
        unroll = min(T, max(1, 512 // TB))

        zpad = jnp.zeros((TB, pad), jnp.float32) if pad else None  # hoisted

        h_last = None
        for l in range(num_layers):                      # static layer loop
            # Layer input: bf16, already flat (T*TB, P) -> no in-kernel reshape.
            x_all = x_ref[0] if l == 0 else hseq_ref[...]

            # Hoisted input GEMM: one big MXU-friendly matmul + bias, out of
            # the serial recurrence.
            zin_ref[...] = (
                jnp.dot(x_all, wih_ref[l], preferred_element_type=jnp.float32)
                + b_ref[l]
            )

            whh_l = whh_ref[l]                            # (P, Gp) bf16
            last_layer = l == num_layers - 1

            def step(t, carry, whh_l=whh_l, last_layer=last_layer):
                h, c = carry                              # (TB,P) f32, (TB,H) f32
                row = pl.multiple_of(t * TB, TB)
                z = zin_ref[pl.ds(row, TB), :] + jnp.dot(
                    h.astype(jnp.bfloat16), whh_l,
                    preferred_element_type=jnp.float32)   # (TB, Gp) f32
                # Packed gate layout [i|f|g|o], each H lanes wide.
                i = jax.nn.sigmoid(z[:, 0 * H:1 * H])
                f = jax.nn.sigmoid(z[:, 1 * H:2 * H])
                g = jnp.tanh(z[:, 2 * H:3 * H])
                o = jax.nn.sigmoid(z[:, 3 * H:4 * H])
                c_new = f * c + i * g                     # f32 cell state
                h_act = o * jnp.tanh(c_new)               # (TB, H) f32
                # Explicitly zero the padded tail of h (correctness with
                # packed gates: next layer's input GEMM must see zeros there).
                h_new = (jnp.concatenate([h_act, zpad], axis=1)
                         if pad else h_act)               # (TB, P) f32
                if not last_layer:
                    # Skip the store in the last layer: only h_last is used.
                    hseq_ref[pl.ds(row, TB), :] = h_new.astype(jnp.bfloat16)
                return (h_new, c_new)

            h0 = jnp.zeros((TB, P), jnp.float32)
            c0 = jnp.zeros((TB, H), jnp.float32)
            h_last, _ = lax.fori_loop(0, T, step, (h0, c0), unroll=unroll)

        # FC head + log-softmax on the last timestep, padded classes masked.
        logits = jnp.dot(h_last.astype(jnp.bfloat16), wfc_ref[...],
                         preferred_element_type=jnp.float32) + bfc_ref[...]
        col = lax.broadcasted_iota(jnp.int32, logits.shape, 1)
        logits = jnp.where(col < num_classes, logits, -jnp.inf)
        m = jnp.max(logits, axis=1, keepdims=True)
        s = logits - m
        lse = jnp.log(jnp.sum(jnp.exp(s), axis=1, keepdims=True))
        out_ref[...] = s - lse

    return kernel


# ------------------------- one-time parameter prep --------------------------

def prepare_params(params):
    """Pad / transpose / gate-pack / bf16 weight layout done ONCE."""
    E = params["emb"].shape[1]
    H = params["lstm"][0]["w_hh"].shape[1]
    C = params["fc_w"].shape[0]
    P = _round_up(max(E, H), LANE)          # input / hidden lane width
    Gp = _round_up(4 * H, LANE)             # packed gate lanes
    Cp = _round_up(C, LANE)

    V = params["emb"].shape[0]
    emb_p = jnp.zeros((V, P), jnp.float32).at[:, :E].set(
        params["emb"].astype(jnp.float32))

    wih_list, whh_list, b_list = [], [], []
    for layer in params["lstm"]:
        din = layer["w_ih"].shape[1]
        # W_ih: (4H, Din) -> transposed, gate-packed, padded -> (P, Gp)
        wih_t = jnp.transpose(layer["w_ih"].astype(jnp.float32))      # (Din, 4H)
        wih_list.append(jnp.zeros((P, Gp), jnp.float32)
                        .at[:din, :4 * H].set(wih_t))
        # W_hh: (4H, H) -> (P, Gp)
        whh_t = jnp.transpose(layer["w_hh"].astype(jnp.float32))      # (H, 4H)
        whh_list.append(jnp.zeros((P, Gp), jnp.float32)
                        .at[:H, :4 * H].set(whh_t))
        # fused bias, gate-packed
        bb = (layer["b_ih"] + layer["b_hh"]).astype(jnp.float32)
        b_list.append(jnp.zeros((1, Gp), jnp.float32).at[0, :4 * H].set(bb))

    wfc_p = jnp.zeros((P, Cp), jnp.float32).at[:H, :C].set(
        jnp.transpose(params["fc_w"]).astype(jnp.float32))
    bfc_p = jnp.zeros((1, Cp), jnp.float32).at[0, :C].set(
        params["fc_b"].astype(jnp.float32))

    return {
        "emb": emb_p.astype(jnp.bfloat16),                   # (V, P) bf16
        "wih": jnp.stack(wih_list).astype(jnp.bfloat16),     # (L, P, Gp) bf16
        "whh": jnp.stack(whh_list).astype(jnp.bfloat16),     # (L, P, Gp) bf16
        "b":   jnp.stack(b_list),                            # (L, 1, Gp) f32
        "wfc": wfc_p.astype(jnp.bfloat16),                   # (P, Cp) bf16
        "bfc": bfc_p,                                        # (1, Cp) f32
        "dims": dict(E=E, H=H, C=C, P=P, Gp=Gp, Cp=Cp, L=len(params["lstm"])),
    }


# ------------------------------- forward ------------------------------------

def rnn_forward(prep, x_tokens, batch_tile=128):
    """Full forward pass matching RNN.forward (eval mode)."""
    d = prep["dims"]
    P, Gp, Cp, L, C, H = d["P"], d["Gp"], d["Cp"], d["L"], d["C"], d["H"]
    B, T = x_tokens.shape

    # Batch tile: feed the MXU rows (default 128), clamp to the real batch,
    # round to a multiple of 16 so bf16 packed-sublane stores stay aligned.
    TB = _round_up(min(batch_tile, _round_up(B, BTILE_ALIGN)), BTILE_ALIGN)
    Bp = _round_up(B, TB)
    n_tiles = Bp // TB

    # Embedding gather (glue, plain JAX), bf16, time-major, batch padded.
    e = jnp.take(prep["emb"], x_tokens, axis=0)            # (B, T, P) bf16
    e = jnp.transpose(e, (1, 0, 2))                        # (T, B, P)
    if Bp != B:
        e = jnp.pad(e, ((0, 0), (0, Bp - B), (0, 0)))      # (T, Bp, P)
    # Flatten to per-batch-tile slabs so the kernel never reshapes:
    # row index inside a slab = t*TB + j.
    e = e.reshape(T, n_tiles, TB, P).transpose(1, 0, 2, 3).reshape(
        n_tiles, T * TB, P)                                # (n_tiles, T*TB, P)

    # TODO(synk): inter-layer dropout (p=0.3) only applies in training; eval is a no-op.

    # VMEM footprint estimate -> explicit scoped limit (double-buffered
    # pipelined blocks + single-buffered scratches).  On v7x (64 MiB physical)
    # shrink batch_tile if this approaches the cap.
    est = (2 * T * TB * P * 2                      # x tile (bf16, 2 buffers)
           + 2 * 2 * L * P * Gp * 2                # W_ih + W_hh (bf16)
           + 2 * L * Gp * 4                        # bias
           + 2 * (P * Cp * 2 + Cp * 4)             # FC weight + bias
           + 2 * TB * Cp * 4                       # out tile
           + T * TB * Gp * 4                       # zin scratch (f32)
           + T * TB * P * 2)                       # hseq scratch (bf16)
    vmem_limit = min(max(int(est * 1.25), 32 * 1024 * 1024), 64 * 1024 * 1024)

    kernel = make_fused_rnn_kernel(L, H, C)
    out = pl.pallas_call(
        kernel,
        out_shape=jax.ShapeDtypeStruct((Bp, Cp), jnp.float32),
        grid_spec=pltpu.PrefetchScalarGridSpec(
            num_scalar_prefetch=0,
            grid=(n_tiles,),                                        # batch tiles
            in_specs=[
                pl.BlockSpec((1, T * TB, P), lambda b: (b, 0, 0)),  # x slab
                pl.BlockSpec((L, P, Gp), lambda b: (0, 0, 0)),      # W_ih (resident)
                pl.BlockSpec((L, P, Gp), lambda b: (0, 0, 0)),      # W_hh (resident)
                pl.BlockSpec((L, 1, Gp), lambda b: (0, 0, 0)),      # bias
                pl.BlockSpec((P, Cp), lambda b: (0, 0)),            # FC weight
                pl.BlockSpec((1, Cp), lambda b: (0, 0)),            # FC bias
            ],
            out_specs=pl.BlockSpec((TB, Cp), lambda b: (b, 0)),
            scratch_shapes=[
                pltpu.VMEM((T * TB, Gp), jnp.float32),   # hoisted input proj
                pltpu.VMEM((T * TB, P), jnp.bfloat16),   # inter-layer hidden
            ],
        ),
        # Batch tiles are independent -> megacore sharding on v7x.
        compiler_params=pltpu.CompilerParams(
            dimension_semantics=("parallel",),
            vmem_limit_bytes=vmem_limit,
        ),
    )(e, prep["wih"], prep["whh"], prep["b"], prep["wfc"], prep["bfc"])

    return out[:B, :C]


# -------------------------- pure-JAX reference ------------------------------

def rnn_reference(params, x_tokens):
    e = jnp.take(params["emb"], x_tokens, axis=0)
    h_seq = e
    for layer in params["lstm"]:
        B, T, _ = h_seq.shape
        H = layer["w_hh"].shape[1]
        h = jnp.zeros((B, H), jnp.float32)
        c = jnp.zeros((B, H), jnp.float32)
        outs = []
        for t in range(T):
            z = (h_seq[:, t] @ layer["w_ih"].T + h @ layer["w_hh"].T
                 + layer["b_ih"] + layer["b_hh"])
            i = jax.nn.sigmoid(z[:, 0 * H:1 * H])
            f = jax.nn.sigmoid(z[:, 1 * H:2 * H])
            g = jnp.tanh(z[:, 2 * H:3 * H])
            o = jax.nn.sigmoid(z[:, 3 * H:4 * H])
            c = f * c + i * g
            h = o * jnp.tanh(c)
            outs.append(h)
        h_seq = jnp.stack(outs, axis=1)
    logits = h_seq[:, -1] @ params["fc_w"].T + params["fc_b"]
    return jax.nn.log_softmax(logits, axis=1)


# --------------------------------- main -------------------------------------

def make_params(key, input_size, emb_size, hidden_size, num_layers, num_classes):
    ks = jax.random.split(key, 3 + 4 * num_layers)
    scale = 0.1
    params = {
        "emb": scale * jax.random.normal(ks[0], (input_size, emb_size), jnp.float32),
        "fc_w": scale * jax.random.normal(ks[1], (num_classes, hidden_size), jnp.float32),
        "fc_b": scale * jax.random.normal(ks[2], (num_classes,), jnp.float32),
        "lstm": [],
    }
    in_dim = emb_size
    for l in range(num_layers):
        k0, k1, k2, k3 = ks[3 + 4 * l: 3 + 4 * (l + 1)]
        params["lstm"].append({
            "w_ih": scale * jax.random.normal(k0, (4 * hidden_size, in_dim), jnp.float32),
            "w_hh": scale * jax.random.normal(k1, (4 * hidden_size, hidden_size), jnp.float32),
            "b_ih": scale * jax.random.normal(k2, (4 * hidden_size,), jnp.float32),
            "b_hh": scale * jax.random.normal(k3, (4 * hidden_size,), jnp.float32),
        })
        in_dim = hidden_size
    return params


if __name__ == "__main__":
    # Small config consistent with the module's constructor.
    input_size = 32      # vocab size for the Embedding
    emb_size = 16
    hidden_size = 32
    num_layers = 2
    num_classes = 10
    B, T = 2, 8

    key = jax.random.PRNGKey(0)
    kp, kx = jax.random.split(key)
    params = make_params(kp, input_size, emb_size, hidden_size, num_layers, num_classes)
    x_tokens = jax.random.randint(kx, (B, T), 0, input_size, dtype=jnp.int32)

    prep = prepare_params(params)        # one-time layout / bf16 weight prep
    out = rnn_forward(prep, x_tokens)
    out = jax.block_until_ready(out)

    ref = rnn_reference(params, x_tokens)
    assert out.shape == (B, num_classes)
    # bf16 MXU operands / bf16 inter-layer activations vs f32 reference.
    assert jnp.allclose(out, ref, atol=5e-2, rtol=5e-2), "mismatch vs pure-JAX reference"

    print("KERNEL_OK")
</pallas_src>

<mosaic_0001>
module attributes {stable_mosaic.version = 11 : i64} {
  func.func @kernel(%arg0: i32, %arg1: memref<1x128x128xbf16, #tpu.memory_space<vmem>>, %arg2: memref<2x128x128xbf16, #tpu.memory_space<vmem>>, %arg3: memref<2x128x128xbf16, #tpu.memory_space<vmem>>, %arg4: memref<2x1x128xf32, #tpu.memory_space<vmem>>, %arg5: memref<128x128xbf16, #tpu.memory_space<vmem>>, %arg6: memref<1x128xf32, #tpu.memory_space<vmem>>, %arg7: memref<16x128xf32, #tpu.memory_space<vmem>>, %arg8: memref<128x128xf32, #tpu.memory_space<vmem>>, %arg9: memref<128x128xbf16, #tpu.memory_space<vmem>>) attributes {dimension_semantics = [#tpu.dimension_semantics<parallel>], iteration_bounds = array<i64: 1>, scalar_prefetch = 0 : i64, scratch_operands = 2 : i64, tpu.core_type = #tpu.core_type<tc>, window_params = [{transform_indices = @transform_0, window_bounds = array<i64: 1, 128, 128>}, {pipeline_mode = #tpu.pipeline_mode<synchronous>, transform_indices = @transform_1, window_bounds = array<i64: 2, 128, 128>}, {pipeline_mode = #tpu.pipeline_mode<synchronous>, transform_indices = @transform_2, window_bounds = array<i64: 2, 128, 128>}, {pipeline_mode = #tpu.pipeline_mode<synchronous>, transform_indices = @transform_3, window_bounds = array<i64: 2, 1, 128>}, {pipeline_mode = #tpu.pipeline_mode<synchronous>, transform_indices = @transform_4, window_bounds = array<i64: 128, 128>}, {pipeline_mode = #tpu.pipeline_mode<synchronous>, transform_indices = @transform_5, window_bounds = array<i64: 1, 128>}, {transform_indices = @transform_6, window_bounds = array<i64: 16, 128>}]} {
    %cst = arith.constant 0.000000e+00 : f32
    %0 = vector.broadcast %cst : f32 to vector<16x96xf32>
    %c0 = arith.constant 0 : index
    %c0_0 = arith.constant 0 : index
    %c0_1 = arith.constant 0 : index
    %1 = vector.load %arg1[%c0, %c0_0, %c0_1] : memref<1x128x128xbf16, #tpu.memory_space<vmem>>, vector<1x128x128xbf16>
    %2 = vector.shape_cast %1 : vector<1x128x128xbf16> to vector<128x128xbf16>
    %c0_2 = arith.constant 0 : index
    %c0_3 = arith.constant 0 : index
    %c0_4 = arith.constant 0 : index
    %3 = vector.load %arg2[%c0_2, %c0_3, %c0_4] : memref<2x128x128xbf16, #tpu.memory_space<vmem>>, vector<1x128x128xbf16>
    %4 = vector.shape_cast %3 : vector<1x128x128xbf16> to vector<128x128xbf16>
    %cst_5 = arith.constant dense<0.000000e+00> : vector<128x128xf32>
    %5 = tpu.matmul %2, %4, %cst_5 {dimension_numbers = #tpu.dot_dimension_numbers<[1], [0], [0], [1], [0, 0, 1, 1], [], []>} : vector<128x128xbf16>, vector<128x128xbf16>, vector<128x128xf32> -> vector<128x128xf32>
    %c0_6 = arith.constant 0 : index
    %c0_7 = arith.constant 0 : index
    %c0_8 = arith.constant 0 : index
    %6 = vector.load %arg4[%c0_6, %c0_7, %c0_8] : memref<2x1x128xf32, #tpu.memory_space<vmem>>, vector<1x1x128xf32>
    %7 = vector.shape_cast %6 : vector<1x1x128xf32> to vector<1x128xf32>
    %8 = vector.broadcast %7 : vector<1x128xf32> to vector<128x128xf32>
    %9 = arith.addf %5, %8 : vector<128x128xf32>
    %c0_9 = arith.constant 0 : index
    %c0_10 = arith.constant 0 : index
    %10 = vector.load %arg8[%c0_9, %c0_10] : memref<128x128xf32, #tpu.memory_space<vmem>>, vector<128x128xf32>
    tpu.vector_store %arg8[%c0_9, %c0_10], %9 {strides = array<i32>} : memref<128x128xf32, #tpu.memory_space<vmem>>, vector<128x128xf32>,
    %c0_11 = arith.constant 0 : index
    %c0_12 = arith.constant 0 : index
    %c0_13 = arith.constant 0 : index
    %11 = vector.load %arg3[%c0_11, %c0_12, %c0_13] : memref<2x128x128xbf16, #tpu.memory_space<vmem>>, vector<1x128x128xbf16>
    %12 = vector.shape_cast %11 : vector<1x128x128xbf16> to vector<128x128xbf16>
    %cst_14 = arith.constant 0.000000e+00 : f32
    %13 = vector.broadcast %cst_14 : f32 to vector<16x128xf32>
    %cst_15 = arith.constant 0.000000e+00 : f32
    %14 = vector.broadcast %cst_15 : f32 to vector<16x32xf32>
    %c0_i32 = arith.constant 0 : i32
    %c16_i32 = arith.constant 16 : i32
    %15 = arith.muli %c0_i32, %c16_i32 : i32
    %16 = tpu.assume_multiple %15, 16 : i32
    %17 = arith.index_cast %16 : i32 to index
    %c0_16 = arith.constant 0 : index
    %18 = vector.load %arg8[%17, %c0_16] : memref<128x128xf32, #tpu.memory_space<vmem>>, vector<16x128xf32>
    %19 = arith.truncf %13 : vector<16x128xf32> to vector<16x128xbf16>
    %cst_17 = arith.constant dense<0.000000e+00> : vector<16x128xf32>
    %20 = tpu.matmul %19, %12, %cst_17 {dimension_numbers = #tpu.dot_dimension_numbers<[1], [0], [0], [1], [0, 0, 1, 1], [], []>} : vector<16x128xbf16>, vector<128x128xbf16>, vector<16x128xf32> -> vector<16x128xf32>
    %21 = arith.addf %18, %20 : vector<16x128xf32>
    %22 = vector.extract_strided_slice %21 {offsets = [0, 0], sizes = [16, 32], strides = [1, 1]} : vector<16x128xf32> to vector<16x32xf32>
    %23 = arith.negf %22 : vector<16x32xf32>
    %24 = math.exp %23 : vector<16x32xf32>
    %cst_18 = arith.constant 1.000000e+00 : f32
    %25 = vector.broadcast %cst_18 : f32 to vector<16x32xf32>
    %26 = arith.addf %25, %24 : vector<16x32xf32>
    %27 = arith.divf %25, %26 : vector<16x32xf32>
    %28 = vector.extract_strided_slice %21 {offsets = [0, 32], sizes = [16, 32], strides = [1, 1]} : vector<16x128xf32> to vector<16x32xf32>
    %29 = arith.negf %28 : vector<16x32xf32>
    %30 = math.exp %29 : vector<16x32xf32>
    %cst_19 = arith.constant 1.000000e+00 : f32
    %31 = vector.broadcast %cst_19 : f32 to vector<16x32xf32>
    %32 = arith.addf %31, %30 : vector<16x32xf32>
    %33 = arith.divf %31, %32 : vector<16x32xf32>
    %34 = vector.extract_strided_slice %21 {offsets = [0, 64], sizes = [16, 32], strides = [1, 1]} : vector<16x128xf32> to vector<16x32xf32>
    %35 = math.tanh %34 : vector<16x32xf32>
    %36 = vector.extract_strided_slice %21 {offsets = [0, 96], sizes = [16, 32], strides = [1, 1]} : vector<16x128xf32> to vector<16x32xf32>
    %37 = arith.negf %36 : vector<16x32xf32>
    %38 = math.exp %37 : vector<16x32xf32>
    %cst_20 = arith.constant 1.000000e+00 : f32
    %39 = vector.broadcast %cst_20 : f32 to vector<16x32xf32>
    %40 = arith.addf %39, %38 : vector<16x32xf32>
    %41 = arith.divf %39, %40 : vector<16x32xf32>
    %42 = arith.mulf %33, %14 : vector<16x32xf32>
    %43 = arith.mulf %27, %35 : vector<16x32xf32>
    %44 = arith.addf %42, %43 : vector<16x32xf32>
    %45 = math.tanh %44 : vector<16x32xf32>
    %46 = arith.mulf %41, %45 : vector<16x32xf32>
    %47 = tpu.concatenate %46, %0 in 1 : vector<16x32xf32>, vector<16x96xf32> -> vector<16x128xf32>
    %48 = arith.truncf %47 : vector<16x128xf32> to vector<16x128xbf16>
    %49 = arith.index_cast %16 : i32 to index
    %c0_21 = arith.constant 0 : index
    %50 = vector.load %arg9[%49, %c0_21] : memref<128x128xbf16, #tpu.memory_space<vmem>>, vector<16x128xbf16>
    tpu.vector_store %arg9[%49, %c0_21], %48 {strides = array<i32>} : memref<128x128xbf16, #tpu.memory_space<vmem>>, vector<16x128xbf16>,
    %c1_i32 = arith.constant 1 : i32
    %c16_i32_22 = arith.constant 16 : i32
    %51 = arith.muli %c1_i32, %c16_i32_22 : i32
    %52 = tpu.assume_multiple %51, 16 : i32
    %53 = arith.index_cast %52 : i32 to index
    %c0_23 = arith.constant 0 : index
    %54 = vector.load %arg8[%53, %c0_23] : memref<128x128xf32, #tpu.memory_space<vmem>>, vector<16x128xf32>
    %55 = arith.truncf %47 : vector<16x128xf32> to vector<16x128xbf16>
    %cst_24 = arith.constant dense<0.000000e+00> : vector<16x128xf32>
    %56 = tpu.matmul %55, %12, %cst_24 {dimension_numbers = #tpu.dot_dimension_numbers<[1], [0], [0], [1], [0, 0, 1, 1], [], []>} : vector<16x128xbf16>, vector<128x128xbf16>, vector<16x128xf32> -> vector<16x128xf32>
    %57 = arith.addf %54, %56 : vector<16x128xf32>
    %58 = vector.extract_strided_slice %57 {offsets = [0, 0], sizes = [16, 32], strides = [1, 1]} : vector<16x128xf32> to vector<16x32xf32>
    %59 = arith.negf %58 : vector<16x32xf32>
    %60 = math.exp %59 : vector<16x32xf32>
    %cst_25 = arith.constant 1.000000e+00 : f32
    %61 = vector.broadcast %cst_25 : f32 to vector<16x32xf32>
    %62 = arith.addf %61, %60 : vector<16x32xf32>
    %63 = arith.divf %61, %62 : vector<16x32xf32>
    %64 = vector.extract_strided_slice %57 {offsets = [0, 32], sizes = [16, 32], strides = [1, 1]} : vector<16x128xf32> to vector<16x32xf32>
    %65 = arith.negf %64 : vector<16x32xf32>
    %66 = math.exp %65 : vector<16x32xf32>
    %cst_26 = arith.constant 1.000000e+00 : f32
    %67 = vector.broadcast %cst_26 : f32 to vector<16x32xf32>
    %68 = arith.addf %67, %66 : vector<16x32xf32>
    %69 = arith.divf %67, %68 : vector<16x32xf32>
    %70 = vector.extract_strided_slice %57 {offsets = [0, 64], sizes = [16, 32], strides = [1, 1]} : vector<16x128xf32> to vector<16x32xf32>
    %71 = math.tanh %70 : vector<16x32xf32>
    %72 = vector.extract_strided_slice %57 {offsets = [0, 96], sizes = [16, 32], strides = [1, 1]} : vector<16x128xf32> to vector<16x32xf32>
    %73 = arith.negf %72 : vector<16x32xf32>
    %74 = math.exp %73 : vector<16x32xf32>
    %cst_27 = arith.constant 1.000000e+00 : f32
    %75 = vector.broadcast %cst_27 : f32 to vector<16x32xf32>
    %76 = arith.addf %75, %74 : vector<16x32xf32>
    %77 = arith.divf %75, %76 : vector<16x32xf32>
    %78 = arith.mulf %69, %44 : vector<16x32xf32>
    %79 = arith.mulf %63, %71 : vector<16x32xf32>
    %80 = arith.addf %78, %79 : vector<16x32xf32>
    %81 = math.tanh %80 : vector<16x32xf32>
    %82 = arith.mulf %77, %81 : vector<16x32xf32>
    %83 = tpu.concatenate %82, %0 in 1 : vector<16x32xf32>, vector<16x96xf32> -> vector<16x128xf32>
    %84 = arith.truncf %83 : vector<16x128xf32> to vector<16x128xbf16>
    %85 = arith.index_cast %52 : i32 to index
    %c0_28 = arith.constant 0 : index
    %86 = vector.load %arg9[%85, %c0_28] : memref<128x128xbf16, #tpu.memory_space<vmem>>, vector<16x128xbf16>
    tpu.vector_store %arg9[%85, %c0_28], %84 {strides = array<i32>} : memref<128x128xbf16, #tpu.memory_space<vmem>>, vector<16x128xbf16>,
    %c2_i32 = arith.constant 2 : i32
    %c16_i32_29 = arith.constant 16 : i32
    %87 = arith.muli %c2_i32, %c16_i32_29 : i32
    %88 = tpu.assume_multiple %87, 16 : i32
    %89 = arith.index_cast %88 : i32 to index
    %c0_30 = arith.constant 0 : index
    %90 = vector.load %arg8[%89, %c0_30] : memref<128x128xf32, #tpu.memory_space<vmem>>, vector<16x128xf32>
    %91 = arith.truncf %83 : vector<16x128xf32> to vector<16x128xbf16>
    %cst_31 = arith.constant dense<0.000000e+00> : vector<16x128xf32>
    %92 = tpu.matmul %91, %12, %cst_31 {dimension_numbers = #tpu.dot_dimension_numbers<[1], [0], [0], [1], [0, 0, 1, 1], [], []>} : vector<16x128xbf16>, vector<128x128xbf16>, vector<16x128xf32> -> vector<16x128xf32>
    %93 = arith.addf %90, %92 : vector<16x128xf32>
    %94 = vector.extract_strided_slice %93 {offsets = [0, 0], sizes = [16, 32], strides = [1, 1]} : vector<16x128xf32> to vector<16x32xf32>
    %95 = arith.negf %94 : vector<16x32xf32>
    %96 = math.exp %95 : vector<16x32xf32>
    %cst_32 = arith.constant 1.000000e+00 : f32
    %97 = vector.broadcast %cst_32 : f32 to vector<16x32xf32>
    %98 = arith.addf %97, %96 : vector<16x32xf32>
    %99 = arith.divf %97, %98 : vector<16x32xf32>
    %100 = vector.extract_strided_slice %93 {offsets = [0, 32], sizes = [16, 32], strides = [1, 1]} : vector<16x128xf32> to vector<16x32xf32>
    %101 = arith.negf %100 : vector<16x32xf32>
    %102 = math.exp %101 : vector<16x32xf32>
    %cst_33 = arith.constant 1.000000e+00 : f32
    %103 = vector.broadcast %cst_33 : f32 to vector<16x32xf32>
    %104 = arith.addf %103, %102 : vector<16x32xf32>
    %105 = arith.divf %103, %104 : vector<16x32xf32>
    %106 = vector.extract_strided_slice %93 {offsets = [0, 64], sizes = [16, 32], strides = [1, 1]} : vector<16x128xf32> to vector<16x32xf32>
    %107 = math.tanh %106 : vector<16x32xf32>
    %108 = vector.extract_strided_slice %93 {offsets = [0, 96], sizes = [16, 32], strides = [1, 1]} : vector<16x128xf32> to vector<16x32xf32>
    %109 = arith.negf %108 : vector<16x32xf32>
    %110 = math.exp %109 : vector<16x32xf32>
    %cst_34 = arith.constant 1.000000e+00 : f32
    %111 = vector.broadcast %cst_34 : f32 to vector<16x32xf32>
    %112 = arith.addf %111, %110 : vector<16x32xf32>
    %113 = arith.divf %111, %112 : vector<16x32xf32>
    %114 = arith.mulf %105, %80 : vector<16x32xf32>
    %115 = arith.mulf %99, %107 : vector<16x32xf32>
    %116 = arith.addf %114, %115 : vector<16x32xf32>
    %117 = math.tanh %116 : vector<16x32xf32>
    %118 = arith.mulf %113, %117 : vector<16x32xf32>
    %119 = tpu.concatenate %118, %0 in 1 : vector<16x32xf32>, vector<16x96xf32> -> vector<16x128xf32>
    %120 = arith.truncf %119 : vector<16x128xf32> to vector<16x128xbf16>
    %121 = arith.index_cast %88 : i32 to index
    %c0_35 = arith.constant 0 : index
    %122 = vector.load %arg9[%121, %c0_35] : memref<128x128xbf16, #tpu.memory_space<vmem>>, vector<16x128xbf16>
    tpu.vector_store %arg9[%121, %c0_35], %120 {strides = array<i32>} : memref<128x128xbf16, #tpu.memory_space<vmem>>, vector<16x128xbf16>,
    %c3_i32 = arith.constant 3 : i32
    %c16_i32_36 = arith.constant 16 : i32
    %123 = arith.muli %c3_i32, %c16_i32_36 : i32
    %124 = tpu.assume_multiple %123, 16 : i32
    %125 = arith.index_cast %124 : i32 to index
    %c0_37 = arith.constant 0 : index
    %126 = vector.load %arg8[%125, %c0_37] : memref<128x128xf32, #tpu.memory_space<vmem>>, vector<16x128xf32>
    %127 = arith.truncf %119 : vector<16x128xf32> to vector<16x128xbf16>
    %cst_38 = arith.constant dense<0.000000e+00> : vector<16x128xf32>
    %128 = tpu.matmul %127, %12, %cst_38 {dimension_numbers = #tpu.dot_dimension_numbers<[1], [0], [0], [1], [0, 0, 1, 1], [], []>} : vector<16x128xbf16>, vector<128x128xbf16>, vector<16x128xf32> -> vector<16x128xf32>
    %129 = arith.addf %126, %128 : vector<16x128xf32>
    %130 = vector.extract_strided_slice %129 {offsets = [0, 0], sizes = [16, 32], strides = [1, 1]} : vector<16x128xf32> to vector<16x32xf32>
    %131 = arith.negf %130 : vector<16x32xf32>
    %132 = math.exp %131 : vector<16x32xf32>
    %cst_39 = arith.constant 1.000000e+00 : f32
    %133 = vector.broadcast %cst_39 : f32 to vector<16x32xf32>
    %134 = arith.addf %133, %132 : vector<16x32xf32>
    %135 = arith.divf %133, %134 : vector<16x32xf32>
    %136 = vector.extract_strided_slice %129 {offsets = [0, 32], sizes = [16, 32], strides = [1, 1]} : vector<16x128xf32> to vector<16x32xf32>
    %137 = arith.negf %136 : vector<16x32xf32>
    %138 = math.exp %137 : vector<16x32xf32>
    %cst_40 = arith.constant 1.000000e+00 : f32
    %139 = vector.broadcast %cst_40 : f32 to vector<16x32xf32>
    %140 = arith.addf %139, %138 : vector<16x32xf32>
    %141 = arith.divf %139, %140 : vector<16x32xf32>
    %142 = vector.extract_strided_slice %129 {offsets = [0, 64], sizes = [16, 32], strides = [1, 1]} : vector<16x128xf32> to vector<16x32xf32>
    %143 = math.tanh %142 : vector<16x32xf32>
    %144 = vector.extract_strided_slice %129 {offsets = [0, 96], sizes = [16, 32], strides = [1, 1]} : vector<16x128xf32> to vector<16x32xf32>
    %145 = arith.negf %144 : vector<16x32xf32>
    %146 = math.exp %145 : vector<16x32xf32>
    %cst_41 = arith.constant 1.000000e+00 : f32
    %147 = vector.broadcast %cst_41 : f32 to vector<16x32xf32>
    %148 = arith.addf %147, %146 : vector<16x32xf32>
    %149 = arith.divf %147, %148 : vector<16x32xf32>
    %150 = arith.mulf %141, %116 : vector<16x32xf32>
    %151 = arith.mulf %135, %143 : vector<16x32xf32>
    %152 = arith.addf %150, %151 : vector<16x32xf32>
    %153 = math.tanh %152 : vector<16x32xf32>
    %154 = arith.mulf %149, %153 : vector<16x32xf32>
    %155 = tpu.concatenate %154, %0 in 1 : vector<16x32xf32>, vector<16x96xf32> -> vector<16x128xf32>
    %156 = arith.truncf %155 : vector<16x128xf32> to vector<16x128xbf16>
    %157 = arith.index_cast %124 : i32 to index
    %c0_42 = arith.constant 0 : index
    %158 = vector.load %arg9[%157, %c0_42] : memref<128x128xbf16, #tpu.memory_space<vmem>>, vector<16x128xbf16>
    tpu.vector_store %arg9[%157, %c0_42], %156 {strides = array<i32>} : memref<128x128xbf16, #tpu.memory_space<vmem>>, vector<16x128xbf16>,
    %c4_i32 = arith.constant 4 : i32
    %c16_i32_43 = arith.constant 16 : i32
    %159 = arith.muli %c4_i32, %c16_i32_43 : i32
    %160 = tpu.assume_multiple %159, 16 : i32
    %161 = arith.index_cast %160 : i32 to index
    %c0_44 = arith.constant 0 : index
    %162 = vector.load %arg8[%161, %c0_44] : memref<128x128xf32, #tpu.memory_space<vmem>>, vector<16x128xf32>
    %163 = arith.truncf %155 : vector<16x128xf32> to vector<16x128xbf16>
    %cst_45 = arith.constant dense<0.000000e+00> : vector<16x128xf32>
    %164 = tpu.matmul %163, %12, %cst_45 {dimension_numbers = #tpu.dot_dimension_numbers<[1], [0], [0], [1], [0, 0, 1, 1], [], []>} : vector<16x128xbf16>, vector<128x128xbf16>, vector<16x128xf32> -> vector<16x128xf32>
    %165 = arith.addf %162, %164 : vector<16x128xf32>
    %166 = vector.extract_strided_slice %165 {offsets = [0, 0], sizes = [16, 32], strides = [1, 1]} : vector<16x128xf32> to vector<16x32xf32>
    %167 = arith.negf %166 : vector<16x32xf32>
    %168 = math.exp %167 : vector<16x32xf32>
    %cst_46 = arith.constant 1.000000e+00 : f32
    %169 = vector.broadcast %cst_46 : f32 to vector<16x32xf32>
    %170 = arith.addf %169, %168 : vector<16x32xf32>
    %171 = arith.divf %169, %170 : vector<16x32xf32>
    %172 = vector.extract_strided_slice %165 {offsets = [0, 32], sizes = [16, 32], strides = [1, 1]} : vector<16x128xf32> to vector<16x32xf32>
    %173 = arith.negf %172 : vector<16x32xf32>
    %174 = math.exp %173 : vector<16x32xf32>
    %cst_47 = arith.constant 1.000000e+00 : f32
    %175 = vector.broadcast %cst_47 : f32 to vector<16x32xf32>
    %176 = arith.addf %175, %174 : vector<16x32xf32>
    %177 = arith.divf %175, %176 : vector<16x32xf32>
    %178 = vector.extract_strided_slice %165 {offsets = [0, 64], sizes = [16, 32], strides = [1, 1]} : vector<16x128xf32> to vector<16x32xf32>
    %179 = math.tanh %178 : vector<16x32xf32>
    %180 = vector.extract_strided_slice %165 {offsets = [0, 96], sizes = [16, 32], strides = [1, 1]} : vector<16x128xf32> to vector<16x32xf32>
    %181 = arith.negf %180 : vector<16x32xf32>
    %182 = math.exp %181 : vector<16x32xf32>
    %cst_48 = arith.constant 1.000000e+00 : f32
    %183 = vector.broadcast %cst_48 : f32 to vector<16x32xf32>
    %184 = arith.addf %183, %182 : vector<16x32xf32>
    %185 = arith.divf %183, %184 : vector<16x32xf32>
    %186 = arith.mulf %177, %152 : vector<16x32xf32>
    %187 = arith.mulf %171, %179 : vector<16x32xf32>
    %188 = arith.addf %186, %187 : vector<16x32xf32>
    %189 = math.tanh %188 : vector<16x32xf32>
    %190 = arith.mulf %185, %189 : vector<16x32xf32>
    %191 = tpu.concatenate %190, %0 in 1 : vector<16x32xf32>, vector<16x96xf32> -> vector<16x128xf32>
    %192 = arith.truncf %191 : vector<16x128xf32> to vector<16x128xbf16>
    %193 = arith.index_cast %160 : i32 to index
    %c0_49 = arith.constant 0 : index
    %194 = vector.load %arg9[%193, %c0_49] : memref<128x128xbf16, #tpu.memory_space<vmem>>, vector<16x128xbf16>
    tpu.vector_store %arg9[%193, %c0_49], %192 {strides = array<i32>} : memref<128x128xbf16, #tpu.memory_space<vmem>>, vector<16x128xbf16>,
    %c5_i32 = arith.constant 5 : i32
    %c16_i32_50 = arith.constant 16 : i32
    %195 = arith.muli %c5_i32, %c16_i32_50 : i32
    %196 = tpu.assume_multiple %195, 16 : i32
    %197 = arith.index_cast %196 : i32 to index
    %c0_51 = arith.constant 0 : index
    %198 = vector.load %arg8[%197, %c0_51] : memref<128x128xf32, #tpu.memory_space<vmem>>, vector<16x128xf32>
    %199 = arith.truncf %191 : vector<16x128xf32> to vector<16x128xbf16>
    %cst_52 = arith.constant dense<0.000000e+00> : vector<16x128xf32>
    %200 = tpu.matmul %199, %12, %cst_52 {dimension_numbers = #tpu.dot_dimension_numbers<[1], [0], [0], [1], [0, 0, 1, 1], [], []>} : vector<16x128xbf16>, vector<128x128xbf16>, vector<16x128xf32> -> vector<16x128xf32>
    %201 = arith.addf %198, %200 : vector<16x128xf32>
    %202 = vector.extract_strided_slice %201 {offsets = [0, 0], sizes = [16, 32], strides = [1, 1]} : vector<16x128xf32> to vector<16x32xf32>
    %203 = arith.negf %202 : vector<16x32xf32>
    %204 = math.exp %203 : vector<16x32xf32>
    %cst_53 = arith.constant 1.000000e+00 : f32
    %205 = vector.broadcast %cst_53 : f32 to vector<16x32xf32>
    %206 = arith.addf %205, %204 : vector<16x32xf32>
    %207 = arith.divf %205, %206 : vector<16x32xf32>
    %208 = vector.extract_strided_slice %201 {offsets = [0, 32], sizes = [16, 32], strides = [1, 1]} : vector<16x128xf32> to vector<16x32xf32>
    %209 = arith.negf %208 : vector<16x32xf32>
    %210 = math.exp %209 : vector<16x32xf32>
    %cst_54 = arith.constant 1.000000e+00 : f32
    %211 = vector.broadcast %cst_54 : f32 to vector<16x32xf32>
    %212 = arith.addf %211, %210 : vector<16x32xf32>
    %213 = arith.divf %211, %212 : vector<16x32xf32>
    %214 = vector.extract_strided_slice %201 {offsets = [0, 64], sizes = [16, 32], strides = [1, 1]} : vector<16x128xf32> to vector<16x32xf32>
    %215 = math.tanh %214 : vector<16x32xf32>
    %216 = vector.extract_strided_slice %201 {offsets = [0, 96], sizes = [16, 32], strides = [1, 1]} : vector<16x128xf32> to vector<16x32xf32>
    %217 = arith.negf %216 : vector<16x32xf32>
    %218 = math.exp %217 : vector<16x32xf32>
    %cst_55 = arith.constant 1.000000e+00 : f32
    %219 = vector.broadcast %cst_55 : f32 to vector<16x32xf32>
    %220 = arith.addf %219, %218 : vector<16x32xf32>
    %221 = arith.divf %219, %220 : vector<16x32xf32>
    %222 = arith.mulf %213, %188 : vector<16x32xf32>
    %223 = arith.mulf %207, %215 : vector<16x32xf32>
    %224 = arith.addf %222, %223 : vector<16x32xf32>
    %225 = math.tanh %224 : vector<16x32xf32>
    %226 = arith.mulf %221, %225 : vector<16x32xf32>
    %227 = tpu.concatenate %226, %0 in 1 : vector<16x32xf32>, vector<16x96xf32> -> vector<16x128xf32>
    %228 = arith.truncf %227 : vector<16x128xf32> to vector<16x128xbf16>
    %229 = arith.index_cast %196 : i32 to index
    %c0_56 = arith.constant 0 : index
    %230 = vector.load %arg9[%229, %c0_56] : memref<128x128xbf16, #tpu.memory_space<vmem>>, vector<16x128xbf16>
    tpu.vector_store %arg9[%229, %c0_56], %228 {strides = array<i32>} : memref<128x128xbf16, #tpu.memory_space<vmem>>, vector<16x128xbf16>,
    %c6_i32 = arith.constant 6 : i32
    %c16_i32_57 = arith.constant 16 : i32
    %231 = arith.muli %c6_i32, %c16_i32_57 : i32
    %232 = tpu.assume_multiple %231, 16 : i32
    %233 = arith.index_cast %232 : i32 to index
    %c0_58 = arith.constant 0 : index
    %234 = vector.load %arg8[%233, %c0_58] : memref<128x128xf32, #tpu.memory_space<vmem>>, vector<16x128xf32>
    %235 = arith.truncf %227 : vector<16x128xf32> to vector<16x128xbf16>
    %cst_59 = arith.constant dense<0.000000e+00> : vector<16x128xf32>
    %236 = tpu.matmul %235, %12, %cst_59 {dimension_numbers = #tpu.dot_dimension_numbers<[1], [0], [0], [1], [0, 0, 1, 1], [], []>} : vector<16x128xbf16>, vector<128x128xbf16>, vector<16x128xf32> -> vector<16x128xf32>
    %237 = arith.addf %234, %236 : vector<16x128xf32>
    %238 = vector.extract_strided_slice %237 {offsets = [0, 0], sizes = [16, 32], strides = [1, 1]} : vector<16x128xf32> to vector<16x32xf32>
    %239 = arith.negf %238 : vector<16x32xf32>
    %240 = math.exp %239 : vector<16x32xf32>
    %cst_60 = arith.constant 1.000000e+00 : f32
    %241 = vector.broadcast %cst_60 : f32 to vector<16x32xf32>
    %242 = arith.addf %241, %240 : vector<16x32xf32>
    %243 = arith.divf %241, %242 : vector<16x32xf32>
    %244 = vector.extract_strided_slice %237 {offsets = [0, 32], sizes = [16, 32], strides = [1, 1]} : vector<16x128xf32> to vector<16x32xf32>
    %245 = arith.negf %244 : vector<16x32xf32>
    %246 = math.exp %245 : vector<16x32xf32>
    %cst_61 = arith.constant 1.000000e+00 : f32
    %247 = vector.broadcast %cst_61 : f32 to vector<16x32xf32>
    %248 = arith.addf %247, %246 : vector<16x32xf32>
    %249 = arith.divf %247, %248 : vector<16x32xf32>
    %250 = vector.extract_strided_slice %237 {offsets = [0, 64], sizes = [16, 32], strides = [1, 1]} : vector<16x128xf32> to vector<16x32xf32>
    %251 = math.tanh %250 : vector<16x32xf32>
    %252 = vector.extract_strided_slice %237 {offsets = [0, 96], sizes = [16, 32], strides = [1, 1]} : vector<16x128xf32> to vector<16x32xf32>
    %253 = arith.negf %252 : vector<16x32xf32>
    %254 = math.exp %253 : vector<16x32xf32>
    %cst_62 = arith.constant 1.000000e+00 : f32
    %255 = vector.broadcast %cst_62 : f32 to vector<16x32xf32>
    %256 = arith.addf %255, %254 : vector<16x32xf32>
    %257 = arith.divf %255, %256 : vector<16x32xf32>
    %258 = arith.mulf %249, %224 : vector<16x32xf32>
    %259 = arith.mulf %243, %251 : vector<16x32xf32>
    %260 = arith.addf %258, %259 : vector<16x32xf32>
    %261 = math.tanh %260 : vector<16x32xf32>
    %262 = arith.mulf %257, %261 : vector<16x32xf32>
    %263 = tpu.concatenate %262, %0 in 1 : vector<16x32xf32>, vector<16x96xf32> -> vector<16x128xf32>
    %264 = arith.truncf %263 : vector<16x128xf32> to vector<16x128xbf16>
    %265 = arith.index_cast %232 : i32 to index
    %c0_63 = arith.constant 0 : index
    %266 = vector.load %arg9[%265, %c0_63] : memref<128x128xbf16, #tpu.memory_space<vmem>>, vector<16x128xbf16>
    tpu.vector_store %arg9[%265, %c0_63], %264 {strides = array<i32>} : memref<128x128xbf16, #tpu.memory_space<vmem>>, vector<16x128xbf16>,
    %c7_i32 = arith.constant 7 : i32
    %c16_i32_64 = arith.constant 16 : i32
    %267 = arith.muli %c7_i32, %c16_i32_64 : i32
    %268 = tpu.assume_multiple %267, 16 : i32
    %269 = arith.index_cast %268 : i32 to index
    %c0_65 = arith.constant 0 : index
    %270 = vector.load %arg8[%269, %c0_65] : memref<128x128xf32, #tpu.memory_space<vmem>>, vector<16x128xf32>
    %271 = arith.truncf %263 : vector<16x128xf32> to vector<16x128xbf16>
    %cst_66 = arith.constant dense<0.000000e+00> : vector<16x128xf32>
    %272 = tpu.matmul %271, %12, %cst_66 {dimension_numbers = #tpu.dot_dimension_numbers<[1], [0], [0], [1], [0, 0, 1, 1], [], []>} : vector<16x128xbf16>, vector<128x128xbf16>, vector<16x128xf32> -> vector<16x128xf32>
    %273 = arith.addf %270, %272 : vector<16x128xf32>
    %274 = vector.extract_strided_slice %273 {offsets = [0, 0], sizes = [16, 32], strides = [1, 1]} : vector<16x128xf32> to vector<16x32xf32>
    %275 = arith.negf %274 : vector<16x32xf32>
    %276 = math.exp %275 : vector<16x32xf32>
    %cst_67 = arith.constant 1.000000e+00 : f32
    %277 = vector.broadcast %cst_67 : f32 to vector<16x32xf32>
    %278 = arith.addf %277, %276 : vector<16x32xf32>
    %279 = arith.divf %277, %278 : vector<16x32xf32>
    %280 = vector.extract_strided_slice %273 {offsets = [0, 32], sizes = [16, 32], strides = [1, 1]} : vector<16x128xf32> to vector<16x32xf32>
    %281 = arith.negf %280 : vector<16x32xf32>
    %282 = math.exp %281 : vector<16x32xf32>
    %cst_68 = arith.constant 1.000000e+00 : f32
    %283 = vector.broadcast %cst_68 : f32 to vector<16x32xf32>
    %284 = arith.addf %283, %282 : vector<16x32xf32>
    %285 = arith.divf %283, %284 : vector<16x32xf32>
    %286 = vector.extract_strided_slice %273 {offsets = [0, 64], sizes = [16, 32], strides = [1, 1]} : vector<16x128xf32> to vector<16x32xf32>
    %287 = math.tanh %286 : vector<16x32xf32>
    %288 = vector.extract_strided_slice %273 {offsets = [0, 96], sizes = [16, 32], strides = [1, 1]} : vector<16x128xf32> to vector<16x32xf32>
    %289 = arith.negf %288 : vector<16x32xf32>
    %290 = math.exp %289 : vector<16x32xf32>
    %cst_69 = arith.constant 1.000000e+00 : f32
    %291 = vector.broadcast %cst_69 : f32 to vector<16x32xf32>
    %292 = arith.addf %291, %290 : vector<16x32xf32>
    %293 = arith.divf %291, %292 : vector<16x32xf32>
    %294 = arith.mulf %285, %260 : vector<16x32xf32>
    %295 = arith.mulf %279, %287 : vector<16x32xf32>
    %296 = arith.addf %294, %295 : vector<16x32xf32>
    %297 = math.tanh %296 : vector<16x32xf32>
    %298 = arith.mulf %293, %297 : vector<16x32xf32>
    %299 = tpu.concatenate %298, %0 in 1 : vector<16x32xf32>, vector<16x96xf32> -> vector<16x128xf32>
    %300 = arith.truncf %299 : vector<16x128xf32> to vector<16x128xbf16>
    %301 = arith.index_cast %268 : i32 to index
    %c0_70 = arith.constant 0 : index
    %302 = vector.load %arg9[%301, %c0_70] : memref<128x128xbf16, #tpu.memory_space<vmem>>, vector<16x128xbf16>
    tpu.vector_store %arg9[%301, %c0_70], %300 {strides = array<i32>} : memref<128x128xbf16, #tpu.memory_space<vmem>>, vector<16x128xbf16>,
    %c8_i32 = arith.constant 8 : i32
    %c0_71 = arith.constant 0 : index
    %c0_72 = arith.constant 0 : index
    %303 = vector.load %arg9[%c0_71, %c0_72] : memref<128x128xbf16, #tpu.memory_space<vmem>>, vector<128x128xbf16>
    %c1 = arith.constant 1 : index
    %c0_73 = arith.constant 0 : index
    %c0_74 = arith.constant 0 : index
    %304 = vector.load %arg2[%c1, %c0_73, %c0_74] : memref<2x128x128xbf16, #tpu.memory_space<vmem>>, vector<1x128x128xbf16>
    %305 = vector.shape_cast %304 : vector<1x128x128xbf16> to vector<128x128xbf16>
    %cst_75 = arith.constant dense<0.000000e+00> : vector<128x128xf32>
    %306 = tpu.matmul %303, %305, %cst_75 {dimension_numbers = #tpu.dot_dimension_numbers<[1], [0], [0], [1], [0, 0, 1, 1], [], []>} : vector<128x128xbf16>, vector<128x128xbf16>, vector<128x128xf32> -> vector<128x128xf32>
    %c1_76 = arith.constant 1 : index
    %c0_77 = arith.constant 0 : index
    %c0_78 = arith.constant 0 : index
    %307 = vector.load %arg4[%c1_76, %c0_77, %c0_78] : memref<2x1x128xf32, #tpu.memory_space<vmem>>, vector<1x1x128xf32>
    %308 = vector.shape_cast %307 : vector<1x1x128xf32> to vector<1x128xf32>
    %309 = vector.broadcast %308 : vector<1x128xf32> to vector<128x128xf32>
    %310 = arith.addf %306, %309 : vector<128x128xf32>
    %c0_79 = arith.constant 0 : index
    %c0_80 = arith.constant 0 : index
    %311 = vector.load %arg8[%c0_79, %c0_80] : memref<128x128xf32, #tpu.memory_space<vmem>>, vector<128x128xf32>
    tpu.vector_store %arg8[%c0_79, %c0_80], %310 {strides = array<i32>} : memref<128x128xf32, #tpu.memory_space<vmem>>, vector<128x128xf32>,
    %c1_81 = arith.constant 1 : index
    %c0_82 = arith.constant 0 : index
    %c0_83 = arith.constant 0 : index
    %312 = vector.load %arg3[%c1_81, %c0_82, %c0_83] : memref<2x128x128xbf16, #tpu.memory_space<vmem>>, vector<1x128x128xbf16>
    %313 = vector.shape_cast %312 : vector<1x128x128xbf16> to vector<128x128xbf16>
    %cst_84 = arith.constant 0.000000e+00 : f32
    %314 = vector.broadcast %cst_84 : f32 to vector<16x128xf32>
    %cst_85 = arith.constant 0.000000e+00 : f32
    %315 = vector.broadcast %cst_85 : f32 to vector<16x32xf32>
    %c0_i32_86 = arith.constant 0 : i32
    %c16_i32_87 = arith.constant 16 : i32
    %316 = arith.muli %c0_i32_86, %c16_i32_87 : i32
    %317 = tpu.assume_multiple %316, 16 : i32
    %318 = arith.index_cast %317 : i32 to index
    %c0_88 = arith.constant 0 : index
    %319 = vector.load %arg8[%318, %c0_88] : memref<128x128xf32, #tpu.memory_space<vmem>>, vector<16x128xf32>
    %320 = arith.truncf %314 : vector<16x128xf32> to vector<16x128xbf16>
    %cst_89 = arith.constant dense<0.000000e+00> : vector<16x128xf32>
    %321 = tpu.matmul %320, %313, %cst_89 {dimension_numbers = #tpu.dot_dimension_numbers<[1], [0], [0], [1], [0, 0, 1, 1], [], []>} : vector<16x128xbf16>, vector<128x128xbf16>, vector<16x128xf32> -> vector<16x128xf32>
    %322 = arith.addf %319, %321 : vector<16x128xf32>
    %323 = vector.extract_strided_slice %322 {offsets = [0, 0], sizes = [16, 32], strides = [1, 1]} : vector<16x128xf32> to vector<16x32xf32>
    %324 = arith.negf %323 : vector<16x32xf32>
    %325 = math.exp %324 : vector<16x32xf32>
    %cst_90 = arith.constant 1.000000e+00 : f32
    %326 = vector.broadcast %cst_90 : f32 to vector<16x32xf32>
    %327 = arith.addf %326, %325 : vector<16x32xf32>
    %328 = arith.divf %326, %327 : vector<16x32xf32>
    %329 = vector.extract_strided_slice %322 {offsets = [0, 32], sizes = [16, 32], strides = [1, 1]} : vector<16x128xf32> to vector<16x32xf32>
    %330 = arith.negf %329 : vector<16x32xf32>
    %331 = math.exp %330 : vector<16x32xf32>
    %cst_91 = arith.constant 1.000000e+00 : f32
    %332 = vector.broadcast %cst_91 : f32 to vector<16x32xf32>
    %333 = arith.addf %332, %331 : vector<16x32xf32>
    %334 = arith.divf %332, %333 : vector<16x32xf32>
    %335 = vector.extract_strided_slice %322 {offsets = [0, 64], sizes = [16, 32], strides = [1, 1]} : vector<16x128xf32> to vector<16x32xf32>
    %336 = math.tanh %335 : vector<16x32xf32>
    %337 = vector.extract_strided_slice %322 {offsets = [0, 96], sizes = [16, 32], strides = [1, 1]} : vector<16x128xf32> to vector<16x32xf32>
    %338 = arith.negf %337 : vector<16x32xf32>
    %339 = math.exp %338 : vector<16x32xf32>
    %cst_92 = arith.constant 1.000000e+00 : f32
    %340 = vector.broadcast %cst_92 : f32 to vector<16x32xf32>
    %341 = arith.addf %340, %339 : vector<16x32xf32>
    %342 = arith.divf %340, %341 : vector<16x32xf32>
    %343 = arith.mulf %334, %315 : vector<16x32xf32>
    %344 = arith.mulf %328, %336 : vector<16x32xf32>
    %345 = arith.addf %343, %344 : vector<16x32xf32>
    %346 = math.tanh %345 : vector<16x32xf32>
    %347 = arith.mulf %342, %346 : vector<16x32xf32>
    %348 = tpu.concatenate %347, %0 in 1 : vector<16x32xf32>, vector<16x96xf32> -> vector<16x128xf32>
    %c1_i32_93 = arith.constant 1 : i32
    %c16_i32_94 = arith.constant 16 : i32
    %349 = arith.muli %c1_i32_93, %c16_i32_94 : i32
    %350 = tpu.assume_multiple %349, 16 : i32
    %351 = arith.index_cast %350 : i32 to index
    %c0_95 = arith.constant 0 : index
    %352 = vector.load %arg8[%351, %c0_95] : memref<128x128xf32, #tpu.memory_space<vmem>>, vector<16x128xf32>
    %353 = arith.truncf %348 : vector<16x128xf32> to vector<16x128xbf16>
    %cst_96 = arith.constant dense<0.000000e+00> : vector<16x128xf32>
    %354 = tpu.matmul %353, %313, %cst_96 {dimension_numbers = #tpu.dot_dimension_numbers<[1], [0], [0], [1], [0, 0, 1, 1], [], []>} : vector<16x128xbf16>, vector<128x128xbf16>, vector<16x128xf32> -> vector<16x128xf32>
    %355 = arith.addf %352, %354 : vector<16x128xf32>
    %356 = vector.extract_strided_slice %355 {offsets = [0, 0], sizes = [16, 32], strides = [1, 1]} : vector<16x128xf32> to vector<16x32xf32>
    %357 = arith.negf %356 : vector<16x32xf32>
    %358 = math.exp %357 : vector<16x32xf32>
    %cst_97 = arith.constant 1.000000e+00 : f32
    %359 = vector.broadcast %cst_97 : f32 to vector<16x32xf32>
    %360 = arith.addf %359, %358 : vector<16x32xf32>
    %361 = arith.divf %359, %360 : vector<16x32xf32>
    %362 = vector.extract_strided_slice %355 {offsets = [0, 32], sizes = [16, 32], strides = [1, 1]} : vector<16x128xf32> to vector<16x32xf32>
    %363 = arith.negf %362 : vector<16x32xf32>
    %364 = math.exp %363 : vector<16x32xf32>
    %cst_98 = arith.constant 1.000000e+00 : f32
    %365 = vector.broadcast %cst_98 : f32 to vector<16x32xf32>
    %366 = arith.addf %365, %364 : vector<16x32xf32>
    %367 = arith.divf %365, %366 : vector<16x32xf32>
    %368 = vector.extract_strided_slice %355 {offsets = [0, 64], sizes = [16, 32], strides = [1, 1]} : vector<16x128xf32> to vector<16x32xf32>
    %369 = math.tanh %368 : vector<16x32xf32>
    %370 = vector.extract_strided_slice %355 {offsets = [0, 96], sizes = [16, 32], strides = [1, 1]} : vector<16x128xf32> to vector<16x32xf32>
    %371 = arith.negf %370 : vector<16x32xf32>
    %372 = math.exp %371 : vector<16x32xf32>
    %cst_99 = arith.constant 1.000000e+00 : f32
    %373 = vector.broadcast %cst_99 : f32 to vector<16x32xf32>
    %374 = arith.addf %373, %372 : vector<16x32xf32>
    %375 = arith.divf %373, %374 : vector<16x32xf32>
    %376 = arith.mulf %367, %345 : vector<16x32xf32>
    %377 = arith.mulf %361, %369 : vector<16x32xf32>
    %378 = arith.addf %376, %377 : vector<16x32xf32>
    %379 = math.tanh %378 : vector<16x32xf32>
    %380 = arith.mulf %375, %379 : vector<16x32xf32>
    %381 = tpu.concatenate %380, %0 in 1 : vector<16x32xf32>, vector<16x96xf32> -> vector<16x128xf32>
    %c2_i32_100 = arith.constant 2 : i32
    %c16_i32_101 = arith.constant 16 : i32
    %382 = arith.muli %c2_i32_100, %c16_i32_101 : i32
    %383 = tpu.assume_multiple %382, 16 : i32
    %384 = arith.index_cast %383 : i32 to index
    %c0_102 = arith.constant 0 : index
    %385 = vector.load %arg8[%384, %c0_102] : memref<128x128xf32, #tpu.memory_space<vmem>>, vector<16x128xf32>
    %386 = arith.truncf %381 : vector<16x128xf32> to vector<16x128xbf16>
    %cst_103 = arith.constant dense<0.000000e+00> : vector<16x128xf32>
    %387 = tpu.matmul %386, %313, %cst_103 {dimension_numbers = #tpu.dot_dimension_numbers<[1], [0], [0], [1], [0, 0, 1, 1], [], []>} : vector<16x128xbf16>, vector<128x128xbf16>, vector<16x128xf32> -> vector<16x128xf32>
    %388 = arith.addf %385, %387 : vector<16x128xf32>
    %389 = vector.extract_strided_slice %388 {offsets = [0, 0], sizes = [16, 32], strides = [1, 1]} : vector<16x128xf32> to vector<16x32xf32>
    %390 = arith.negf %389 : vector<16x32xf32>
    %391 = math.exp %390 : vector<16x32xf32>
    %cst_104 = arith.constant 1.000000e+00 : f32
    %392 = vector.broadcast %cst_104 : f32 to vector<16x32xf32>
    %393 = arith.addf %392, %391 : vector<16x32xf32>
    %394 = arith.divf %392, %393 : vector<16x32xf32>
    %395 = vector.extract_strided_slice %388 {offsets = [0, 32], sizes = [16, 32], strides = [1, 1]} : vector<16x128xf32> to vector<16x32xf32>
    %396 = arith.negf %395 : vector<16x32xf32>
    %397 = math.exp %396 : vector<16x32xf32>
    %cst_105 = arith.constant 1.000000e+00 : f32
    %398 = vector.broadcast %cst_105 : f32 to vector<16x32xf32>
    %399 = arith.addf %398, %397 : vector<16x32xf32>
    %400 = arith.divf %398, %399 : vector<16x32xf32>
    %401 = vector.extract_strided_slice %388 {offsets = [0, 64], sizes = [16, 32], strides = [1, 1]} : vector<16x128xf32> to vector<16x32xf32>
    %402 = math.tanh %401 : vector<16x32xf32>
    %403 = vector.extract_strided_slice %388 {offsets = [0, 96], sizes = [16, 32], strides = [1, 1]} : vector<16x128xf32> to vector<16x32xf32>
    %404 = arith.negf %403 : vector<16x32xf32>
    %405 = math.exp %404 : vector<16x32xf32>
    %cst_106 = arith.constant 1.000000e+00 : f32
    %406 = vector.broadcast %cst_106 : f32 to vector<16x32xf32>
    %407 = arith.addf %406, %405 : vector<16x32xf32>
    %408 = arith.divf %406, %407 : vector<16x32xf32>
    %409 = arith.mulf %400, %378 : vector<16x32xf32>
    %410 = arith.mulf %394, %402 : vector<16x32xf32>
    %411 = arith.addf %409, %410 : vector<16x32xf32>
    %412 = math.tanh %411 : vector<16x32xf32>
    %413 = arith.mulf %408, %412 : vector<16x32xf32>
    %414 = tpu.concatenate %413, %0 in 1 : vector<16x32xf32>, vector<16x96xf32> -> vector<16x128xf32>
    %c3_i32_107 = arith.constant 3 : i32
    %c16_i32_108 = arith.constant 16 : i32
    %415 = arith.muli %c3_i32_107, %c16_i32_108 : i32
    %416 = tpu.assume_multiple %415, 16 : i32
    %417 = arith.index_cast %416 : i32 to index
    %c0_109 = arith.constant 0 : index
    %418 = vector.load %arg8[%417, %c0_109] : memref<128x128xf32, #tpu.memory_space<vmem>>, vector<16x128xf32>
    %419 = arith.truncf %414 : vector<16x128xf32> to vector<16x128xbf16>
    %cst_110 = arith.constant dense<0.000000e+00> : vector<16x128xf32>
    %420 = tpu.matmul %419, %313, %cst_110 {dimension_numbers = #tpu.dot_dimension_numbers<[1], [0], [0], [1], [0, 0, 1, 1], [], []>} : vector<16x128xbf16>, vector<128x128xbf16>, vector<16x128xf32> -> vector<16x128xf32>
    %421 = arith.addf %418, %420 : vector<16x128xf32>
    %422 = vector.extract_strided_slice %421 {offsets = [0, 0], sizes = [16, 32], strides = [1, 1]} : vector<16x128xf32> to vector<16x32xf32>
    %423 = arith.negf %422 : vector<16x32xf32>
    %424 = math.exp %423 : vector<16x32xf32>
    %cst_111 = arith.constant 1.000000e+00 : f32
    %425 = vector.broadcast %cst_111 : f32 to vector<16x32xf32>
    %426 = arith.addf %425, %424 : vector<16x32xf32>
    %427 = arith.divf %425, %426 : vector<16x32xf32>
    %428 = vector.extract_strided_slice %421 {offsets = [0, 32], sizes = [16, 32], strides = [1, 1]} : vector<16x128xf32> to vector<16x32xf32>
    %429 = arith.negf %428 : vector<16x32xf32>
    %430 = math.exp %429 : vector<16x32xf32>
    %cst_112 = arith.constant 1.000000e+00 : f32
    %431 = vector.broadcast %cst_112 : f32 to vector<16x32xf32>
    %432 = arith.addf %431, %430 : vector<16x32xf32>
    %433 = arith.divf %431, %432 : vector<16x32xf32>
    %434 = vector.extract_strided_slice %421 {offsets = [0, 64], sizes = [16, 32], strides = [1, 1]} : vector<16x128xf32> to vector<16x32xf32>
    %435 = math.tanh %434 : vector<16x32xf32>
    %436 = vector.extract_strided_slice %421 {offsets = [0, 96], sizes = [16, 32], strides = [1, 1]} : vector<16x128xf32> to vector<16x32xf32>
    %437 = arith.negf %436 : vector<16x32xf32>
    %438 = math.exp %437 : vector<16x32xf32>
    %cst_113 = arith.constant 1.000000e+00 : f32
    %439 = vector.broadcast %cst_113 : f32 to vector<16x32xf32>
    %440 = arith.addf %439, %438 : vector<16x32xf32>
    %441 = arith.divf %439, %440 : vector<16x32xf32>
    %442 = arith.mulf %433, %411 : vector<16x32xf32>
    %443 = arith.mulf %427, %435 : vector<16x32xf32>
    %444 = arith.addf %442, %443 : vector<16x32xf32>
    %445 = math.tanh %444 : vector<16x32xf32>
    %446 = arith.mulf %441, %445 : vector<16x32xf32>
    %447 = tpu.concatenate %446, %0 in 1 : vector<16x32xf32>, vector<16x96xf32> -> vector<16x128xf32>
    %c4_i32_114 = arith.constant 4 : i32
    %c16_i32_115 = arith.constant 16 : i32
    %448 = arith.muli %c4_i32_114, %c16_i32_115 : i32
    %449 = tpu.assume_multiple %448, 16 : i32
    %450 = arith.index_cast %449 : i32 to index
    %c0_116 = arith.constant 0 : index
    %451 = vector.load %arg8[%450, %c0_116] : memref<128x128xf32, #tpu.memory_space<vmem>>, vector<16x128xf32>
    %452 = arith.truncf %447 : vector<16x128xf32> to vector<16x128xbf16>
    %cst_117 = arith.constant dense<0.000000e+00> : vector<16x128xf32>
    %453 = tpu.matmul %452, %313, %cst_117 {dimension_numbers = #tpu.dot_dimension_numbers<[1], [0], [0], [1], [0, 0, 1, 1], [], []>} : vector<16x128xbf16>, vector<128x128xbf16>, vector<16x128xf32> -> vector<16x128xf32>
    %454 = arith.addf %451, %453 : vector<16x128xf32>
    %455 = vector.extract_strided_slice %454 {offsets = [0, 0], sizes = [16, 32], strides = [1, 1]} : vector<16x128xf32> to vector<16x32xf32>
    %456 = arith.negf %455 : vector<16x32xf32>
    %457 = math.exp %456 : vector<16x32xf32>
    %cst_118 = arith.constant 1.000000e+00 : f32
    %458 = vector.broadcast %cst_118 : f32 to vector<16x32xf32>
    %459 = arith.addf %458, %457 : vector<16x32xf32>
    %460 = arith.divf %458, %459 : vector<16x32xf32>
    %461 = vector.extract_strided_slice %454 {offsets = [0, 32], sizes = [16, 32], strides = [1, 1]} : vector<16x128xf32> to vector<16x32xf32>
    %462 = arith.negf %461 : vector<16x32xf32>
    %463 = math.exp %462 : vector<16x32xf32>
    %cst_119 = arith.constant 1.000000e+00 : f32
    %464 = vector.broadcast %cst_119 : f32 to vector<16x32xf32>
    %465 = arith.addf %464, %463 : vector<16x32xf32>
    %466 = arith.divf %464, %465 : vector<16x32xf32>
    %467 = vector.extract_strided_slice %454 {offsets = [0, 64], sizes = [16, 32], strides = [1, 1]} : vector<16x128xf32> to vector<16x32xf32>
    %468 = math.tanh %467 : vector<16x32xf32>
    %469 = vector.extract_strided_slice %454 {offsets = [0, 96], sizes = [16, 32], strides = [1, 1]} : vector<16x128xf32> to vector<16x32xf32>
    %470 = arith.negf %469 : vector<16x32xf32>
    %471 = math.exp %470 : vector<16x32xf32>
    %cst_120 = arith.constant 1.000000e+00 : f32
    %472 = vector.broadcast %cst_120 : f32 to vector<16x32xf32>
    %473 = arith.addf %472, %471 : vector<16x32xf32>
    %474 = arith.divf %472, %473 : vector<16x32xf32>
    %475 = arith.mulf %466, %444 : vector<16x32xf32>
    %476 = arith.mulf %460, %468 : vector<16x32xf32>
    %477 = arith.addf %475, %476 : vector<16x32xf32>
    %478 = math.tanh %477 : vector<16x32xf32>
    %479 = arith.mulf %474, %478 : vector<16x32xf32>
    %480 = tpu.concatenate %479, %0 in 1 : vector<16x32xf32>, vector<16x96xf32> -> vector<16x128xf32>
    %c5_i32_121 = arith.constant 5 : i32
    %c16_i32_122 = arith.constant 16 : i32
    %481 = arith.muli %c5_i32_121, %c16_i32_122 : i32
    %482 = tpu.assume_multiple %481, 16 : i32
    %483 = arith.index_cast %482 : i32 to index
    %c0_123 = arith.constant 0 : index
    %484 = vector.load %arg8[%483, %c0_123] : memref<128x128xf32, #tpu.memory_space<vmem>>, vector<16x128xf32>
    %485 = arith.truncf %480 : vector<16x128xf32> to vector<16x128xbf16>
    %cst_124 = arith.constant dense<0.000000e+00> : vector<16x128xf32>
    %486 = tpu.matmul %485, %313, %cst_124 {dimension_numbers = #tpu.dot_dimension_numbers<[1], [0], [0], [1], [0, 0, 1, 1], [], []>} : vector<16x128xbf16>, vector<128x128xbf16>, vector<16x128xf32> -> vector<16x128xf32>
    %487 = arith.addf %484, %486 : vector<16x128xf32>
    %488 = vector.extract_strided_slice %487 {offsets = [0, 0], sizes = [16, 32], strides = [1, 1]} : vector<16x128xf32> to vector<16x32xf32>
    %489 = arith.negf %488 : vector<16x32xf32>
    %490 = math.exp %489 : vector<16x32xf32>
    %cst_125 = arith.constant 1.000000e+00 : f32
    %491 = vector.broadcast %cst_125 : f32 to vector<16x32xf32>
    %492 = arith.addf %491, %490 : vector<16x32xf32>
    %493 = arith.divf %491, %492 : vector<16x32xf32>
    %494 = vector.extract_strided_slice %487 {offsets = [0, 32], sizes = [16, 32], strides = [1, 1]} : vector<16x128xf32> to vector<16x32xf32>
    %495 = arith.negf %494 : vector<16x32xf32>
    %496 = math.exp %495 : vector<16x32xf32>
    %cst_126 = arith.constant 1.000000e+00 : f32
    %497 = vector.broadcast %cst_126 : f32 to vector<16x32xf32>
    %498 = arith.addf %497, %496 : vector<16x32xf32>
    %499 = arith.divf %497, %498 : vector<16x32xf32>
    %500 = vector.extract_strided_slice %487 {offsets = [0, 64], sizes = [16, 32], strides = [1, 1]} : vector<16x128xf32> to vector<16x32xf32>
    %501 = math.tanh %500 : vector<16x32xf32>
    %502 = vector.extract_strided_slice %487 {offsets = [0, 96], sizes = [16, 32], strides = [1, 1]} : vector<16x128xf32> to vector<16x32xf32>
    %503 = arith.negf %502 : vector<16x32xf32>
    %504 = math.exp %503 : vector<16x32xf32>
    %cst_127 = arith.constant 1.000000e+00 : f32
    %505 = vector.broadcast %cst_127 : f32 to vector<16x32xf32>
    %506 = arith.addf %505, %504 : vector<16x32xf32>
    %507 = arith.divf %505, %506 : vector<16x32xf32>
    %508 = arith.mulf %499, %477 : vector<16x32xf32>
    %509 = arith.mulf %493, %501 : vector<16x32xf32>
    %510 = arith.addf %508, %509 : vector<16x32xf32>
    %511 = math.tanh %510 : vector<16x32xf32>
    %512 = arith.mulf %507, %511 : vector<16x32xf32>
    %513 = tpu.concatenate %512, %0 in 1 : vector<16x32xf32>, vector<16x96xf32> -> vector<16x128xf32>
    %c6_i32_128 = arith.constant 6 : i32
    %c16_i32_129 = arith.constant 16 : i32
    %514 = arith.muli %c6_i32_128, %c16_i32_129 : i32
    %515 = tpu.assume_multiple %514, 16 : i32
    %516 = arith.index_cast %515 : i32 to index
    %c0_130 = arith.constant 0 : index
    %517 = vector.load %arg8[%516, %c0_130] : memref<128x128xf32, #tpu.memory_space<vmem>>, vector<16x128xf32>
    %518 = arith.truncf %513 : vector<16x128xf32> to vector<16x128xbf16>
    %cst_131 = arith.constant dense<0.000000e+00> : vector<16x128xf32>
    %519 = tpu.matmul %518, %313, %cst_131 {dimension_numbers = #tpu.dot_dimension_numbers<[1], [0], [0], [1], [0, 0, 1, 1], [], []>} : vector<16x128xbf16>, vector<128x128xbf16>, vector<16x128xf32> -> vector<16x128xf32>
    %520 = arith.addf %517, %519 : vector<16x128xf32>
    %521 = vector.extract_strided_slice %520 {offsets = [0, 0], sizes = [16, 32], strides = [1, 1]} : vector<16x128xf32> to vector<16x32xf32>
    %522 = arith.negf %521 : vector<16x32xf32>
    %523 = math.exp %522 : vector<16x32xf32>
    %cst_132 = arith.constant 1.000000e+00 : f32
    %524 = vector.broadcast %cst_132 : f32 to vector<16x32xf32>
    %525 = arith.addf %524, %523 : vector<16x32xf32>
    %526 = arith.divf %524, %525 : vector<16x32xf32>
    %527 = vector.extract_strided_slice %520 {offsets = [0, 32], sizes = [16, 32], strides = [1, 1]} : vector<16x128xf32> to vector<16x32xf32>
    %528 = arith.negf %527 : vector<16x32xf32>
    %529 = math.exp %528 : vector<16x32xf32>
    %cst_133 = arith.constant 1.000000e+00 : f32
    %530 = vector.broadcast %cst_133 : f32 to vector<16x32xf32>
    %531 = arith.addf %530, %529 : vector<16x32xf32>
    %532 = arith.divf %530, %531 : vector<16x32xf32>
    %533 = vector.extract_strided_slice %520 {offsets = [0, 64], sizes = [16, 32], strides = [1, 1]} : vector<16x128xf32> to vector<16x32xf32>
    %534 = math.tanh %533 : vector<16x32xf32>
    %535 = vector.extract_strided_slice %520 {offsets = [0, 96], sizes = [16, 32], strides = [1, 1]} : vector<16x128xf32> to vector<16x32xf32>
    %536 = arith.negf %535 : vector<16x32xf32>
    %537 = math.exp %536 : vector<16x32xf32>
    %cst_134 = arith.constant 1.000000e+00 : f32
    %538 = vector.broadcast %cst_134 : f32 to vector<16x32xf32>
    %539 = arith.addf %538, %537 : vector<16x32xf32>
    %540 = arith.divf %538, %539 : vector<16x32xf32>
    %541 = arith.mulf %532, %510 : vector<16x32xf32>
    %542 = arith.mulf %526, %534 : vector<16x32xf32>
    %543 = arith.addf %541, %542 : vector<16x32xf32>
    %544 = math.tanh %543 : vector<16x32xf32>
    %545 = arith.mulf %540, %544 : vector<16x32xf32>
    %546 = tpu.concatenate %545, %0 in 1 : vector<16x32xf32>, vector<16x96xf32> -> vector<16x128xf32>
    %c7_i32_135 = arith.constant 7 : i32
    %c16_i32_136 = arith.constant 16 : i32
    %547 = arith.muli %c7_i32_135, %c16_i32_136 : i32
    %548 = tpu.assume_multiple %547, 16 : i32
    %549 = arith.index_cast %548 : i32 to index
    %c0_137 = arith.constant 0 : index
    %550 = vector.load %arg8[%549, %c0_137] : memref<128x128xf32, #tpu.memory_space<vmem>>, vector<16x128xf32>
    %551 = arith.truncf %546 : vector<16x128xf32> to vector<16x128xbf16>
    %cst_138 = arith.constant dense<0.000000e+00> : vector<16x128xf32>
    %552 = tpu.matmul %551, %313, %cst_138 {dimension_numbers = #tpu.dot_dimension_numbers<[1], [0], [0], [1], [0, 0, 1, 1], [], []>} : vector<16x128xbf16>, vector<128x128xbf16>, vector<16x128xf32> -> vector<16x128xf32>
    %553 = arith.addf %550, %552 : vector<16x128xf32>
    %554 = vector.extract_strided_slice %553 {offsets = [0, 0], sizes = [16, 32], strides = [1, 1]} : vector<16x128xf32> to vector<16x32xf32>
    %555 = arith.negf %554 : vector<16x32xf32>
    %556 = math.exp %555 : vector<16x32xf32>
    %cst_139 = arith.constant 1.000000e+00 : f32
    %557 = vector.broadcast %cst_139 : f32 to vector<16x32xf32>
    %558 = arith.addf %557, %556 : vector<16x32xf32>
    %559 = arith.divf %557, %558 : vector<16x32xf32>
    %560 = vector.extract_strided_slice %553 {offsets = [0, 32], sizes = [16, 32], strides = [1, 1]} : vector<16x128xf32> to vector<16x32xf32>
    %561 = arith.negf %560 : vector<16x32xf32>
    %562 = math.exp %561 : vector<16x32xf32>
    %cst_140 = arith.constant 1.000000e+00 : f32
    %563 = vector.broadcast %cst_140 : f32 to vector<16x32xf32>
    %564 = arith.addf %563, %562 : vector<16x32xf32>
    %565 = arith.divf %563, %564 : vector<16x32xf32>
    %566 = vector.extract_strided_slice %553 {offsets = [0, 64], sizes = [16, 32], strides = [1, 1]} : vector<16x128xf32> to vector<16x32xf32>
    %567 = math.tanh %566 : vector<16x32xf32>
    %568 = vector.extract_strided_slice %553 {offsets = [0, 96], sizes = [16, 32], strides = [1, 1]} : vector<16x128xf32> to vector<16x32xf32>
    %569 = arith.negf %568 : vector<16x32xf32>
    %570 = math.exp %569 : vector<16x32xf32>
    %cst_141 = arith.constant 1.000000e+00 : f32
    %571 = vector.broadcast %cst_141 : f32 to vector<16x32xf32>
    %572 = arith.addf %571, %570 : vector<16x32xf32>
    %573 = arith.divf %571, %572 : vector<16x32xf32>
    %574 = arith.mulf %565, %543 : vector<16x32xf32>
    %575 = arith.mulf %559, %567 : vector<16x32xf32>
    %576 = arith.addf %574, %575 : vector<16x32xf32>
    %577 = math.tanh %576 : vector<16x32xf32>
    %578 = arith.mulf %573, %577 : vector<16x32xf32>
    %579 = tpu.concatenate %578, %0 in 1 : vector<16x32xf32>, vector<16x96xf32> -> vector<16x128xf32>
    %c8_i32_142 = arith.constant 8 : i32
    %580 = arith.truncf %579 : vector<16x128xf32> to vector<16x128xbf16>
    %c0_143 = arith.constant 0 : index
    %c0_144 = arith.constant 0 : index
    %581 = vector.load %arg5[%c0_143, %c0_144] : memref<128x128xbf16, #tpu.memory_space<vmem>>, vector<128x128xbf16>
    %cst_145 = arith.constant dense<0.000000e+00> : vector<16x128xf32>
    %582 = tpu.matmul %580, %581, %cst_145 {dimension_numbers = #tpu.dot_dimension_numbers<[1], [0], [0], [1], [0, 0, 1, 1], [], []>} : vector<16x128xbf16>, vector<128x128xbf16>, vector<16x128xf32> -> vector<16x128xf32>
    %c0_146 = arith.constant 0 : index
    %c0_147 = arith.constant 0 : index
    %583 = vector.load %arg6[%c0_146, %c0_147] : memref<1x128xf32, #tpu.memory_space<vmem>>, vector<1x128xf32>
    %584 = vector.broadcast %583 : vector<1x128xf32> to vector<16x128xf32>
    %585 = arith.addf %582, %584 : vector<16x128xf32>
    %586 = tpu.iota {dimensions = array<i32: 1>} : vector<16x128xi32>
    %c10_i32 = arith.constant 10 : i32
    %587 = vector.broadcast %c10_i32 : i32 to vector<16x128xi32>
    %588 = arith.cmpi slt, %586, %587 : vector<16x128xi32>
    %cst_148 = arith.constant 0xFF800000 : f32
    %589 = vector.broadcast %cst_148 : f32 to vector<16x128xf32>
    %590 = arith.select %588, %585, %589 : vector<16x128xi1>, vector<16x128xf32>
    %cst_149 = arith.constant dense<0xFF800000> : vector<16xf32>
    %591 = vector.multi_reduction <maximumf>, %590, %cst_149 [1] : vector<16x128xf32> to vector<16xf32>
    %592 = vector.shape_cast %591 : vector<16xf32> to vector<16x1xf32>
    %593 = vector.broadcast %592 : vector<16x1xf32> to vector<16x128xf32>
    %594 = arith.subf %590, %593 : vector<16x128xf32>
    %595 = math.exp %594 : vector<16x128xf32>
    %cst_150 = arith.constant dense<0.000000e+00> : vector<16xf32>
    %596 = vector.multi_reduction <add>, %595, %cst_150 [1] : vector<16x128xf32> to vector<16xf32>
    %597 = vector.shape_cast %596 : vector<16xf32> to vector<16x1xf32>
    %598 = math.log %597 : vector<16x1xf32>
    %599 = vector.broadcast %598 : vector<16x1xf32> to vector<16x128xf32>
    %600 = arith.subf %594, %599 : vector<16x128xf32>
    %c0_151 = arith.constant 0 : index
    %c0_152 = arith.constant 0 : index
    %601 = vector.load %arg7[%c0_151, %c0_152] : memref<16x128xf32, #tpu.memory_space<vmem>>, vector<16x128xf32>
    tpu.vector_store %arg7[%c0_151, %c0_152], %600 {strides = array<i32>} : memref<16x128xf32, #tpu.memory_space<vmem>>, vector<16x128xf32>,
    return
  }
  func.func @transform_0(%arg0: i32) -> (i32, i32, i32) {
    %c0_i32 = arith.constant 0 : i32
    %c0_i32_0 = arith.constant 0 : i32
    %c0_i32_1 = arith.constant 0 : i32
    return %arg0, %c0_i32, %c0_i32_0 : i32, i32, i32
  }
  func.func @transform_1(%arg0: i32) -> (i32, i32, i32) {
    %c0_i32 = arith.constant 0 : i32
    %c0_i32_0 = arith.constant 0 : i32
    %c0_i32_1 = arith.constant 0 : i32
    %c0_i32_2 = arith.constant 0 : i32
    return %c0_i32, %c0_i32_0, %c0_i32_1 : i32, i32, i32
  }
  func.func @transform_2(%arg0: i32) -> (i32, i32, i32) {
    %c0_i32 = arith.constant 0 : i32
    %c0_i32_0 = arith.constant 0 : i32
    %c0_i32_1 = arith.constant 0 : i32
    %c0_i32_2 = arith.constant 0 : i32
    return %c0_i32, %c0_i32_0, %c0_i32_1 : i32, i32, i32
  }
  func.func @transform_3(%arg0: i32) -> (i32, i32, i32) {
    %c0_i32 = arith.constant 0 : i32
    %c0_i32_0 = arith.constant 0 : i32
    %c0_i32_1 = arith.constant 0 : i32
    %c0_i32_2 = arith.constant 0 : i32
    return %c0_i32, %c0_i32_0, %c0_i32_1 : i32, i32, i32
  }
  func.func @transform_4(%arg0: i32) -> (i32, i32) {
    %c0_i32 = arith.constant 0 : i32
    %c0_i32_0 = arith.constant 0 : i32
    %c0_i32_1 = arith.constant 0 : i32
    return %c0_i32, %c0_i32_0 : i32, i32
  }
  func.func @transform_5(%arg0: i32) -> (i32, i32) {
    %c0_i32 = arith.constant 0 : i32
    %c0_i32_0 = arith.constant 0 : i32
    %c0_i32_1 = arith.constant 0 : i32
    return %c0_i32, %c0_i32_0 : i32, i32
  }
  func.func @transform_6(%arg0: i32) -> (i32, i32) {
    %c0_i32 = arith.constant 0 : i32
    %c0_i32_0 = arith.constant 0 : i32
    return %arg0, %c0_i32 : i32, i32
  }
}

</mosaic_0001>

<llo_original>
// kernel: tpu_custom_call.1
$region0: #{tpu_custom_call.1}
  #allocation0 [shape = 'u32[]', space=smem, size = 0x4, offset = 0x4, fixed_abs, tag = 'smem constant byte address 0x4 - core index']
  #allocation1 [shape = 'u32[144,128]{1,0:T(1,128)}', space=vmem, size = 0x12000, scoped, tag = 'internal scratch']
  #allocation2 [shape = 'f32[128,128]{1,0:T(8,128)}', space=vmem, size = 0x10000, scoped, tag = 'scratch operand']
  #allocation3 [shape = 'bf16[128,128]{1,0:T(16,128)(2,1)}', space=vmem, size = 0x8000, scoped, tag = 'scratch operand']
  %s0 = inlined_call_operand.hbm [shape: bf16[1,128,128], index: 0, kind: input, shape index: {}]
  %s1 = inlined_call_operand.hbm [shape: bf16[2,128,128], index: 1, kind: input, shape index: {}]
  %s2 = inlined_call_operand.hbm [shape: bf16[2,128,128], index: 2, kind: input, shape index: {}]
  %s3 = inlined_call_operand.vmem [shape: f32[2,1,128], index: 3, kind: input, shape index: {}]
  %s4 = inlined_call_operand.hbm [shape: bf16[128,128], index: 4, kind: input, shape index: {}]
  %s5 = inlined_call_operand.vmem [shape: f32[1,128], index: 5, kind: input, shape index: {}]
  %s6 = inlined_call_operand.hbm [shape: f32[16,128], index: 6, kind: output, shape index: {}]
  %s7 = sld [smem:[#allocation0]]
  $region50: #{tpu_custom_call.1} parent=0
    _
  %s9 = ssub.s32 1, %s7
  %s10 = scalar_select 0, %s9, %s7
  $region1: #{tpu_custom_call.1} parent=0
    #allocation4 [shape = 'u8[32768]{0}', space=vmem, size = 0x8000, scoped, tag = 'input window, operand 0, single buffered']
    #allocation5 [shape = 's32[1]{0}', space=sflag, size = 0x4, scoped, tag = 'scoped memory for tpu_custom_call.1']
    #allocation6 [shape = 's32[1]{0}', space=sflag, size = 0x4, scoped, tag = 'scoped memory for tpu_custom_call.1']
    #allocation7 [shape = 'u8[65536]{0}', space=vmem, size = 0x10000, scoped, tag = 'input window, operand 1, single buffered']
    #allocation8 [shape = 's32[1]{0}', space=sflag, size = 0x4, scoped, tag = 'scoped memory for tpu_custom_call.1']
    #allocation9 [shape = 'u8[65536]{0}', space=vmem, size = 0x10000, scoped, tag = 'input window, operand 2, single buffered']
    #allocation10 [shape = 'u8[32768]{0}', space=vmem, size = 0x8000, scoped, tag = 'input window, operand 4, single buffered']
    #allocation11 [shape = 's32[1]{0}', space=sflag, size = 0x4, scoped, tag = 'scoped memory for tpu_custom_call.1']
    #allocation12 [shape = 'u8[8192]{0}', space=vmem, size = 0x2000, scoped, tag = 'output window, operand 0, single buffered']
    %11 = vsyncpa [#allocation5], 0
    %12 = vsyncpa [#allocation8], 0
    %13 = vsyncpa [#allocation11], 0
    %14 = vsyncpa [#allocation6], 0
    // Predicated region
    $region2: #{tpu_custom_call.1} parent=1 // pred_check
      _
    $region3: #{tpu_custom_call.1} parent=1 // pred_check_branch
      %16 = sbr.rel (0) target = $region5
    $region4: #{tpu_custom_call.1} parent=1 // pred_region
      %s18 = ssub.s32 1024, 1024
      %19 = vsyncadd [#allocation5], %s18
      %s20 = sshll.u32 [#allocation4], 4
      %s21 = int_to_ptr.vmem [resolvable:$true] %s20
      %26 = dma.hbm_to_vmem [thread:$0]  %s0, 1024, %s21, [#allocation5], 64, 64, 4
    $region5: #{tpu_custom_call.1} parent=1 // pred_fallthru
      _
    // Predicated region
    $region6: #{tpu_custom_call.1} parent=1 // pred_check
      _
    $region7: #{tpu_custom_call.1} parent=1 // pred_check_branch
      %28 = sbr.rel (0) target = $region9
    $region8: #{tpu_custom_call.1} parent=1 // pred_region
      %s30 = ssub.s32 2048, 2048
      %31 = vsyncadd [#allocation8], %s30
      %s32 = sshll.u32 [#allocation7], 4
      %s33 = int_to_ptr.vmem [resolvable:$true] %s32
      %38 = dma.hbm_to_vmem [thread:$0]  %s1, 2048, %s33, [#allocation8], 64, 64, 4
    $region9: #{tpu_custom_call.1} parent=1 // pred_fallthru
      _
    // Predicated region
    $region10: #{tpu_custom_call.1} parent=1 // pred_check
      _
    $region11: #{tpu_custom_call.1} parent=1 // pred_check_branch
      %40 = sbr.rel (0) target = $region13
    $region12: #{tpu_custom_call.1} parent=1 // pred_region
      %s42 = ssub.s32 2048, 2048
      %43 = vsyncadd [#allocation8], %s42
      %s44 = sshll.u32 [#allocation9], 4
      %s45 = int_to_ptr.vmem [resolvable:$true] %s44
      %50 = dma.hbm_to_vmem [thread:$0]  %s2, 2048, %s45, [#allocation8], 64, 64, 4
    $region13: #{tpu_custom_call.1} parent=1 // pred_fallthru
      _
    // Predicated region
    $region14: #{tpu_custom_call.1} parent=1 // pred_check
      _
    $region15: #{tpu_custom_call.1} parent=1 // pred_check_branch
      %52 = sbr.rel (0) target = $region17
    $region16: #{tpu_custom_call.1} parent=1 // pred_region
      _
    $region17: #{tpu_custom_call.1} parent=1 // pred_fallthru
      _
    // Predicated region
    $region18: #{tpu_custom_call.1} parent=1 // pred_check
      _
    $region19: #{tpu_custom_call.1} parent=1 // pred_check_branch
      %54 = sbr.rel (0) target = $region21
    $region20: #{tpu_custom_call.1} parent=1 // pred_region
      %s56 = ssub.s32 1024, 1024
      %57 = vsyncadd [#allocation11], %s56
      %s58 = sshll.u32 [#allocation10], 4
      %s59 = int_to_ptr.vmem [resolvable:$true] %s58
      %64 = dma.hbm_to_vmem [thread:$0]  %s4, 1024, %s59, [#allocation11], 64, 64, 4
    $region21: #{tpu_custom_call.1} parent=1 // pred_fallthru
      _
    // Predicated region
    $region22: #{tpu_custom_call.1} parent=1 // pred_check
      _
    $region23: #{tpu_custom_call.1} parent=1 // pred_check_branch
      %66 = sbr.rel (0) target = $region25
    $region24: #{tpu_custom_call.1} parent=1 // pred_region
      _
    $region25: #{tpu_custom_call.1} parent=1 // pred_fallthru
      _
    // Predicated region
    $region26: #{tpu_custom_call.1} parent=1 // pred_check
      _
    $region27: #{tpu_custom_call.1} parent=1 // pred_check_branch
      %68 = sbr.rel (0) target = $region29
    $region28: #{tpu_custom_call.1} parent=1 // pred_region
      %69 = dma.done [#allocation5], 1024
    $region29: #{tpu_custom_call.1} parent=1 // pred_fallthru
      _
    // Predicated region
    $region30: #{tpu_custom_call.1} parent=1 // pred_check
      _
    $region31: #{tpu_custom_call.1} parent=1 // pred_check_branch
      %71 = sbr.rel (0) target = $region33
    $region32: #{tpu_custom_call.1} parent=1 // pred_region
      %72 = dma.done [#allocation8], 2048
    $region33: #{tpu_custom_call.1} parent=1 // pred_fallthru
      _
    // Predicated region
    $region34: #{tpu_custom_call.1} parent=1 // pred_check
      _
    $region35: #{tpu_custom_call.1} parent=1 // pred_check_branch
      %74 = sbr.rel (0) target = $region37
    $region36: #{tpu_custom_call.1} parent=1 // pred_region
      %75 = dma.done [#allocation8], 2048
    $region37: #{tpu_custom_call.1} parent=1 // pred_fallthru
      _
    // Predicated region
    $region38: #{tpu_custom_call.1} parent=1 // pred_check
      _
    $region39: #{tpu_custom_call.1} parent=1 // pred_check_branch
      %77 = sbr.rel (0) target = $region41
    $region40: #{tpu_custom_call.1} parent=1 // pred_region
      %78 = dma.done [#allocation11], 1024
    $region41: #{tpu_custom_call.1} parent=1 // pred_fallthru
      _
    %v80 = vld [vmem:[#allocation4] sm:$0xf]
    %v81 = vld [vmem:[#allocation4 + $0x4] sm:$0xf]
    %v82 = vld [vmem:[#allocation4 + $0x8] sm:$0xf]
    %v83 = vld [vmem:[#allocation4 + $0xc] sm:$0xf]
    %v84 = vld [vmem:[#allocation4 + $0x10] sm:$0xf]
    %v85 = vld [vmem:[#allocation4 + $0x14] sm:$0xf]
    %v86 = vld [vmem:[#allocation4 + $0x18] sm:$0xf]
    %v87 = vld [vmem:[#allocation4 + $0x1c] sm:$0xf]
    %v88 = vld [vmem:[#allocation4 + $0x20] sm:$0xf]
    %v89 = vld [vmem:[#allocation4 + $0x24] sm:$0xf]
    %v90 = vld [vmem:[#allocation4 + $0x28] sm:$0xf]
    %v91 = vld [vmem:[#allocation4 + $0x2c] sm:$0xf]
    %v92 = vld [vmem:[#allocation4 + $0x30] sm:$0xf]
    %v93 = vld [vmem:[#allocation4 + $0x34] sm:$0xf]
    %v94 = vld [vmem:[#allocation4 + $0x38] sm:$0xf]
    %v95 = vld [vmem:[#allocation4 + $0x3c] sm:$0xf]
    %v96 = vld [vmem:[#allocation7] sm:$0xf]
    %v97 = vld [vmem:[#allocation7 + $0x4] sm:$0xf]
    %v98 = vld [vmem:[#allocation7 + $0x8] sm:$0xf]
    %v99 = vld [vmem:[#allocation7 + $0xc] sm:$0xf]
    %v100 = vld [vmem:[#allocation7 + $0x10] sm:$0xf]
    %v101 = vld [vmem:[#allocation7 + $0x14] sm:$0xf]
    %v102 = vld [vmem:[#allocation7 + $0x18] sm:$0xf]
    %v103 = vld [vmem:[#allocation7 + $0x1c] sm:$0xf]
    %v104 = vld [vmem:[#allocation7 + $0x20] sm:$0xf]
    %v105 = vld [vmem:[#allocation7 + $0x24] sm:$0xf]
    %v106 = vld [vmem:[#allocation7 + $0x28] sm:$0xf]
    %v107 = vld [vmem:[#allocation7 + $0x2c] sm:$0xf]
    %v108 = vld [vmem:[#allocation7 + $0x30] sm:$0xf]
    %v109 = vld [vmem:[#allocation7 + $0x34] sm:$0xf]
    %v110 = vld [vmem:[#allocation7 + $0x38] sm:$0xf]
    %v111 = vld [vmem:[#allocation7 + $0x3c] sm:$0xf]
    %v112 = vld [vmem:[%s3] sm:$0x1]
    %v114 = vlaneseq
    %v115 = vshrl.u32 %v114, 7
    %v116 = vsub.s32 0, %v115
    %v117 = vrot.slane %v112, %v116
    %v135 = vunpack.c.l.b16 %v80
    %v136 = vunpack.c.l.b16 %v81
    %v137 = vunpack.c.l.b16 %v82
    %v138 = vunpack.c.l.b16 %v83
    %v139 = vunpack.c.l.b16 %v84
    %v140 = vunpack.c.l.b16 %v85
    %v141 = vunpack.c.l.b16 %v86
    %v142 = vunpack.c.l.b16 %v87
    %v143 = vunpack.c.l.b16 %v88
    %v144 = vunpack.c.l.b16 %v89
    %v145 = vunpack.c.l.b16 %v90
    %v146 = vunpack.c.l.b16 %v91
    %v147 = vunpack.c.l.b16 %v92
    %v148 = vunpack.c.l.b16 %v93
    %v149 = vunpack.c.l.b16 %v94
    %v150 = vunpack.c.l.b16 %v95
    %v151 = vpack.c.b16 %v136, %v135
    %v152 = vpack.c.b16 %v138, %v137
    %v153 = vpack.c.b16 %v140, %v139
    %v154 = vpack.c.b16 %v142, %v141
    %v155 = vpack.c.b16 %v144, %v143
    %v156 = vpack.c.b16 %v146, %v145
    %v157 = vpack.c.b16 %v148, %v147
    %v158 = vpack.c.b16 %v150, %v149
    %v183 = vunpack.c.l.b16 %v96
    %v184 = vunpack.c.l.b16 %v97
    %v185 = vunpack.c.l.b16 %v98
    %v186 = vunpack.c.l.b16 %v99
    %v187 = vunpack.c.l.b16 %v100
    %v188 = vunpack.c.l.b16 %v101
    %v189 = vunpack.c.l.b16 %v102
    %v190 = vunpack.c.l.b16 %v103
    %v191 = vunpack.c.l.b16 %v104
    %v192 = vunpack.c.l.b16 %v105
    %v193 = vunpack.c.l.b16 %v106
    %v194 = vunpack.c.l.b16 %v107
    %v195 = vunpack.c.l.b16 %v108
    %v196 = vunpack.c.l.b16 %v109
    %v197 = vunpack.c.l.b16 %v110
    %v198 = vunpack.c.l.b16 %v111
    %v199 = vpack.c.b16 %v184, %v183
    %v200 = vpack.c.b16 %v186, %v185
    %v201 = vpack.c.b16 %v188, %v187
    %v202 = vpack.c.b16 %v190, %v189
    %v203 = vpack.c.b16 %v192, %v191
    %v204 = vpack.c.b16 %v194, %v193
    %v205 = vpack.c.b16 %v196, %v195
    %v206 = vpack.c.b16 %v198, %v197
    %215 = vmatprep.subr.bf16.mxu0 0
    %216 = vmatpush1.bf16.msra.mxu0 %v199
    %217 = vmatprep.subr.bf16.mxu0 0
    %218 = vmatpush1.bf16.msra.mxu0 %v200
    %219 = vmatprep.subr.bf16.mxu0 0
    %220 = vmatpush1.bf16.msra.mxu0 %v201
    %221 = vmatprep.subr.bf16.mxu0 0
    %222 = vmatpush1.bf16.msra.mxu0 %v202
    %223 = vmatprep.subr.bf16.mxu0 0
    %224 = vmatpush1.bf16.msra.mxu0 %v203
    %225 = vmatprep.subr.bf16.mxu0 0
    %226 = vmatpush1.bf16.msra.mxu0 %v204
    %227 = vmatprep.subr.bf16.mxu0 0
    %228 = vmatpush1.bf16.msra.mxu0 %v205
    %229 = vmatprep.subr.bf16.mxu0 0
    %230 = vmatpush1.bf16.msra.mxu0 %v206
    %231 = vmatprep.subr.bf16.mxu0 0
    %232 = vmatpush1.bf16.msra.mxu0 0
    %233 = vmatprep.subr.bf16.mxu0 0
    %234 = vmatpush1.bf16.msra.mxu0 0
    %235 = vmatprep.subr.bf16.mxu0 0
    %236 = vmatpush1.bf16.msra.mxu0 0
    %237 = vmatprep.subr.bf16.mxu0 0
    %238 = vmatpush1.bf16.msra.mxu0 0
    %239 = vmatprep.subr.bf16.mxu0 0
    %240 = vmatpush1.bf16.msra.mxu0 0
    %241 = vmatprep.subr.bf16.mxu0 0
    %242 = vmatpush1.bf16.msra.mxu0 0
    %243 = vmatprep.subr.bf16.mxu0 0
    %244 = vmatpush1.bf16.msra.mxu0 0
    %245 = vmatprep.subr.bf16.mxu0 0
    %246 = vmatpush1.bf16.msra.mxu0 0
    %247 = vmatprep.mubr.bf16.mxu0 0
    %248 = vmatmul.mubr.bf16.gmra.mrb[0].mxu0 %v151
    %v249 = vpop.f32.mrb[0].mxu0
    %v250 = vadd.f32 %v117, %v249
    %v251 = vpop.f32.mrb[0].mxu0
    %v252 = vpop.f32.mrb[0].mxu0
    %v253 = vadd.f32 %v117, %v252
    %v254 = vpop.f32.mrb[0].mxu0
    %255 = vmatprep.mubr.bf16.mxu0 0
    %256 = vmatmul.mubr.bf16.gmra.mrb[0].mxu0 %v152
    %v257 = vpop.f32.mrb[0].mxu0
    %v258 = vadd.f32 %v117, %v257
    %v259 = vpop.f32.mrb[0].mxu0
    %v260 = vpop.f32.mrb[0].mxu0
    %v261 = vadd.f32 %v117, %v260
    %v262 = vpop.f32.mrb[0].mxu0
    %263 = vmatprep.mubr.bf16.mxu0 0
    %264 = vmatmul.mubr.bf16.gmra.mrb[0].mxu0 %v153
    %v265 = vpop.f32.mrb[0].mxu0
    %v266 = vadd.f32 %v117, %v265
    %v267 = vpop.f32.mrb[0].mxu0
    %v268 = vpop.f32.mrb[0].mxu0
    %v269 = vadd.f32 %v117, %v268
    %v270 = vpop.f32.mrb[0].mxu0
    %271 = vmatprep.mubr.bf16.mxu0 0
    %272 = vmatmul.mubr.bf16.gmra.mrb[0].mxu0 %v154
    %v273 = vpop.f32.mrb[0].mxu0
    %v274 = vadd.f32 %v117, %v273
    %v275 = vpop.f32.mrb[0].mxu0
    %v276 = vpop.f32.mrb[0].mxu0
    %v277 = vadd.f32 %v117, %v276
    %v278 = vpop.f32.mrb[0].mxu0
    %279 = vmatprep.mubr.bf16.mxu0 0
    %280 = vmatmul.mubr.bf16.gmra.mrb[0].mxu0 %v155
    %v281 = vpop.f32.mrb[0].mxu0
    %v282 = vadd.f32 %v117, %v281
    %v283 = vpop.f32.mrb[0].mxu0
    %v284 = vpop.f32.mrb[0].mxu0
    %v285 = vadd.f32 %v117, %v284
    %v286 = vpop.f32.mrb[0].mxu0
    %287 = vmatprep.mubr.bf16.mxu0 0
    %288 = vmatmul.mubr.bf16.gmra.mrb[0].mxu0 %v156
    %v289 = vpop.f32.mrb[0].mxu0
    %v290 = vadd.f32 %v117, %v289
    %v291 = vpop.f32.mrb[0].mxu0
    %v292 = vpop.f32.mrb[0].mxu0
    %v293 = vadd.f32 %v117, %v292
    %v294 = vpop.f32.mrb[0].mxu0
    %295 = vmatprep.mubr.bf16.mxu0 0
    %296 = vmatmul.mubr.bf16.gmra.mrb[0].mxu0 %v157
    %v297 = vpop.f32.mrb[0].mxu0
    %v298 = vadd.f32 %v117, %v297
    %v299 = vpop.f32.mrb[0].mxu0
    %v300 = vpop.f32.mrb[0].mxu0
    %v301 = vadd.f32 %v117, %v300
    %v302 = vpop.f32.mrb[0].mxu0
    %303 = vmatprep.mubr.bf16.mxu0 0
    %304 = vmatmul.mubr.bf16.gmra.mrb[0].mxu0 %v158
    %v305 = vpop.f32.mrb[0].mxu0
    %v306 = vadd.f32 %v117, %v305
    %v307 = vpop.f32.mrb[0].mxu0
    %v308 = vpop.f32.mrb[0].mxu0
    %v309 = vadd.f32 %v117, %v308
    %v310 = vpop.f32.mrb[0].mxu0
    %311 = vdwg.mxu0
    %312 = vst [vmem:[#allocation2] sm:$0xff] %v250
    %313 = vst [vmem:[#allocation2 + $0x8] sm:$0xff] %v253
    %314 = vst [vmem:[#allocation2 + $0x10] sm:$0xff] %v258
    %315 = vst [vmem:[#allocation2 + $0x18] sm:$0xff] %v261
    %316 = vst [vmem:[#allocation2 + $0x20] sm:$0xff] %v266
    %317 = vst [vmem:[#allocation2 + $0x28] sm:$0xff] %v269
    %318 = vst [vmem:[#allocation2 + $0x30] sm:$0xff] %v274
    %319 = vst [vmem:[#allocation2 + $0x38] sm:$0xff] %v277
    %320 = vst [vmem:[#allocation2 + $0x40] sm:$0xff] %v282
    %321 = vst [vmem:[#allocation2 + $0x48] sm:$0xff] %v285
    %322 = vst [vmem:[#allocation2 + $0x50] sm:$0xff] %v290
    %323 = vst [vmem:[#allocation2 + $0x58] sm:$0xff] %v293
    %324 = vst [vmem:[#allocation2 + $0x60] sm:$0xff] %v298
    %325 = vst [vmem:[#allocation2 + $0x68] sm:$0xff] %v301
    %326 = vst [vmem:[#allocation2 + $0x70] sm:$0xff] %v306
    %327 = vst [vmem:[#allocation2 + $0x78] sm:$0xff] %v309
    %v328 = vld [vmem:[#allocation9] sm:$0xf]
    %v329 = vld [vmem:[#allocation9 + $0x4] sm:$0xf]
    %v330 = vld [vmem:[#allocation9 + $0x8] sm:$0xf]
    %v331 = vld [vmem:[#allocation9 + $0xc] sm:$0xf]
    %v332 = vld [vmem:[#allocation9 + $0x10] sm:$0xf]
    %v333 = vld [vmem:[#allocation9 + $0x14] sm:$0xf]
    %v334 = vld [vmem:[#allocation9 + $0x18] sm:$0xf]
    %v335 = vld [vmem:[#allocation9 + $0x1c] sm:$0xf]
    %v336 = vld [vmem:[#allocation9 + $0x20] sm:$0xf]
    %v337 = vld [vmem:[#allocation9 + $0x24] sm:$0xf]
    %v338 = vld [vmem:[#allocation9 + $0x28] sm:$0xf]
    %v339 = vld [vmem:[#allocation9 + $0x2c] sm:$0xf]
    %v340 = vld [vmem:[#allocation9 + $0x30] sm:$0xf]
    %v341 = vld [vmem:[#allocation9 + $0x34] sm:$0xf]
    %v342 = vld [vmem:[#allocation9 + $0x38] sm:$0xf]
    %v343 = vld [vmem:[#allocation9 + $0x3c] sm:$0xf]
    %v344 = vld [vmem:[#allocation2] sm:$0xff]
    %v345 = vld [vmem:[#allocation2 + $0x8] sm:$0xff]
    %v362 = vunpack.c.l.b16 %v328
    %v363 = vunpack.c.l.b16 %v329
    %v364 = vunpack.c.l.b16 %v330
    %v365 = vunpack.c.l.b16 %v331
    %v366 = vunpack.c.l.b16 %v332
    %v367 = vunpack.c.l.b16 %v333
    %v368 = vunpack.c.l.b16 %v334
    %v369 = vunpack.c.l.b16 %v335
    %v370 = vunpack.c.l.b16 %v336
    %v371 = vunpack.c.l.b16 %v337
    %v372 = vunpack.c.l.b16 %v338
    %v373 = vunpack.c.l.b16 %v339
    %v374 = vunpack.c.l.b16 %v340
    %v375 = vunpack.c.l.b16 %v341
    %v376 = vunpack.c.l.b16 %v342
    %v377 = vunpack.c.l.b16 %v343
    %v378 = vpack.c.b16 %v363, %v362
    %v379 = vpack.c.b16 %v365, %v364
    %v380 = vpack.c.b16 %v367, %v366
    %v381 = vpack.c.b16 %v369, %v368
    %v382 = vpack.c.b16 %v371, %v370
    %v383 = vpack.c.b16 %v373, %v372
    %v384 = vpack.c.b16 %v375, %v374
    %v385 = vpack.c.b16 %v377, %v376
    %394 = vmatprep.subr.bf16.mxu0 0
    %395 = vmatpush1.bf16.msra.mxu0 %v378
    %396 = vmatprep.subr.bf16.mxu0 0
    %397 = vmatpush1.bf16.msra.mxu0 %v379
    %398 = vmatprep.subr.bf16.mxu0 0
    %399 = vmatpush1.bf16.msra.mxu0 %v380
    %400 = vmatprep.subr.bf16.mxu0 0
    %401 = vmatpush1.bf16.msra.mxu0 %v381
    %402 = vmatprep.subr.bf16.mxu0 0
    %403 = vmatpush1.bf16.msra.mxu0 %v382
    %404 = vmatprep.subr.bf16.mxu0 0
    %405 = vmatpush1.bf16.msra.mxu0 %v383
    %406 = vmatprep.subr.bf16.mxu0 0
    %407 = vmatpush1.bf16.msra.mxu0 %v384
    %408 = vmatprep.subr.bf16.mxu0 0
    %409 = vmatpush1.bf16.msra.mxu0 %v385
    %410 = vmatprep.subr.bf16.mxu0 0
    %411 = vmatpush1.bf16.msra.mxu0 0
    %412 = vmatprep.subr.bf16.mxu0 0
    %413 = vmatpush1.bf16.msra.mxu0 0
    %414 = vmatprep.subr.bf16.mxu0 0
    %415 = vmatpush1.bf16.msra.mxu0 0
    %416 = vmatprep.subr.bf16.mxu0 0
    %417 = vmatpush1.bf16.msra.mxu0 0
    %418 = vmatprep.subr.bf16.mxu0 0
    %419 = vmatpush1.bf16.msra.mxu0 0
    %420 = vmatprep.subr.bf16.mxu0 0
    %421 = vmatpush1.bf16.msra.mxu0 0
    %422 = vmatprep.subr.bf16.mxu0 0
    %423 = vmatpush1.bf16.msra.mxu0 0
    %424 = vmatprep.subr.bf16.mxu0 0
    %425 = vmatpush1.bf16.msra.mxu0 0
    %426 = vmatprep.mubr.bf16.mxu0 0
    %427 = vmatmul.mubr.bf16.gmra.mrb[0].mxu0 0
    %v428 = vpop.f32.mrb[0].mxu0
    %v429 = vadd.f32 0.0, %v428
    %v430 = vpop.f32.mrb[0].mxu0
    %v431 = vpop.f32.mrb[0].mxu0
    %v432 = vadd.f32 0.0, %v431
    %v433 = vpop.f32.mrb[0].mxu0
    %434 = vdwg.mxu0
    %v435 = vadd.f32 %v344, %v429
    %v436 = vadd.f32 %v345, %v432
    %v437 = vxor.u32 %v435, 2147483648
    %v438 = vxor.u32 %v436, 2147483648
    %v439 = vmul.f32 %v437, 1.442695
    %v440 = vpow.pop %v439
    %v441 = vmul.f32 %v438, 1.442695
    %v442 = vpow.pop %v441
    %v443 = vadd.f32 %v440, 1.0
    %v444 = vadd.f32 %v442, 1.0
    %v445 = vrcp.pop %v443
    %v446 = vmul.f32 1.0, %v445
    %v447 = vrcp.pop %v444
    %v448 = vmul.f32 1.0, %v447
    %v449 = vtanh.pop %v435
    %v450 = vtanh.pop %v436
    %v451 = vmul.f32 %v446, 0.0
    %v452 = vmul.f32 %v448, 0.0
    %455 = vrot.lane.b32.xlu0 %v449, 64
    %v456 = vpop.permute.xlu0 %455
    %457 = vrot.lane.b32.xlu0 %v450, 64
    %v458 = vpop.permute.xlu0 %457
    %v461 = vmul.f32 %v446, %v456
    %v462 = vmul.f32 %v448, %v458
    %465 = vrot.lane.b32.xlu0 %v461, 32
    %v466 = vpop.permute.xlu0 %465
    %467 = vrot.lane.b32.xlu0 %v462, 32
    %v468 = vpop.permute.xlu0 %467
    %v471 = vadd.f32 %v451, %v466
    %v472 = vadd.f32 %v452, %v468
    %v473 = vtanh.pop %v471
    %v474 = vtanh.pop %v472
    %477 = vrot.lane.b32.xlu0 %v473, 64
    %v478 = vpop.permute.xlu0 %477
    %479 = vrot.lane.b32.xlu0 %v474, 64
    %v480 = vpop.permute.xlu0 %479
    %v483 = vmul.f32 %v446, %v478
    %v484 = vmul.f32 %v448, %v480
    %487 = vrot.lane.b32.xlu0 %v483, 32
    %v488 = vpop.permute.xlu0 %487
    %489 = vrot.lane.b32.xlu0 %v484, 32
    %v490 = vpop.permute.xlu0 %489
    %vm493 = vcmask 261120
    %v494 = vsel %vm493, %v488, 0.0
    %v495 = vsel %vm493, %v490, 0.0
    %v496 = vpack.c.bf16 %v495, %v494
    %497 = vst [vmem:[#allocation3] sm:$0xff] %v496
    %s498 = scalar_lea.vmem [#allocation2], 16
    %v499 = vld [vmem:[%s498] sm:$0xff]
    %v500 = vld [vmem:[%s498 + $0x8] sm:$0xff]
    %501 = vmatprep.subr.bf16.mxu0 0
    %502 = vmatpush1.bf16.msra.mxu0 %v378
    %503 = vmatprep.subr.bf16.mxu0 0
    %504 = vmatpush1.bf16.msra.mxu0 %v379
    %505 = vmatprep.subr.bf16.mxu0 0
    %506 = vmatpush1.bf16.msra.mxu0 %v380
    %507 = vmatprep.subr.bf16.mxu0 0
    %508 = vmatpush1.bf16.msra.mxu0 %v381
    %509 = vmatprep.subr.bf16.mxu0 0
    %510 = vmatpush1.bf16.msra.mxu0 %v382
    %511 = vmatprep.subr.bf16.mxu0 0
    %512 = vmatpush1.bf16.msra.mxu0 %v383
    %513 = vmatprep.subr.bf16.mxu0 0
    %514 = vmatpush1.bf16.msra.mxu0 %v384
    %515 = vmatprep.subr.bf16.mxu0 0
    %516 = vmatpush1.bf16.msra.mxu0 %v385
    %517 = vmatprep.subr.bf16.mxu0 0
    %518 = vmatpush1.bf16.msra.mxu0 0
    %519 = vmatprep.subr.bf16.mxu0 0
    %520 = vmatpush1.bf16.msra.mxu0 0
    %521 = vmatprep.subr.bf16.mxu0 0
    %522 = vmatpush1.bf16.msra.mxu0 0
    %523 = vmatprep.subr.bf16.mxu0 0
    %524 = vmatpush1.bf16.msra.mxu0 0
    %525 = vmatprep.subr.bf16.mxu0 0
    %526 = vmatpush1.bf16.msra.mxu0 0
    %527 = vmatprep.subr.bf16.mxu0 0
    %528 = vmatpush1.bf16.msra.mxu0 0
    %529 = vmatprep.subr.bf16.mxu0 0
    %530 = vmatpush1.bf16.msra.mxu0 0
    %531 = vmatprep.subr.bf16.mxu0 0
    %532 = vmatpush1.bf16.msra.mxu0 0
    %533 = vmatprep.mubr.bf16.mxu0 0
    %534 = vmatmul.mubr.bf16.gmra.mrb[0].mxu0 %v496
    %v535 = vpop.f32.mrb[0].mxu0
    %v536 = vadd.f32 0.0, %v535
    %v537 = vpop.f32.mrb[0].mxu0
    %v538 = vpop.f32.mrb[0].mxu0
    %v539 = vadd.f32 0.0, %v538
    %v540 = vpop.f32.mrb[0].mxu0
    %541 = vdwg.mxu0
    %v542 = vadd.f32 %v499, %v536
    %v543 = vadd.f32 %v500, %v539
    %v544 = vxor.u32 %v542, 2147483648
    %v545 = vxor.u32 %v543, 2147483648
    %v546 = vmul.f32 %v544, 1.442695
    %v547 = vpow.pop %v546
    %v548 = vmul.f32 %v545, 1.442695
    %v549 = vpow.pop %v548
    %v550 = vadd.f32 %v547, 1.0
    %v551 = vadd.f32 %v549, 1.0
    %v552 = vrcp.pop %v550
    %v553 = vmul.f32 1.0, %v552
    %v554 = vrcp.pop %v551
    %v555 = vmul.f32 1.0, %v554
    %v556 = vtanh.pop %v542
    %v557 = vtanh.pop %v543
    %v558 = vmul.f32 %v553, %v471
    %v559 = vmul.f32 %v555, %v472
    %562 = vrot.lane.b32.xlu0 %v556, 64
    %v563 = vpop.permute.xlu0 %562
    %564 = vrot.lane.b32.xlu0 %v557, 64
    %v565 = vpop.permute.xlu0 %564
    %v568 = vmul.f32 %v553, %v563
    %v569 = vmul.f32 %v555, %v565
    %572 = vrot.lane.b32.xlu0 %v568, 32
    %v573 = vpop.permute.xlu0 %572
    %574 = vrot.lane.b32.xlu0 %v569, 32
    %v575 = vpop.permute.xlu0 %574
    %v578 = vadd.f32 %v558, %v573
    %v579 = vadd.f32 %v559, %v575
    %v580 = vtanh.pop %v578
    %v581 = vtanh.pop %v579
    %584 = vrot.lane.b32.xlu0 %v580, 64
    %v585 = vpop.permute.xlu0 %584
    %586 = vrot.lane.b32.xlu0 %v581, 64
    %v587 = vpop.permute.xlu0 %586
    %v590 = vmul.f32 %v553, %v585
    %v591 = vmul.f32 %v555, %v587
    %594 = vrot.lane.b32.xlu0 %v590, 32
    %v595 = vpop.permute.xlu0 %594
    %596 = vrot.lane.b32.xlu0 %v591, 32
    %v597 = vpop.permute.xlu0 %596
    %v600 = vsel %vm493, %v595, 0.0
    %v601 = vsel %vm493, %v597, 0.0
    %v602 = vpack.c.bf16 %v601, %v600
    %s603 = scalar_lea.vmem [#allocation3], 8
    %604 = vst [vmem:[%s603] sm:$0xff] %v602
    %s605 = scalar_lea.vmem [#allocation2], 32
    %v606 = vld [vmem:[%s605] sm:$0xff]
    %v607 = vld [vmem:[%s605 + $0x8] sm:$0xff]
    %608 = vmatprep.subr.bf16.mxu0 0
    %609 = vmatpush1.bf16.msra.mxu0 %v378
    %610 = vmatprep.subr.bf16.mxu0 0
    %611 = vmatpush1.bf16.msra.mxu0 %v379
    %612 = vmatprep.subr.bf16.mxu0 0
    %613 = vmatpush1.bf16.msra.mxu0 %v380
    %614 = vmatprep.subr.bf16.mxu0 0
    %615 = vmatpush1.bf16.msra.mxu0 %v381
    %616 = vmatprep.subr.bf16.mxu0 0
    %617 = vmatpush1.bf16.msra.mxu0 %v382
    %618 = vmatprep.subr.bf16.mxu0 0
    %619 = vmatpush1.bf16.msra.mxu0 %v383
    %620 = vmatprep.subr.bf16.mxu0 0
    %621 = vmatpush1.bf16.msra.mxu0 %v384
    %622 = vmatprep.subr.bf16.mxu0 0
    %623 = vmatpush1.bf16.msra.mxu0 %v385
    %624 = vmatprep.subr.bf16.mxu0 0
    %625 = vmatpush1.bf16.msra.mxu0 0
    %626 = vmatprep.subr.bf16.mxu0 0
    %627 = vmatpush1.bf16.msra.mxu0 0
    %628 = vmatprep.subr.bf16.mxu0 0
    %629 = vmatpush1.bf16.msra.mxu0 0
    %630 = vmatprep.subr.bf16.mxu0 0
    %631 = vmatpush1.bf16.msra.mxu0 0
    %632 = vmatprep.subr.bf16.mxu0 0
    %633 = vmatpush1.bf16.msra.mxu0 0
    %634 = vmatprep.subr.bf16.mxu0 0
    %635 = vmatpush1.bf16.msra.mxu0 0
    %636 = vmatprep.subr.bf16.mxu0 0
    %637 = vmatpush1.bf16.msra.mxu0 0
    %638 = vmatprep.subr.bf16.mxu0 0
    %639 = vmatpush1.bf16.msra.mxu0 0
    %640 = vmatprep.mubr.bf16.mxu0 0
    %641 = vmatmul.mubr.bf16.gmra.mrb[0].mxu0 %v602
    %v642 = vpop.f32.mrb[0].mxu0
    %v643 = vadd.f32 0.0, %v642
    %v644 = vpop.f32.mrb[0].mxu0
    %v645 = vpop.f32.mrb[0].mxu0
    %v646 = vadd.f32 0.0, %v645
    %v647 = vpop.f32.mrb[0].mxu0
    %648 = vdwg.mxu0
    %v649 = vadd.f32 %v606, %v643
    %v650 = vadd.f32 %v607, %v646
    %v651 = vxor.u32 %v649, 2147483648
    %v652 = vxor.u32 %v650, 2147483648
    %v653 = vmul.f32 %v651, 1.442695
    %v654 = vpow.pop %v653
    %v655 = vmul.f32 %v652, 1.442695
    %v656 = vpow.pop %v655
    %v657 = vadd.f32 %v654, 1.0
    %v658 = vadd.f32 %v656, 1.0
    %v659 = vrcp.pop %v657
    %v660 = vmul.f32 1.0, %v659
    %v661 = vrcp.pop %v658
    %v662 = vmul.f32 1.0, %v661
    %v663 = vtanh.pop %v649
    %v664 = vtanh.pop %v650
    %v665 = vmul.f32 %v660, %v578
    %v666 = vmul.f32 %v662, %v579
    %669 = vrot.lane.b32.xlu0 %v663, 64
    %v670 = vpop.permute.xlu0 %669
    %671 = vrot.lane.b32.xlu0 %v664, 64
    %v672 = vpop.permute.xlu0 %671
    %v675 = vmul.f32 %v660, %v670
    %v676 = vmul.f32 %v662, %v672
    %679 = vrot.lane.b32.xlu0 %v675, 32
    %v680 = vpop.permute.xlu0 %679
    %681 = vrot.lane.b32.xlu0 %v676, 32
    %v682 = vpop.permute.xlu0 %681
    %v685 = vadd.f32 %v665, %v680
    %v686 = vadd.f32 %v666, %v682
    %v687 = vtanh.pop %v685
    %v688 = vtanh.pop %v686
    %691 = vrot.lane.b32.xlu0 %v687, 64
    %v692 = vpop.permute.xlu0 %691
    %693 = vrot.lane.b32.xlu0 %v688, 64
    %v694 = vpop.permute.xlu0 %693
    %v697 = vmul.f32 %v660, %v692
    %v698 = vmul.f32 %v662, %v694
    %701 = vrot.lane.b32.xlu0 %v697, 32
    %v702 = vpop.permute.xlu0 %701
    %703 = vrot.lane.b32.xlu0 %v698, 32
    %v704 = vpop.permute.xlu0 %703
    %v707 = vsel %vm493, %v702, 0.0
    %v708 = vsel %vm493, %v704, 0.0
    %v709 = vpack.c.bf16 %v708, %v707
    %s710 = scalar_lea.vmem [#allocation3], 16
    %711 = vst [vmem:[%s710] sm:$0xff] %v709
    %s712 = scalar_lea.vmem [#allocation2], 48
    %v713 = vld [vmem:[%s712] sm:$0xff]
    %v714 = vld [vmem:[%s712 + $0x8] sm:$0xff]
    %715 = vmatprep.subr.bf16.mxu0 0
    %716 = vmatpush1.bf16.msra.mxu0 %v378
    %717 = vmatprep.subr.bf16.mxu0 0
    %718 = vmatpush1.bf16.msra.mxu0 %v379
    %719 = vmatprep.subr.bf16.mxu0 0
    %720 = vmatpush1.bf16.msra.mxu0 %v380
    %721 = vmatprep.subr.bf16.mxu0 0
    %722 = vmatpush1.bf16.msra.mxu0 %v381
    %723 = vmatprep.subr.bf16.mxu0 0
    %724 = vmatpush1.bf16.msra.mxu0 %v382
    %725 = vmatprep.subr.bf16.mxu0 0
    %726 = vmatpush1.bf16.msra.mxu0 %v383
    %727 = vmatprep.subr.bf16.mxu0 0
    %728 = vmatpush1.bf16.msra.mxu0 %v384
    %729 = vmatprep.subr.bf16.mxu0 0
    %730 = vmatpush1.bf16.msra.mxu0 %v385
    %731 = vmatprep.subr.bf16.mxu0 0
    %732 = vmatpush1.bf16.msra.mxu0 0
    %733 = vmatprep.subr.bf16.mxu0 0
    %734 = vmatpush1.bf16.msra.mxu0 0
    %735 = vmatprep.subr.bf16.mxu0 0
    %736 = vmatpush1.bf16.msra.mxu0 0
    %737 = vmatprep.subr.bf16.mxu0 0
    %738 = vmatpush1.bf16.msra.mxu0 0
    %739 = vmatprep.subr.bf16.mxu0 0
    %740 = vmatpush1.bf16.msra.mxu0 0
    %741 = vmatprep.subr.bf16.mxu0 0
    %742 = vmatpush1.bf16.msra.mxu0 0
    %743 = vmatprep.subr.bf16.mxu0 0
    %744 = vmatpush1.bf16.msra.mxu0 0
    %745 = vmatprep.subr.bf16.mxu0 0
    %746 = vmatpush1.bf16.msra.mxu0 0
    %747 = vmatprep.mubr.bf16.mxu0 0
    %748 = vmatmul.mubr.bf16.gmra.mrb[0].mxu0 %v709
    %v749 = vpop.f32.mrb[0].mxu0
    %v750 = vadd.f32 0.0, %v749
    %v751 = vpop.f32.mrb[0].mxu0
    %v752 = vpop.f32.mrb[0].mxu0
    %v753 = vadd.f32 0.0, %v752
    %v754 = vpop.f32.mrb[0].mxu0
    %755 = vdwg.mxu0
    %v756 = vadd.f32 %v713, %v750
    %v757 = vadd.f32 %v714, %v753
    %v758 = vxor.u32 %v756, 2147483648
    %v759 = vxor.u32 %v757, 2147483648
    %v760 = vmul.f32 %v758, 1.442695
    %v761 = vpow.pop %v760
    %v762 = vmul.f32 %v759, 1.442695
    %v763 = vpow.pop %v762
    %v764 = vadd.f32 %v761, 1.0
    %v765 = vadd.f32 %v763, 1.0
    %v766 = vrcp.pop %v764
    %v767 = vmul.f32 1.0, %v766
    %v768 = vrcp.pop %v765
    %v769 = vmul.f32 1.0, %v768
    %v770 = vtanh.pop %v756
    %v771 = vtanh.pop %v757
    %v772 = vmul.f32 %v767, %v685
    %v773 = vmul.f32 %v769, %v686
    %776 = vrot.lane.b32.xlu0 %v770, 64
    %v777 = vpop.permute.xlu0 %776
    %778 = vrot.lane.b32.xlu0 %v771, 64
    %v779 = vpop.permute.xlu0 %778
    %v782 = vmul.f32 %v767, %v777
    %v783 = vmul.f32 %v769, %v779
    %786 = vrot.lane.b32.xlu0 %v782, 32
    %v787 = vpop.permute.xlu0 %786
    %788 = vrot.lane.b32.xlu0 %v783, 32
    %v789 = vpop.permute.xlu0 %788
    %v792 = vadd.f32 %v772, %v787
    %v793 = vadd.f32 %v773, %v789
    %v794 = vtanh.pop %v792
    %v795 = vtanh.pop %v793
    %798 = vrot.lane.b32.xlu0 %v794, 64
    %v799 = vpop.permute.xlu0 %798
    %800 = vrot.lane.b32.xlu0 %v795, 64
    %v801 = vpop.permute.xlu0 %800
    %v804 = vmul.f32 %v767, %v799
    %v805 = vmul.f32 %v769, %v801
    %808 = vrot.lane.b32.xlu0 %v804, 32
    %v809 = vpop.permute.xlu0 %808
    %810 = vrot.lane.b32.xlu0 %v805, 32
    %v811 = vpop.permute.xlu0 %810
    %v814 = vsel %vm493, %v809, 0.0
    %v815 = vsel %vm493, %v811, 0.0
    %v816 = vpack.c.bf16 %v815, %v814
    %s817 = scalar_lea.vmem [#allocation3], 24
    %818 = vst [vmem:[%s817] sm:$0xff] %v816
    %s819 = scalar_lea.vmem [#allocation2], 64
    %v820 = vld [vmem:[%s819] sm:$0xff]
    %v821 = vld [vmem:[%s819 + $0x8] sm:$0xff]
    %822 = vmatprep.subr.bf16.mxu0 0
    %823 = vmatpush1.bf16.msra.mxu0 %v378
    %824 = vmatprep.subr.bf16.mxu0 0
    %825 = vmatpush1.bf16.msra.mxu0 %v379
    %826 = vmatprep.subr.bf16.mxu0 0
    %827 = vmatpush1.bf16.msra.mxu0 %v380
    %828 = vmatprep.subr.bf16.mxu0 0
    %829 = vmatpush1.bf16.msra.mxu0 %v381
    %830 = vmatprep.subr.bf16.mxu0 0
    %831 = vmatpush1.bf16.msra.mxu0 %v382
    %832 = vmatprep.subr.bf16.mxu0 0
    %833 = vmatpush1.bf16.msra.mxu0 %v383
    %834 = vmatprep.subr.bf16.mxu0 0
    %835 = vmatpush1.bf16.msra.mxu0 %v384
    %836 = vmatprep.subr.bf16.mxu0 0
    %837 = vmatpush1.bf16.msra.mxu0 %v385
    %838 = vmatprep.subr.bf16.mxu0 0
    %839 = vmatpush1.bf16.msra.mxu0 0
    %840 = vmatprep.subr.bf16.mxu0 0
    %841 = vmatpush1.bf16.msra.mxu0 0
    %842 = vmatprep.subr.bf16.mxu0 0
    %843 = vmatpush1.bf16.msra.mxu0 0
    %844 = vmatprep.subr.bf16.mxu0 0
    %845 = vmatpush1.bf16.msra.mxu0 0
    %846 = vmatprep.subr.bf16.mxu0 0
    %847 = vmatpush1.bf16.msra.mxu0 0
    %848 = vmatprep.subr.bf16.mxu0 0
    %849 = vmatpush1.bf16.msra.mxu0 0
    %850 = vmatprep.subr.bf16.mxu0 0
    %851 = vmatpush1.bf16.msra.mxu0 0
    %852 = vmatprep.subr.bf16.mxu0 0
    %853 = vmatpush1.bf16.msra.mxu0 0
    %854 = vmatprep.mubr.bf16.mxu0 0
    %855 = vmatmul.mubr.bf16.gmra.mrb[0].mxu0 %v816
    %v856 = vpop.f32.mrb[0].mxu0
    %v857 = vadd.f32 0.0, %v856
    %v858 = vpop.f32.mrb[0].mxu0
    %v859 = vpop.f32.mrb[0].mxu0
    %v860 = vadd.f32 0.0, %v859
    %v861 = vpop.f32.mrb[0].mxu0
    %862 = vdwg.mxu0
    %v863 = vadd.f32 %v820, %v857
    %v864 = vadd.f32 %v821, %v860
    %v865 = vxor.u32 %v863, 2147483648
    %v866 = vxor.u32 %v864, 2147483648
    %v867 = vmul.f32 %v865, 1.442695
    %v868 = vpow.pop %v867
    %v869 = vmul.f32 %v866, 1.442695
    %v870 = vpow.pop %v869
    %v871 = vadd.f32 %v868, 1.0
    %v872 = vadd.f32 %v870, 1.0
    %v873 = vrcp.pop %v871
    %v874 = vmul.f32 1.0, %v873
    %v875 = vrcp.pop %v872
    %v876 = vmul.f32 1.0, %v875
    %v877 = vtanh.pop %v863
    %v878 = vtanh.pop %v864
    %v879 = vmul.f32 %v874, %v792
    %v880 = vmul.f32 %v876, %v793
    %883 = vrot.lane.b32.xlu0 %v877, 64
    %v884 = vpop.permute.xlu0 %883
    %885 = vrot.lane.b32.xlu0 %v878, 64
    %v886 = vpop.permute.xlu0 %885
    %v889 = vmul.f32 %v874, %v884
    %v890 = vmul.f32 %v876, %v886
    %893 = vrot.lane.b32.xlu0 %v889, 32
    %v894 = vpop.permute.xlu0 %893
    %895 = vrot.lane.b32.xlu0 %v890, 32
    %v896 = vpop.permute.xlu0 %895
    %v899 = vadd.f32 %v879, %v894
    %v900 = vadd.f32 %v880, %v896
    %v901 = vtanh.pop %v899
    %v902 = vtanh.pop %v900
    %905 = vrot.lane.b32.xlu0 %v901, 64
    %v906 = vpop.permute.xlu0 %905
    %907 = vrot.lane.b32.xlu0 %v902, 64
    %v908 = vpop.permute.xlu0 %907
    %v911 = vmul.f32 %v874, %v906
    %v912 = vmul.f32 %v876, %v908
    %915 = vrot.lane.b32.xlu0 %v911, 32
    %v916 = vpop.permute.xlu0 %915
    %917 = vrot.lane.b32.xlu0 %v912, 32
    %v918 = vpop.permute.xlu0 %917
    %v921 = vsel %vm493, %v916, 0.0
    %v922 = vsel %vm493, %v918, 0.0
    %v923 = vpack.c.bf16 %v922, %v921
    %s924 = scalar_lea.vmem [#allocation3], 32
    %925 = vst [vmem:[%s924] sm:$0xff] %v923
    %s926 = scalar_lea.vmem [#allocation2], 80
    %v927 = vld [vmem:[%s926] sm:$0xff]
    %v928 = vld [vmem:[%s926 + $0x8] sm:$0xff]
    %929 = vmatprep.subr.bf16.mxu0 0
    %930 = vmatpush1.bf16.msra.mxu0 %v378
    %931 = vmatprep.subr.bf16.mxu0 0
    %932 = vmatpush1.bf16.msra.mxu0 %v379
    %933 = vmatprep.subr.bf16.mxu0 0
    %934 = vmatpush1.bf16.msra.mxu0 %v380
    %935 = vmatprep.subr.bf16.mxu0 0
    %936 = vmatpush1.bf16.msra.mxu0 %v381
    %937 = vmatprep.subr.bf16.mxu0 0
    %938 = vmatpush1.bf16.msra.mxu0 %v382
    %939 = vmatprep.subr.bf16.mxu0 0
    %940 = vmatpush1.bf16.msra.mxu0 %v383
    %941 = vmatprep.subr.bf16.mxu0 0
    %942 = vmatpush1.bf16.msra.mxu0 %v384
    %943 = vmatprep.subr.bf16.mxu0 0
    %944 = vmatpush1.bf16.msra.mxu0 %v385
    %945 = vmatprep.subr.bf16.mxu0 0
    %946 = vmatpush1.bf16.msra.mxu0 0
    %947 = vmatprep.subr.bf16.mxu0 0
    %948 = vmatpush1.bf16.msra.mxu0 0
    %949 = vmatprep.subr.bf16.mxu0 0
    %950 = vmatpush1.bf16.msra.mxu0 0
    %951 = vmatprep.subr.bf16.mxu0 0
    %952 = vmatpush1.bf16.msra.mxu0 0
    %953 = vmatprep.subr.bf16.mxu0 0
    %954 = vmatpush1.bf16.msra.mxu0 0
    %955 = vmatprep.subr.bf16.mxu0 0
    %956 = vmatpush1.bf16.msra.mxu0 0
    %957 = vmatprep.subr.bf16.mxu0 0
    %958 = vmatpush1.bf16.msra.mxu0 0
    %959 = vmatprep.subr.bf16.mxu0 0
    %960 = vmatpush1.bf16.msra.mxu0 0
    %961 = vmatprep.mubr.bf16.mxu0 0
    %962 = vmatmul.mubr.bf16.gmra.mrb[0].mxu0 %v923
    %v963 = vpop.f32.mrb[0].mxu0
    %v964 = vadd.f32 0.0, %v963
    %v965 = vpop.f32.mrb[0].mxu0
    %v966 = vpop.f32.mrb[0].mxu0
    %v967 = vadd.f32 0.0, %v966
    %v968 = vpop.f32.mrb[0].mxu0
    %969 = vdwg.mxu0
    %v970 = vadd.f32 %v927, %v964
    %v971 = vadd.f32 %v928, %v967
    %v972 = vxor.u32 %v970, 2147483648
    %v973 = vxor.u32 %v971, 2147483648
    %v974 = vmul.f32 %v972, 1.442695
    %v975 = vpow.pop %v974
    %v976 = vmul.f32 %v973, 1.442695
    %v977 = vpow.pop %v976
    %v978 = vadd.f32 %v975, 1.0
    %v979 = vadd.f32 %v977, 1.0
    %v980 = vrcp.pop %v978
    %v981 = vmul.f32 1.0, %v980
    %v982 = vrcp.pop %v979
    %v983 = vmul.f32 1.0, %v982
    %v984 = vtanh.pop %v970
    %v985 = vtanh.pop %v971
    %v986 = vmul.f32 %v981, %v899
    %v987 = vmul.f32 %v983, %v900
    %990 = vrot.lane.b32.xlu0 %v984, 64
    %v991 = vpop.permute.xlu0 %990
    %992 = vrot.lane.b32.xlu0 %v985, 64
    %v993 = vpop.permute.xlu0 %992
    %v996 = vmul.f32 %v981, %v991
    %v997 = vmul.f32 %v983, %v993
    %1000 = vrot.lane.b32.xlu0 %v996, 32
    %v1001 = vpop.permute.xlu0 %1000
    %1002 = vrot.lane.b32.xlu0 %v997, 32
    %v1003 = vpop.permute.xlu0 %1002
    %v1006 = vadd.f32 %v986, %v1001
    %v1007 = vadd.f32 %v987, %v1003
    %v1008 = vtanh.pop %v1006
    %v1009 = vtanh.pop %v1007
    %1012 = vrot.lane.b32.xlu0 %v1008, 64
    %v1013 = vpop.permute.xlu0 %1012
    %1014 = vrot.lane.b32.xlu0 %v1009, 64
    %v1015 = vpop.permute.xlu0 %1014
    %v1018 = vmul.f32 %v981, %v1013
    %v1019 = vmul.f32 %v983, %v1015
    %1022 = vrot.lane.b32.xlu0 %v1018, 32
    %v1023 = vpop.permute.xlu0 %1022
    %1024 = vrot.lane.b32.xlu0 %v1019, 32
    %v1025 = vpop.permute.xlu0 %1024
    %v1028 = vsel %vm493, %v1023, 0.0
    %v1029 = vsel %vm493, %v1025, 0.0
    %v1030 = vpack.c.bf16 %v1029, %v1028
    %s1031 = scalar_lea.vmem [#allocation3], 40
    %1032 = vst [vmem:[%s1031] sm:$0xff] %v1030
    %s1033 = scalar_lea.vmem [#allocation2], 96
    %v1034 = vld [vmem:[%s1033] sm:$0xff]
    %v1035 = vld [vmem:[%s1033 + $0x8] sm:$0xff]
    %1036 = vmatprep.subr.bf16.mxu0 0
    %1037 = vmatpush1.bf16.msra.mxu0 %v378
    %1038 = vmatprep.subr.bf16.mxu0 0
    %1039 = vmatpush1.bf16.msra.mxu0 %v379
    %1040 = vmatprep.subr.bf16.mxu0 0
    %1041 = vmatpush1.bf16.msra.mxu0 %v380
    %1042 = vmatprep.subr.bf16.mxu0 0
    %1043 = vmatpush1.bf16.msra.mxu0 %v381
    %1044 = vmatprep.subr.bf16.mxu0 0
    %1045 = vmatpush1.bf16.msra.mxu0 %v382
    %1046 = vmatprep.subr.bf16.mxu0 0
    %1047 = vmatpush1.bf16.msra.mxu0 %v383
    %1048 = vmatprep.subr.bf16.mxu0 0
    %1049 = vmatpush1.bf16.msra.mxu0 %v384
    %1050 = vmatprep.subr.bf16.mxu0 0
    %1051 = vmatpush1.bf16.msra.mxu0 %v385
    %1052 = vmatprep.subr.bf16.mxu0 0
    %1053 = vmatpush1.bf16.msra.mxu0 0
    %1054 = vmatprep.subr.bf16.mxu0 0
    %1055 = vmatpush1.bf16.msra.mxu0 0
    %1056 = vmatprep.subr.bf16.mxu0 0
    %1057 = vmatpush1.bf16.msra.mxu0 0
    %1058 = vmatprep.subr.bf16.mxu0 0
    %1059 = vmatpush1.bf16.msra.mxu0 0
    %1060 = vmatprep.subr.bf16.mxu0 0
    %1061 = vmatpush1.bf16.msra.mxu0 0
    %1062 = vmatprep.subr.bf16.mxu0 0
    %1063 = vmatpush1.bf16.msra.mxu0 0
    %1064 = vmatprep.subr.bf16.mxu0 0
    %1065 = vmatpush1.bf16.msra.mxu0 0
    %1066 = vmatprep.subr.bf16.mxu0 0
    %1067 = vmatpush1.bf16.msra.mxu0 0
    %1068 = vmatprep.mubr.bf16.mxu0 0
    %1069 = vmatmul.mubr.bf16.gmra.mrb[0].mxu0 %v1030
    %v1070 = vpop.f32.mrb[0].mxu0
    %v1071 = vadd.f32 0.0, %v1070
    %v1072 = vpop.f32.mrb[0].mxu0
    %v1073 = vpop.f32.mrb[0].mxu0
    %v1074 = vadd.f32 0.0, %v1073
    %v1075 = vpop.f32.mrb[0].mxu0
    %1076 = vdwg.mxu0
    %v1077 = vadd.f32 %v1034, %v1071
    %v1078 = vadd.f32 %v1035, %v1074
    %v1079 = vxor.u32 %v1077, 2147483648
    %v1080 = vxor.u32 %v1078, 2147483648
    %v1081 = vmul.f32 %v1079, 1.442695
    %v1082 = vpow.pop %v1081
    %v1083 = vmul.f32 %v1080, 1.442695
    %v1084 = vpow.pop %v1083
    %v1085 = vadd.f32 %v1082, 1.0
    %v1086 = vadd.f32 %v1084, 1.0
    %v1087 = vrcp.pop %v1085
    %v1088 = vmul.f32 1.0, %v1087
    %v1089 = vrcp.pop %v1086
    %v1090 = vmul.f32 1.0, %v1089
    %v1091 = vtanh.pop %v1077
    %v1092 = vtanh.pop %v1078
    %v1093 = vmul.f32 %v1088, %v1006
    %v1094 = vmul.f32 %v1090, %v1007
    %1097 = vrot.lane.b32.xlu0 %v1091, 64
    %v1098 = vpop.permute.xlu0 %1097
    %1099 = vrot.lane.b32.xlu0 %v1092, 64
    %v1100 = vpop.permute.xlu0 %1099
    %v1103 = vmul.f32 %v1088, %v1098
    %v1104 = vmul.f32 %v1090, %v1100
    %1107 = vrot.lane.b32.xlu0 %v1103, 32
    %v1108 = vpop.permute.xlu0 %1107
    %1109 = vrot.lane.b32.xlu0 %v1104, 32
    %v1110 = vpop.permute.xlu0 %1109
    %v1113 = vadd.f32 %v1093, %v1108
    %v1114 = vadd.f32 %v1094, %v1110
    %v1115 = vtanh.pop %v1113
    %v1116 = vtanh.pop %v1114
    %1119 = vrot.lane.b32.xlu0 %v1115, 64
    %v1120 = vpop.permute.xlu0 %1119
    %1121 = vrot.lane.b32.xlu0 %v1116, 64
    %v1122 = vpop.permute.xlu0 %1121
    %v1125 = vmul.f32 %v1088, %v1120
    %v1126 = vmul.f32 %v1090, %v1122
    %1129 = vrot.lane.b32.xlu0 %v1125, 32
    %v1130 = vpop.permute.xlu0 %1129
    %1131 = vrot.lane.b32.xlu0 %v1126, 32
    %v1132 = vpop.permute.xlu0 %1131
    %v1135 = vsel %vm493, %v1130, 0.0
    %v1136 = vsel %vm493, %v1132, 0.0
    %v1137 = vpack.c.bf16 %v1136, %v1135
    %s1138 = scalar_lea.vmem [#allocation3], 48
    %1139 = vst [vmem:[%s1138] sm:$0xff] %v1137
    %s1140 = scalar_lea.vmem [#allocation2], 112
    %v1141 = vld [vmem:[%s1140] sm:$0xff]
    %v1142 = vld [vmem:[%s1140 + $0x8] sm:$0xff]
    %1143 = vmatprep.subr.bf16.mxu0 0
    %1144 = vmatpush1.bf16.msra.mxu0 %v378
    %1145 = vmatprep.subr.bf16.mxu0 0
    %1146 = vmatpush1.bf16.msra.mxu0 %v379
    %1147 = vmatprep.subr.bf16.mxu0 0
    %1148 = vmatpush1.bf16.msra.mxu0 %v380
    %1149 = vmatprep.subr.bf16.mxu0 0
    %1150 = vmatpush1.bf16.msra.mxu0 %v381
    %1151 = vmatprep.subr.bf16.mxu0 0
    %1152 = vmatpush1.bf16.msra.mxu0 %v382
    %1153 = vmatprep.subr.bf16.mxu0 0
    %1154 = vmatpush1.bf16.msra.mxu0 %v383
    %1155 = vmatprep.subr.bf16.mxu0 0
    %1156 = vmatpush1.bf16.msra.mxu0 %v384
    %1157 = vmatprep.subr.bf16.mxu0 0
    %1158 = vmatpush1.bf16.msra.mxu0 %v385
    %1159 = vmatprep.subr.bf16.mxu0 0
    %1160 = vmatpush1.bf16.msra.mxu0 0
    %1161 = vmatprep.subr.bf16.mxu0 0
    %1162 = vmatpush1.bf16.msra.mxu0 0
    %1163 = vmatprep.subr.bf16.mxu0 0
    %1164 = vmatpush1.bf16.msra.mxu0 0
    %1165 = vmatprep.subr.bf16.mxu0 0
    %1166 = vmatpush1.bf16.msra.mxu0 0
    %1167 = vmatprep.subr.bf16.mxu0 0
    %1168 = vmatpush1.bf16.msra.mxu0 0
    %1169 = vmatprep.subr.bf16.mxu0 0
    %1170 = vmatpush1.bf16.msra.mxu0 0
    %1171 = vmatprep.subr.bf16.mxu0 0
    %1172 = vmatpush1.bf16.msra.mxu0 0
    %1173 = vmatprep.subr.bf16.mxu0 0
    %1174 = vmatpush1.bf16.msra.mxu0 0
    %1175 = vmatprep.mubr.bf16.mxu0 0
    %1176 = vmatmul.mubr.bf16.gmra.mrb[0].mxu0 %v1137
    %v1177 = vpop.f32.mrb[0].mxu0
    %v1178 = vadd.f32 0.0, %v1177
    %v1179 = vpop.f32.mrb[0].mxu0
    %v1180 = vpop.f32.mrb[0].mxu0
    %v1181 = vadd.f32 0.0, %v1180
    %v1182 = vpop.f32.mrb[0].mxu0
    %1183 = vdwg.mxu0
    %v1184 = vadd.f32 %v1141, %v1178
    %v1185 = vadd.f32 %v1142, %v1181
    %v1186 = vxor.u32 %v1184, 2147483648
    %v1187 = vxor.u32 %v1185, 2147483648
    %v1188 = vmul.f32 %v1186, 1.442695
    %v1189 = vpow.pop %v1188
    %v1190 = vmul.f32 %v1187, 1.442695
    %v1191 = vpow.pop %v1190
    %v1192 = vadd.f32 %v1189, 1.0
    %v1193 = vadd.f32 %v1191, 1.0
    %v1194 = vrcp.pop %v1192
    %v1195 = vmul.f32 1.0, %v1194
    %v1196 = vrcp.pop %v1193
    %v1197 = vmul.f32 1.0, %v1196
    %v1198 = vtanh.pop %v1184
    %v1199 = vtanh.pop %v1185
    %v1200 = vmul.f32 %v1195, %v1113
    %v1201 = vmul.f32 %v1197, %v1114
    %1204 = vrot.lane.b32.xlu0 %v1198, 64
    %v1205 = vpop.permute.xlu0 %1204
    %1206 = vrot.lane.b32.xlu0 %v1199, 64
    %v1207 = vpop.permute.xlu0 %1206
    %v1210 = vmul.f32 %v1195, %v1205
    %v1211 = vmul.f32 %v1197, %v1207
    %1214 = vrot.lane.b32.xlu0 %v1210, 32
    %v1215 = vpop.permute.xlu0 %1214
    %1216 = vrot.lane.b32.xlu0 %v1211, 32
    %v1217 = vpop.permute.xlu0 %1216
    %v1220 = vadd.f32 %v1200, %v1215
    %v1221 = vadd.f32 %v1201, %v1217
    %v1222 = vtanh.pop %v1220
    %v1223 = vtanh.pop %v1221
    %1226 = vrot.lane.b32.xlu0 %v1222, 64
    %v1227 = vpop.permute.xlu0 %1226
    %1228 = vrot.lane.b32.xlu0 %v1223, 64
    %v1229 = vpop.permute.xlu0 %1228
    %v1232 = vmul.f32 %v1195, %v1227
    %v1233 = vmul.f32 %v1197, %v1229
    %1236 = vrot.lane.b32.xlu0 %v1232, 32
    %v1237 = vpop.permute.xlu0 %1236
    %1238 = vrot.lane.b32.xlu0 %v1233, 32
    %v1239 = vpop.permute.xlu0 %1238
    %v1242 = vsel %vm493, %v1237, 0.0
    %v1243 = vsel %vm493, %v1239, 0.0
    %v1244 = vpack.c.bf16 %v1243, %v1242
    %s1245 = scalar_lea.vmem [#allocation3], 56
    %1246 = vst [vmem:[%s1245] sm:$0xff] %v1244
    %v1247 = vld [vmem:[#allocation3] sm:$0xff]
    %v1248 = vld [vmem:[#allocation3 + $0x8] sm:$0xff]
    %v1249 = vld [vmem:[#allocation3 + $0x10] sm:$0xff]
    %v1250 = vld [vmem:[#allocation3 + $0x18] sm:$0xff]
    %v1251 = vld [vmem:[#allocation3 + $0x20] sm:$0xff]
    %v1252 = vld [vmem:[#allocation3 + $0x28] sm:$0xff]
    %v1253 = vld [vmem:[#allocation3 + $0x30] sm:$0xff]
    %v1254 = vld [vmem:[#allocation3 + $0x38] sm:$0xff]
    %s1255 = scalar_lea.vmem [#allocation7], 64
    %v1256 = vld [vmem:[%s1255] sm:$0xf]
    %v1257 = vld [vmem:[%s1255 + $0x4] sm:$0xf]
    %v1258 = vld [vmem:[%s1255 + $0x8] sm:$0xf]
    %v1259 = vld [vmem:[%s1255 + $0xc] sm:$0xf]
    %v1260 = vld [vmem:[%s1255 + $0x10] sm:$0xf]
    %v1261 = vld [vmem:[%s1255 + $0x14] sm:$0xf]
    %v1262 = vld [vmem:[%s1255 + $0x18] sm:$0xf]
    %v1263 = vld [vmem:[%s1255 + $0x1c] sm:$0xf]
    %v1264 = vld [vmem:[%s1255 + $0x20] sm:$0xf]
    %v1265 = vld [vmem:[%s1255 + $0x24] sm:$0xf]
    %v1266 = vld [vmem:[%s1255 + $0x28] sm:$0xf]
    %v1267 = vld [vmem:[%s1255 + $0x2c] sm:$0xf]
    %v1268 = vld [vmem:[%s1255 + $0x30] sm:$0xf]
    %v1269 = vld [vmem:[%s1255 + $0x34] sm:$0xf]
    %v1270 = vld [vmem:[%s1255 + $0x38] sm:$0xf]
    %v1271 = vld [vmem:[%s1255 + $0x3c] sm:$0xf]
    %s1272 = scalar_lea.vmem %s3, 1
    %v1273 = vld [vmem:[%s1272] sm:$0x1]
    %v1275 = vlaneseq
    %v1276 = vshrl.u32 %v1275, 7
    %v1277 = vsub.s32 0, %v1276
    %v1278 = vrot.slane %v1273, %v1277
    %v1296 = vunpack.c.l.b16 %v1256
    %v1297 = vunpack.c.l.b16 %v1257
    %v1298 = vunpack.c.l.b16 %v1258
    %v1299 = vunpack.c.l.b16 %v1259
    %v1300 = vunpack.c.l.b16 %v1260
    %v1301 = vunpack.c.l.b16 %v1261
    %v1302 = vunpack.c.l.b16 %v1262
    %v1303 = vunpack.c.l.b16 %v1263
    %v1304 = vunpack.c.l.b16 %v1264
    %v1305 = vunpack.c.l.b16 %v1265
    %v1306 = vunpack.c.l.b16 %v1266
    %v1307 = vunpack.c.l.b16 %v1267
    %v1308 = vunpack.c.l.b16 %v1268
    %v1309 = vunpack.c.l.b16 %v1269
    %v1310 = vunpack.c.l.b16 %v1270
    %v1311 = vunpack.c.l.b16 %v1271
    %v1312 = vpack.c.b16 %v1297, %v1296
    %v1313 = vpack.c.b16 %v1299, %v1298
    %v1314 = vpack.c.b16 %v1301, %v1300
    %v1315 = vpack.c.b16 %v1303, %v1302
    %v1316 = vpack.c.b16 %v1305, %v1304
    %v1317 = vpack.c.b16 %v1307, %v1306
    %v1318 = vpack.c.b16 %v1309, %v1308
    %v1319 = vpack.c.b16 %v1311, %v1310
    %1328 = vmatprep.subr.bf16.mxu0 0
    %1329 = vmatpush1.bf16.msra.mxu0 %v1312
    %1330 = vmatprep.subr.bf16.mxu0 0
    %1331 = vmatpush1.bf16.msra.mxu0 %v1313
    %1332 = vmatprep.subr.bf16.mxu0 0
    %1333 = vmatpush1.bf16.msra.mxu0 %v1314
    %1334 = vmatprep.subr.bf16.mxu0 0
    %1335 = vmatpush1.bf16.msra.mxu0 %v1315
    %1336 = vmatprep.subr.bf16.mxu0 0
    %1337 = vmatpush1.bf16.msra.mxu0 %v1316
    %1338 = vmatprep.subr.bf16.mxu0 0
    %1339 = vmatpush1.bf16.msra.mxu0 %v1317
    %1340 = vmatprep.subr.bf16.mxu0 0
    %1341 = vmatpush1.bf16.msra.mxu0 %v1318
    %1342 = vmatprep.subr.bf16.mxu0 0
    %1343 = vmatpush1.bf16.msra.mxu0 %v1319
    %1344 = vmatprep.subr.bf16.mxu0 0
    %1345 = vmatpush1.bf16.msra.mxu0 0
    %1346 = vmatprep.subr.bf16.mxu0 0
    %1347 = vmatpush1.bf16.msra.mxu0 0
    %1348 = vmatprep.subr.bf16.mxu0 0
    %1349 = vmatpush1.bf16.msra.mxu0 0
    %1350 = vmatprep.subr.bf16.mxu0 0
    %1351 = vmatpush1.bf16.msra.mxu0 0
    %1352 = vmatprep.subr.bf16.mxu0 0
    %1353 = vmatpush1.bf16.msra.mxu0 0
    %1354 = vmatprep.subr.bf16.mxu0 0
    %1355 = vmatpush1.bf16.msra.mxu0 0
    %1356 = vmatprep.subr.bf16.mxu0 0
    %1357 = vmatpush1.bf16.msra.mxu0 0
    %1358 = vmatprep.subr.bf16.mxu0 0
    %1359 = vmatpush1.bf16.msra.mxu0 0
    %1360 = vmatprep.mubr.bf16.mxu0 0
    %1361 = vmatmul.mubr.bf16.gmra.mrb[0].mxu0 %v1247
    %v1362 = vpop.f32.mrb[0].mxu0
    %v1363 = vadd.f32 %v1278, %v1362
    %v1364 = vpop.f32.mrb[0].mxu0
    %v1365 = vpop.f32.mrb[0].mxu0
    %v1366 = vadd.f32 %v1278, %v1365
    %v1367 = vpop.f32.mrb[0].mxu0
    %1368 = vmatprep.mubr.bf16.mxu0 0
    %1369 = vmatmul.mubr.bf16.gmra.mrb[0].mxu0 %v1248
    %v1370 = vpop.f32.mrb[0].mxu0
    %v1371 = vadd.f32 %v1278, %v1370
    %v1372 = vpop.f32.mrb[0].mxu0
    %v1373 = vpop.f32.mrb[0].mxu0
    %v1374 = vadd.f32 %v1278, %v1373
    %v1375 = vpop.f32.mrb[0].mxu0
    %1376 = vmatprep.mubr.bf16.mxu0 0
    %1377 = vmatmul.mubr.bf16.gmra.mrb[0].mxu0 %v1249
    %v1378 = vpop.f32.mrb[0].mxu0
    %v1379 = vadd.f32 %v1278, %v1378
    %v1380 = vpop.f32.mrb[0].mxu0
    %v1381 = vpop.f32.mrb[0].mxu0
    %v1382 = vadd.f32 %v1278, %v1381
    %v1383 = vpop.f32.mrb[0].mxu0
    %1384 = vmatprep.mubr.bf16.mxu0 0
    %1385 = vmatmul.mubr.bf16.gmra.mrb[0].mxu0 %v1250
    %v1386 = vpop.f32.mrb[0].mxu0
    %v1387 = vadd.f32 %v1278, %v1386
    %v1388 = vpop.f32.mrb[0].mxu0
    %v1389 = vpop.f32.mrb[0].mxu0
    %v1390 = vadd.f32 %v1278, %v1389
    %v1391 = vpop.f32.mrb[0].mxu0
    %1392 = vmatprep.mubr.bf16.mxu0 0
    %1393 = vmatmul.mubr.bf16.gmra.mrb[0].mxu0 %v1251
    %v1394 = vpop.f32.mrb[0].mxu0
    %v1395 = vadd.f32 %v1278, %v1394
    %v1396 = vpop.f32.mrb[0].mxu0
    %v1397 = vpop.f32.mrb[0].mxu0
    %v1398 = vadd.f32 %v1278, %v1397
    %v1399 = vpop.f32.mrb[0].mxu0
    %1400 = vmatprep.mubr.bf16.mxu0 0
    %1401 = vmatmul.mubr.bf16.gmra.mrb[0].mxu0 %v1252
    %v1402 = vpop.f32.mrb[0].mxu0
    %v1403 = vadd.f32 %v1278, %v1402
    %v1404 = vpop.f32.mrb[0].mxu0
    %v1405 = vpop.f32.mrb[0].mxu0
    %v1406 = vadd.f32 %v1278, %v1405
    %v1407 = vpop.f32.mrb[0].mxu0
    %1408 = vmatprep.mubr.bf16.mxu0 0
    %1409 = vmatmul.mubr.bf16.gmra.mrb[0].mxu0 %v1253
    %v1410 = vpop.f32.mrb[0].mxu0
    %v1411 = vadd.f32 %v1278, %v1410
    %v1412 = vpop.f32.mrb[0].mxu0
    %v1413 = vpop.f32.mrb[0].mxu0
    %v1414 = vadd.f32 %v1278, %v1413
    %v1415 = vpop.f32.mrb[0].mxu0
    %1416 = vmatprep.mubr.bf16.mxu0 0
    %1417 = vmatmul.mubr.bf16.gmra.mrb[0].mxu0 %v1254
    %v1418 = vpop.f32.mrb[0].mxu0
    %v1419 = vadd.f32 %v1278, %v1418
    %v1420 = vpop.f32.mrb[0].mxu0
    %v1421 = vpop.f32.mrb[0].mxu0
    %v1422 = vadd.f32 %v1278, %v1421
    %v1423 = vpop.f32.mrb[0].mxu0
    %1424 = vdwg.mxu0
    %1425 = vst [vmem:[#allocation2] sm:$0xff] %v1363
    %1426 = vst [vmem:[#allocation2 + $0x8] sm:$0xff] %v1366
    %1427 = vst [vmem:[#allocation2 + $0x10] sm:$0xff] %v1371
    %1428 = vst [vmem:[#allocation2 + $0x18] sm:$0xff] %v1374
    %1429 = vst [vmem:[#allocation2 + $0x20] sm:$0xff] %v1379
    %1430 = vst [vmem:[#allocation2 + $0x28] sm:$0xff] %v1382
    %1431 = vst [vmem:[#allocation2 + $0x30] sm:$0xff] %v1387
    %1432 = vst [vmem:[#allocation2 + $0x38] sm:$0xff] %v1390
    %1433 = vst [vmem:[#allocation2 + $0x40] sm:$0xff] %v1395
    %1434 = vst [vmem:[#allocation2 + $0x48] sm:$0xff] %v1398
    %1435 = vst [vmem:[#allocation2 + $0x50] sm:$0xff] %v1403
    %1436 = vst [vmem:[#allocation2 + $0x58] sm:$0xff] %v1406
    %1437 = vst [vmem:[#allocation2 + $0x60] sm:$0xff] %v1411
    %1438 = vst [vmem:[#allocation2 + $0x68] sm:$0xff] %v1414
    %1439 = vst [vmem:[#allocation2 + $0x70] sm:$0xff] %v1419
    %1440 = vst [vmem:[#allocation2 + $0x78] sm:$0xff] %v1422
    %s1441 = scalar_lea.vmem [#allocation9], 64
    %v1442 = vld [vmem:[%s1441] sm:$0xf]
    %v1443 = vld [vmem:[%s1441 + $0x4] sm:$0xf]
    %v1444 = vld [vmem:[%s1441 + $0x8] sm:$0xf]
    %v1445 = vld [vmem:[%s1441 + $0xc] sm:$0xf]
    %v1446 = vld [vmem:[%s1441 + $0x10] sm:$0xf]
    %v1447 = vld [vmem:[%s1441 + $0x14] sm:$0xf]
    %v1448 = vld [vmem:[%s1441 + $0x18] sm:$0xf]
    %v1449 = vld [vmem:[%s1441 + $0x1c] sm:$0xf]
    %v1450 = vld [vmem:[%s1441 + $0x20] sm:$0xf]
    %v1451 = vld [vmem:[%s1441 + $0x24] sm:$0xf]
    %v1452 = vld [vmem:[%s1441 + $0x28] sm:$0xf]
    %v1453 = vld [vmem:[%s1441 + $0x2c] sm:$0xf]
    %v1454 = vld [vmem:[%s1441 + $0x30] sm:$0xf]
    %v1455 = vld [vmem:[%s1441 + $0x34] sm:$0xf]
    %v1456 = vld [vmem:[%s1441 + $0x38] sm:$0xf]
    %v1457 = vld [vmem:[%s1441 + $0x3c] sm:$0xf]
    %v1458 = vld [vmem:[#allocation2] sm:$0xff]
    %v1459 = vld [vmem:[#allocation2 + $0x8] sm:$0xff]
    %v1476 = vunpack.c.l.b16 %v1442
    %v1477 = vunpack.c.l.b16 %v1443
    %v1478 = vunpack.c.l.b16 %v1444
    %v1479 = vunpack.c.l.b16 %v1445
    %v1480 = vunpack.c.l.b16 %v1446
    %v1481 = vunpack.c.l.b16 %v1447
    %v1482 = vunpack.c.l.b16 %v1448
    %v1483 = vunpack.c.l.b16 %v1449
    %v1484 = vunpack.c.l.b16 %v1450
    %v1485 = vunpack.c.l.b16 %v1451
    %v1486 = vunpack.c.l.b16 %v1452
    %v1487 = vunpack.c.l.b16 %v1453
    %v1488 = vunpack.c.l.b16 %v1454
    %v1489 = vunpack.c.l.b16 %v1455
    %v1490 = vunpack.c.l.b16 %v1456
    %v1491 = vunpack.c.l.b16 %v1457
    %v1492 = vpack.c.b16 %v1477, %v1476
    %v1493 = vpack.c.b16 %v1479, %v1478
    %v1494 = vpack.c.b16 %v1481, %v1480
    %v1495 = vpack.c.b16 %v1483, %v1482
    %v1496 = vpack.c.b16 %v1485, %v1484
    %v1497 = vpack.c.b16 %v1487, %v1486
    %v1498 = vpack.c.b16 %v1489, %v1488
    %v1499 = vpack.c.b16 %v1491, %v1490
    %1508 = vmatprep.subr.bf16.mxu0 0
    %1509 = vmatpush1.bf16.msra.mxu0 %v1492
    %1510 = vmatprep.subr.bf16.mxu0 0
    %1511 = vmatpush1.bf16.msra.mxu0 %v1493
    %1512 = vmatprep.subr.bf16.mxu0 0
    %1513 = vmatpush1.bf16.msra.mxu0 %v1494
    %1514 = vmatprep.subr.bf16.mxu0 0
    %1515 = vmatpush1.bf16.msra.mxu0 %v1495
    %1516 = vmatprep.subr.bf16.mxu0 0
    %1517 = vmatpush1.bf16.msra.mxu0 %v1496
    %1518 = vmatprep.subr.bf16.mxu0 0
    %1519 = vmatpush1.bf16.msra.mxu0 %v1497
    %1520 = vmatprep.subr.bf16.mxu0 0
    %1521 = vmatpush1.bf16.msra.mxu0 %v1498
    %1522 = vmatprep.subr.bf16.mxu0 0
    %1523 = vmatpush1.bf16.msra.mxu0 %v1499
    %1524 = vmatprep.subr.bf16.mxu0 0
    %1525 = vmatpush1.bf16.msra.mxu0 0
    %1526 = vmatprep.subr.bf16.mxu0 0
    %1527 = vmatpush1.bf16.msra.mxu0 0
    %1528 = vmatprep.subr.bf16.mxu0 0
    %1529 = vmatpush1.bf16.msra.mxu0 0
    %1530 = vmatprep.subr.bf16.mxu0 0
    %1531 = vmatpush1.bf16.msra.mxu0 0
    %1532 = vmatprep.subr.bf16.mxu0 0
    %1533 = vmatpush1.bf16.msra.mxu0 0
    %1534 = vmatprep.subr.bf16.mxu0 0
    %1535 = vmatpush1.bf16.msra.mxu0 0
    %1536 = vmatprep.subr.bf16.mxu0 0
    %1537 = vmatpush1.bf16.msra.mxu0 0
    %1538 = vmatprep.subr.bf16.mxu0 0
    %1539 = vmatpush1.bf16.msra.mxu0 0
    %1540 = vmatprep.mubr.bf16.mxu0 0
    %1541 = vmatmul.mubr.bf16.gmra.mrb[0].mxu0 0
    %v1542 = vpop.f32.mrb[0].mxu0
    %v1543 = vadd.f32 0.0, %v1542
    %v1544 = vpop.f32.mrb[0].mxu0
    %v1545 = vpop.f32.mrb[0].mxu0
    %v1546 = vadd.f32 0.0, %v1545
    %v1547 = vpop.f32.mrb[0].mxu0
    %1548 = vdwg.mxu0
    %v1549 = vadd.f32 %v1458, %v1543
    %v1550 = vadd.f32 %v1459, %v1546
    %v1551 = vxor.u32 %v1549, 2147483648
    %v1552 = vxor.u32 %v1550, 2147483648
    %v1553 = vmul.f32 %v1551, 1.442695
    %v1554 = vpow.pop %v1553
    %v1555 = vmul.f32 %v1552, 1.442695
    %v1556 = vpow.pop %v1555
    %v1557 = vadd.f32 %v1554, 1.0
    %v1558 = vadd.f32 %v1556, 1.0
    %v1559 = vrcp.pop %v1557
    %v1560 = vmul.f32 1.0, %v1559
    %v1561 = vrcp.pop %v1558
    %v1562 = vmul.f32 1.0, %v1561
    %v1563 = vtanh.pop %v1549
    %v1564 = vtanh.pop %v1550
    %v1565 = vmul.f32 %v1560, 0.0
    %v1566 = vmul.f32 %v1562, 0.0
    %1569 = vrot.lane.b32.xlu0 %v1563, 64
    %v1570 = vpop.permute.xlu0 %1569
    %1571 = vrot.lane.b32.xlu0 %v1564, 64
    %v1572 = vpop.permute.xlu0 %1571
    %v1575 = vmul.f32 %v1560, %v1570
    %v1576 = vmul.f32 %v1562, %v1572
    %1579 = vrot.lane.b32.xlu0 %v1575, 32
    %v1580 = vpop.permute.xlu0 %1579
    %1581 = vrot.lane.b32.xlu0 %v1576, 32
    %v1582 = vpop.permute.xlu0 %1581
    %v1585 = vadd.f32 %v1565, %v1580
    %v1586 = vadd.f32 %v1566, %v1582
    %v1587 = vtanh.pop %v1585
    %v1588 = vtanh.pop %v1586
    %1591 = vrot.lane.b32.xlu0 %v1587, 64
    %v1592 = vpop.permute.xlu0 %1591
    %1593 = vrot.lane.b32.xlu0 %v1588, 64
    %v1594 = vpop.permute.xlu0 %1593
    %v1597 = vmul.f32 %v1560, %v1592
    %v1598 = vmul.f32 %v1562, %v1594
    %1601 = vrot.lane.b32.xlu0 %v1597, 32
    %v1602 = vpop.permute.xlu0 %1601
    %1603 = vrot.lane.b32.xlu0 %v1598, 32
    %v1604 = vpop.permute.xlu0 %1603
    %v1607 = vsel %vm493, %v1602, 0.0
    %v1608 = vsel %vm493, %v1604, 0.0
    %v1609 = vld [vmem:[%s498] sm:$0xff]
    %v1610 = vld [vmem:[%s498 + $0x8] sm:$0xff]
    %v1611 = vpack.c.bf16 %v1608, %v1607
    %1612 = vmatprep.subr.bf16.mxu0 0
    %1613 = vmatpush1.bf16.msra.mxu0 %v1492
    %1614 = vmatprep.subr.bf16.mxu0 0
    %1615 = vmatpush1.bf16.msra.mxu0 %v1493
    %1616 = vmatprep.subr.bf16.mxu0 0
    %1617 = vmatpush1.bf16.msra.mxu0 %v1494
    %1618 = vmatprep.subr.bf16.mxu0 0
    %1619 = vmatpush1.bf16.msra.mxu0 %v1495
    %1620 = vmatprep.subr.bf16.mxu0 0
    %1621 = vmatpush1.bf16.msra.mxu0 %v1496
    %1622 = vmatprep.subr.bf16.mxu0 0
    %1623 = vmatpush1.bf16.msra.mxu0 %v1497
    %1624 = vmatprep.subr.bf16.mxu0 0
    %1625 = vmatpush1.bf16.msra.mxu0 %v1498
    %1626 = vmatprep.subr.bf16.mxu0 0
    %1627 = vmatpush1.bf16.msra.mxu0 %v1499
    %1628 = vmatprep.subr.bf16.mxu0 0
    %1629 = vmatpush1.bf16.msra.mxu0 0
    %1630 = vmatprep.subr.bf16.mxu0 0
    %1631 = vmatpush1.bf16.msra.mxu0 0
    %1632 = vmatprep.subr.bf16.mxu0 0
    %1633 = vmatpush1.bf16.msra.mxu0 0
    %1634 = vmatprep.subr.bf16.mxu0 0
    %1635 = vmatpush1.bf16.msra.mxu0 0
    %1636 = vmatprep.subr.bf16.mxu0 0
    %1637 = vmatpush1.bf16.msra.mxu0 0
    %1638 = vmatprep.subr.bf16.mxu0 0
    %1639 = vmatpush1.bf16.msra.mxu0 0
    %1640 = vmatprep.subr.bf16.mxu0 0
    %1641 = vmatpush1.bf16.msra.mxu0 0
    %1642 = vmatprep.subr.bf16.mxu0 0
    %1643 = vmatpush1.bf16.msra.mxu0 0
    %1644 = vmatprep.mubr.bf16.mxu0 0
    %1645 = vmatmul.mubr.bf16.gmra.mrb[0].mxu0 %v1611
    %v1646 = vpop.f32.mrb[0].mxu0
    %v1647 = vadd.f32 0.0, %v1646
    %v1648 = vpop.f32.mrb[0].mxu0
    %v1649 = vpop.f32.mrb[0].mxu0
    %v1650 = vadd.f32 0.0, %v1649
    %v1651 = vpop.f32.mrb[0].mxu0
    %1652 = vdwg.mxu0
    %v1653 = vadd.f32 %v1609, %v1647
    %v1654 = vadd.f32 %v1610, %v1650
    %v1655 = vxor.u32 %v1653, 2147483648
    %v1656 = vxor.u32 %v1654, 2147483648
    %v1657 = vmul.f32 %v1655, 1.442695
    %v1658 = vpow.pop %v1657
    %v1659 = vmul.f32 %v1656, 1.442695
    %v1660 = vpow.pop %v1659
    %v1661 = vadd.f32 %v1658, 1.0
    %v1662 = vadd.f32 %v1660, 1.0
    %v1663 = vrcp.pop %v1661
    %v1664 = vmul.f32 1.0, %v1663
    %v1665 = vrcp.pop %v1662
    %v1666 = vmul.f32 1.0, %v1665
    %v1667 = vtanh.pop %v1653
    %v1668 = vtanh.pop %v1654
    %v1669 = vmul.f32 %v1664, %v1585
    %v1670 = vmul.f32 %v1666, %v1586
    %1673 = vrot.lane.b32.xlu0 %v1667, 64
    %v1674 = vpop.permute.xlu0 %1673
    %1675 = vrot.lane.b32.xlu0 %v1668, 64
    %v1676 = vpop.permute.xlu0 %1675
    %v1679 = vmul.f32 %v1664, %v1674
    %v1680 = vmul.f32 %v1666, %v1676
    %1683 = vrot.lane.b32.xlu0 %v1679, 32
    %v1684 = vpop.permute.xlu0 %1683
    %1685 = vrot.lane.b32.xlu0 %v1680, 32
    %v1686 = vpop.permute.xlu0 %1685
    %v1689 = vadd.f32 %v1669, %v1684
    %v1690 = vadd.f32 %v1670, %v1686
    %v1691 = vtanh.pop %v1689
    %v1692 = vtanh.pop %v1690
    %1695 = vrot.lane.b32.xlu0 %v1691, 64
    %v1696 = vpop.permute.xlu0 %1695
    %1697 = vrot.lane.b32.xlu0 %v1692, 64
    %v1698 = vpop.permute.xlu0 %1697
    %v1701 = vmul.f32 %v1664, %v1696
    %v1702 = vmul.f32 %v1666, %v1698
    %1705 = vrot.lane.b32.xlu0 %v1701, 32
    %v1706 = vpop.permute.xlu0 %1705
    %1707 = vrot.lane.b32.xlu0 %v1702, 32
    %v1708 = vpop.permute.xlu0 %1707
    %v1711 = vsel %vm493, %v1706, 0.0
    %v1712 = vsel %vm493, %v1708, 0.0
    %v1713 = vld [vmem:[%s605] sm:$0xff]
    %v1714 = vld [vmem:[%s605 + $0x8] sm:$0xff]
    %v1715 = vpack.c.bf16 %v1712, %v1711
    %1716 = vmatprep.subr.bf16.mxu0 0
    %1717 = vmatpush1.bf16.msra.mxu0 %v1492
    %1718 = vmatprep.subr.bf16.mxu0 0
    %1719 = vmatpush1.bf16.msra.mxu0 %v1493
    %1720 = vmatprep.subr.bf16.mxu0 0
    %1721 = vmatpush1.bf16.msra.mxu0 %v1494
    %1722 = vmatprep.subr.bf16.mxu0 0
    %1723 = vmatpush1.bf16.msra.mxu0 %v1495
    %1724 = vmatprep.subr.bf16.mxu0 0
    %1725 = vmatpush1.bf16.msra.mxu0 %v1496
    %1726 = vmatprep.subr.bf16.mxu0 0
    %1727 = vmatpush1.bf16.msra.mxu0 %v1497
    %1728 = vmatprep.subr.bf16.mxu0 0
    %1729 = vmatpush1.bf16.msra.mxu0 %v1498
    %1730 = vmatprep.subr.bf16.mxu0 0
    %1731 = vmatpush1.bf16.msra.mxu0 %v1499
    %1732 = vmatprep.subr.bf16.mxu0 0
    %1733 = vmatpush1.bf16.msra.mxu0 0
    %1734 = vmatprep.subr.bf16.mxu0 0
    %1735 = vmatpush1.bf16.msra.mxu0 0
    %1736 = vmatprep.subr.bf16.mxu0 0
    %1737 = vmatpush1.bf16.msra.mxu0 0
    %1738 = vmatprep.subr.bf16.mxu0 0
    %1739 = vmatpush1.bf16.msra.mxu0 0
    %1740 = vmatprep.subr.bf16.mxu0 0
    %1741 = vmatpush1.bf16.msra.mxu0 0
    %1742 = vmatprep.subr.bf16.mxu0 0
    %1743 = vmatpush1.bf16.msra.mxu0 0
    %1744 = vmatprep.subr.bf16.mxu0 0
    %1745 = vmatpush1.bf16.msra.mxu0 0
    %1746 = vmatprep.subr.bf16.mxu0 0
    %1747 = vmatpush1.bf16.msra.mxu0 0
    %1748 = vmatprep.mubr.bf16.mxu0 0
    %1749 = vmatmul.mubr.bf16.gmra.mrb[0].mxu0 %v1715
    %v1750 = vpop.f32.mrb[0].mxu0
    %v1751 = vadd.f32 0.0, %v1750
    %v1752 = vpop.f32.mrb[0].mxu0
    %v1753 = vpop.f32.mrb[0].mxu0
    %v1754 = vadd.f32 0.0, %v1753
    %v1755 = vpop.f32.mrb[0].mxu0
    %1756 = vdwg.mxu0
    %v1757 = vadd.f32 %v1713, %v1751
    %v1758 = vadd.f32 %v1714, %v1754
    %v1759 = vxor.u32 %v1757, 2147483648
    %v1760 = vxor.u32 %v1758, 2147483648
    %v1761 = vmul.f32 %v1759, 1.442695
    %v1762 = vpow.pop %v1761
    %v1763 = vmul.f32 %v1760, 1.442695
    %v1764 = vpow.pop %v1763
    %v1765 = vadd.f32 %v1762, 1.0
    %v1766 = vadd.f32 %v1764, 1.0
    %v1767 = vrcp.pop %v1765
    %v1768 = vmul.f32 1.0, %v1767
    %v1769 = vrcp.pop %v1766
    %v1770 = vmul.f32 1.0, %v1769
    %v1771 = vtanh.pop %v1757
    %v1772 = vtanh.pop %v1758
    %v1773 = vmul.f32 %v1768, %v1689
    %v1774 = vmul.f32 %v1770, %v1690
    %1777 = vrot.lane.b32.xlu0 %v1771, 64
    %v1778 = vpop.permute.xlu0 %1777
    %1779 = vrot.lane.b32.xlu0 %v1772, 64
    %v1780 = vpop.permute.xlu0 %1779
    %v1783 = vmul.f32 %v1768, %v1778
    %v1784 = vmul.f32 %v1770, %v1780
    %1787 = vrot.lane.b32.xlu0 %v1783, 32
    %v1788 = vpop.permute.xlu0 %1787
    %1789 = vrot.lane.b32.xlu0 %v1784, 32
    %v1790 = vpop.permute.xlu0 %1789
    %v1793 = vadd.f32 %v1773, %v1788
    %v1794 = vadd.f32 %v1774, %v1790
    %v1795 = vtanh.pop %v1793
    %v1796 = vtanh.pop %v1794
    %1799 = vrot.lane.b32.xlu0 %v1795, 64
    %v1800 = vpop.permute.xlu0 %1799
    %1801 = vrot.lane.b32.xlu0 %v1796, 64
    %v1802 = vpop.permute.xlu0 %1801
    %v1805 = vmul.f32 %v1768, %v1800
    %v1806 = vmul.f32 %v1770, %v1802
    %1809 = vrot.lane.b32.xlu0 %v1805, 32
    %v1810 = vpop.permute.xlu0 %1809
    %1811 = vrot.lane.b32.xlu0 %v1806, 32
    %v1812 = vpop.permute.xlu0 %1811
    %v1815 = vsel %vm493, %v1810, 0.0
    %v1816 = vsel %vm493, %v1812, 0.0
    %v1817 = vld [vmem:[%s712] sm:$0xff]
    %v1818 = vld [vmem:[%s712 + $0x8] sm:$0xff]
    %v1819 = vpack.c.bf16 %v1816, %v1815
    %1820 = vmatprep.subr.bf16.mxu0 0
    %1821 = vmatpush1.bf16.msra.mxu0 %v1492
    %1822 = vmatprep.subr.bf16.mxu0 0
    %1823 = vmatpush1.bf16.msra.mxu0 %v1493
    %1824 = vmatprep.subr.bf16.mxu0 0
    %1825 = vmatpush1.bf16.msra.mxu0 %v1494
    %1826 = vmatprep.subr.bf16.mxu0 0
    %1827 = vmatpush1.bf16.msra.mxu0 %v1495
    %1828 = vmatprep.subr.bf16.mxu0 0
    %1829 = vmatpush1.bf16.msra.mxu0 %v1496
    %1830 = vmatprep.subr.bf16.mxu0 0
    %1831 = vmatpush1.bf16.msra.mxu0 %v1497
    %1832 = vmatprep.subr.bf16.mxu0 0
    %1833 = vmatpush1.bf16.msra.mxu0 %v1498
    %1834 = vmatprep.subr.bf16.mxu0 0
    %1835 = vmatpush1.bf16.msra.mxu0 %v1499
    %1836 = vmatprep.subr.bf16.mxu0 0
    %1837 = vmatpush1.bf16.msra.mxu0 0
    %1838 = vmatprep.subr.bf16.mxu0 0
    %1839 = vmatpush1.bf16.msra.mxu0 0
    %1840 = vmatprep.subr.bf16.mxu0 0
    %1841 = vmatpush1.bf16.msra.mxu0 0
    %1842 = vmatprep.subr.bf16.mxu0 0
    %1843 = vmatpush1.bf16.msra.mxu0 0
    %1844 = vmatprep.subr.bf16.mxu0 0
    %1845 = vmatpush1.bf16.msra.mxu0 0
    %1846 = vmatprep.subr.bf16.mxu0 0
    %1847 = vmatpush1.bf16.msra.mxu0 0
    %1848 = vmatprep.subr.bf16.mxu0 0
    %1849 = vmatpush1.bf16.msra.mxu0 0
    %1850 = vmatprep.subr.bf16.mxu0 0
    %1851 = vmatpush1.bf16.msra.mxu0 0
    %1852 = vmatprep.mubr.bf16.mxu0 0
    %1853 = vmatmul.mubr.bf16.gmra.mrb[0].mxu0 %v1819
    %v1854 = vpop.f32.mrb[0].mxu0
    %v1855 = vadd.f32 0.0, %v1854
    %v1856 = vpop.f32.mrb[0].mxu0
    %v1857 = vpop.f32.mrb[0].mxu0
    %v1858 = vadd.f32 0.0, %v1857
    %v1859 = vpop.f32.mrb[0].mxu0
    %1860 = vdwg.mxu0
    %v1861 = vadd.f32 %v1817, %v1855
    %v1862 = vadd.f32 %v1818, %v1858
    %v1863 = vxor.u32 %v1861, 2147483648
    %v1864 = vxor.u32 %v1862, 2147483648
    %v1865 = vmul.f32 %v1863, 1.442695
    %v1866 = vpow.pop %v1865
    %v1867 = vmul.f32 %v1864, 1.442695
    %v1868 = vpow.pop %v1867
    %v1869 = vadd.f32 %v1866, 1.0
    %v1870 = vadd.f32 %v1868, 1.0
    %v1871 = vrcp.pop %v1869
    %v1872 = vmul.f32 1.0, %v1871
    %v1873 = vrcp.pop %v1870
    %v1874 = vmul.f32 1.0, %v1873
    %v1875 = vtanh.pop %v1861
    %v1876 = vtanh.pop %v1862
    %v1877 = vmul.f32 %v1872, %v1793
    %v1878 = vmul.f32 %v1874, %v1794
    %1881 = vrot.lane.b32.xlu0 %v1875, 64
    %v1882 = vpop.permute.xlu0 %1881
    %1883 = vrot.lane.b32.xlu0 %v1876, 64
    %v1884 = vpop.permute.xlu0 %1883
    %v1887 = vmul.f32 %v1872, %v1882
    %v1888 = vmul.f32 %v1874, %v1884
    %1891 = vrot.lane.b32.xlu0 %v1887, 32
    %v1892 = vpop.permute.xlu0 %1891
    %1893 = vrot.lane.b32.xlu0 %v1888, 32
    %v1894 = vpop.permute.xlu0 %1893
    %v1897 = vadd.f32 %v1877, %v1892
    %v1898 = vadd.f32 %v1878, %v1894
    %v1899 = vtanh.pop %v1897
    %v1900 = vtanh.pop %v1898
    %1903 = vrot.lane.b32.xlu0 %v1899, 64
    %v1904 = vpop.permute.xlu0 %1903
    %1905 = vrot.lane.b32.xlu0 %v1900, 64
    %v1906 = vpop.permute.xlu0 %1905
    %v1909 = vmul.f32 %v1872, %v1904
    %v1910 = vmul.f32 %v1874, %v1906
    %1913 = vrot.lane.b32.xlu0 %v1909, 32
    %v1914 = vpop.permute.xlu0 %1913
    %1915 = vrot.lane.b32.xlu0 %v1910, 32
    %v1916 = vpop.permute.xlu0 %1915
    %v1919 = vsel %vm493, %v1914, 0.0
    %v1920 = vsel %vm493, %v1916, 0.0
    %v1921 = vld [vmem:[%s819] sm:$0xff]
    %v1922 = vld [vmem:[%s819 + $0x8] sm:$0xff]
    %v1923 = vpack.c.bf16 %v1920, %v1919
    %1924 = vmatprep.subr.bf16.mxu0 0
    %1925 = vmatpush1.bf16.msra.mxu0 %v1492
    %1926 = vmatprep.subr.bf16.mxu0 0
    %1927 = vmatpush1.bf16.msra.mxu0 %v1493
    %1928 = vmatprep.subr.bf16.mxu0 0
    %1929 = vmatpush1.bf16.msra.mxu0 %v1494
    %1930 = vmatprep.subr.bf16.mxu0 0
    %1931 = vmatpush1.bf16.msra.mxu0 %v1495
    %1932 = vmatprep.subr.bf16.mxu0 0
    %1933 = vmatpush1.bf16.msra.mxu0 %v1496
    %1934 = vmatprep.subr.bf16.mxu0 0
    %1935 = vmatpush1.bf16.msra.mxu0 %v1497
    %1936 = vmatprep.subr.bf16.mxu0 0
    %1937 = vmatpush1.bf16.msra.mxu0 %v1498
    %1938 = vmatprep.subr.bf16.mxu0 0
    %1939 = vmatpush1.bf16.msra.mxu0 %v1499
    %1940 = vmatprep.subr.bf16.mxu0 0
    %1941 = vmatpush1.bf16.msra.mxu0 0
    %1942 = vmatprep.subr.bf16.mxu0 0
    %1943 = vmatpush1.bf16.msra.mxu0 0
    %1944 = vmatprep.subr.bf16.mxu0 0
    %1945 = vmatpush1.bf16.msra.mxu0 0
    %1946 = vmatprep.subr.bf16.mxu0 0
    %1947 = vmatpush1.bf16.msra.mxu0 0
    %1948 = vmatprep.subr.bf16.mxu0 0
    %1949 = vmatpush1.bf16.msra.mxu0 0
    %1950 = vmatprep.subr.bf16.mxu0 0
    %1951 = vmatpush1.bf16.msra.mxu0 0
    %1952 = vmatprep.subr.bf16.mxu0 0
    %1953 = vmatpush1.bf16.msra.mxu0 0
    %1954 = vmatprep.subr.bf16.mxu0 0
    %1955 = vmatpush1.bf16.msra.mxu0 0
    %1956 = vmatprep.mubr.bf16.mxu0 0
    %1957 = vmatmul.mubr.bf16.gmra.mrb[0].mxu0 %v1923
    %v1958 = vpop.f32.mrb[0].mxu0
    %v1959 = vadd.f32 0.0, %v1958
    %v1960 = vpop.f32.mrb[0].mxu0
    %v1961 = vpop.f32.mrb[0].mxu0
    %v1962 = vadd.f32 0.0, %v1961
    %v1963 = vpop.f32.mrb[0].mxu0
    %1964 = vdwg.mxu0
    %v1965 = vadd.f32 %v1921, %v1959
    %v1966 = vadd.f32 %v1922, %v1962
    %v1967 = vxor.u32 %v1965, 2147483648
    %v1968 = vxor.u32 %v1966, 2147483648
    %v1969 = vmul.f32 %v1967, 1.442695
    %v1970 = vpow.pop %v1969
    %v1971 = vmul.f32 %v1968, 1.442695
    %v1972 = vpow.pop %v1971
    %v1973 = vadd.f32 %v1970, 1.0
    %v1974 = vadd.f32 %v1972, 1.0
    %v1975 = vrcp.pop %v1973
    %v1976 = vmul.f32 1.0, %v1975
    %v1977 = vrcp.pop %v1974
    %v1978 = vmul.f32 1.0, %v1977
    %v1979 = vtanh.pop %v1965
    %v1980 = vtanh.pop %v1966
    %v1981 = vmul.f32 %v1976, %v1897
    %v1982 = vmul.f32 %v1978, %v1898
    %1985 = vrot.lane.b32.xlu0 %v1979, 64
    %v1986 = vpop.permute.xlu0 %1985
    %1987 = vrot.lane.b32.xlu0 %v1980, 64
    %v1988 = vpop.permute.xlu0 %1987
    %v1991 = vmul.f32 %v1976, %v1986
    %v1992 = vmul.f32 %v1978, %v1988
    %1995 = vrot.lane.b32.xlu0 %v1991, 32
    %v1996 = vpop.permute.xlu0 %1995
    %1997 = vrot.lane.b32.xlu0 %v1992, 32
    %v1998 = vpop.permute.xlu0 %1997
    %v2001 = vadd.f32 %v1981, %v1996
    %v2002 = vadd.f32 %v1982, %v1998
    %v2003 = vtanh.pop %v2001
    %v2004 = vtanh.pop %v2002
    %2007 = vrot.lane.b32.xlu0 %v2003, 64
    %v2008 = vpop.permute.xlu0 %2007
    %2009 = vrot.lane.b32.xlu0 %v2004, 64
    %v2010 = vpop.permute.xlu0 %2009
    %v2013 = vmul.f32 %v1976, %v2008
    %v2014 = vmul.f32 %v1978, %v2010
    %2017 = vrot.lane.b32.xlu0 %v2013, 32
    %v2018 = vpop.permute.xlu0 %2017
    %2019 = vrot.lane.b32.xlu0 %v2014, 32
    %v2020 = vpop.permute.xlu0 %2019
    %v2023 = vsel %vm493, %v2018, 0.0
    %v2024 = vsel %vm493, %v2020, 0.0
    %v2025 = vld [vmem:[%s926] sm:$0xff]
    %v2026 = vld [vmem:[%s926 + $0x8] sm:$0xff]
    %v2027 = vpack.c.bf16 %v2024, %v2023
    %2028 = vmatprep.subr.bf16.mxu0 0
    %2029 = vmatpush1.bf16.msra.mxu0 %v1492
    %2030 = vmatprep.subr.bf16.mxu0 0
    %2031 = vmatpush1.bf16.msra.mxu0 %v1493
    %2032 = vmatprep.subr.bf16.mxu0 0
    %2033 = vmatpush1.bf16.msra.mxu0 %v1494
    %2034 = vmatprep.subr.bf16.mxu0 0
    %2035 = vmatpush1.bf16.msra.mxu0 %v1495
    %2036 = vmatprep.subr.bf16.mxu0 0
    %2037 = vmatpush1.bf16.msra.mxu0 %v1496
    %2038 = vmatprep.subr.bf16.mxu0 0
    %2039 = vmatpush1.bf16.msra.mxu0 %v1497
    %2040 = vmatprep.subr.bf16.mxu0 0
    %2041 = vmatpush1.bf16.msra.mxu0 %v1498
    %2042 = vmatprep.subr.bf16.mxu0 0
    %2043 = vmatpush1.bf16.msra.mxu0 %v1499
    %2044 = vmatprep.subr.bf16.mxu0 0
    %2045 = vmatpush1.bf16.msra.mxu0 0
    %2046 = vmatprep.subr.bf16.mxu0 0
    %2047 = vmatpush1.bf16.msra.mxu0 0
    %2048 = vmatprep.subr.bf16.mxu0 0
    %2049 = vmatpush1.bf16.msra.mxu0 0
    %2050 = vmatprep.subr.bf16.mxu0 0
    %2051 = vmatpush1.bf16.msra.mxu0 0
    %2052 = vmatprep.subr.bf16.mxu0 0
    %2053 = vmatpush1.bf16.msra.mxu0 0
    %2054 = vmatprep.subr.bf16.mxu0 0
    %2055 = vmatpush1.bf16.msra.mxu0 0
    %2056 = vmatprep.subr.bf16.mxu0 0
    %2057 = vmatpush1.bf16.msra.mxu0 0
    %2058 = vmatprep.subr.bf16.mxu0 0
    %2059 = vmatpush1.bf16.msra.mxu0 0
    %2060 = vmatprep.mubr.bf16.mxu0 0
    %2061 = vmatmul.mubr.bf16.gmra.mrb[0].mxu0 %v2027
    %v2062 = vpop.f32.mrb[0].mxu0
    %v2063 = vadd.f32 0.0, %v2062
    %v2064 = vpop.f32.mrb[0].mxu0
    %v2065 = vpop.f32.mrb[0].mxu0
    %v2066 = vadd.f32 0.0, %v2065
    %v2067 = vpop.f32.mrb[0].mxu0
    %2068 = vdwg.mxu0
    %v2069 = vadd.f32 %v2025, %v2063
    %v2070 = vadd.f32 %v2026, %v2066
    %v2071 = vxor.u32 %v2069, 2147483648
    %v2072 = vxor.u32 %v2070, 2147483648
    %v2073 = vmul.f32 %v2071, 1.442695
    %v2074 = vpow.pop %v2073
    %v2075 = vmul.f32 %v2072, 1.442695
    %v2076 = vpow.pop %v2075
    %v2077 = vadd.f32 %v2074, 1.0
    %v2078 = vadd.f32 %v2076, 1.0
    %v2079 = vrcp.pop %v2077
    %v2080 = vmul.f32 1.0, %v2079
    %v2081 = vrcp.pop %v2078
    %v2082 = vmul.f32 1.0, %v2081
    %v2083 = vtanh.pop %v2069
    %v2084 = vtanh.pop %v2070
    %v2085 = vmul.f32 %v2080, %v2001
    %v2086 = vmul.f32 %v2082, %v2002
    %2089 = vrot.lane.b32.xlu0 %v2083, 64
    %v2090 = vpop.permute.xlu0 %2089
    %2091 = vrot.lane.b32.xlu0 %v2084, 64
    %v2092 = vpop.permute.xlu0 %2091
    %v2095 = vmul.f32 %v2080, %v2090
    %v2096 = vmul.f32 %v2082, %v2092
    %2099 = vrot.lane.b32.xlu0 %v2095, 32
    %v2100 = vpop.permute.xlu0 %2099
    %2101 = vrot.lane.b32.xlu0 %v2096, 32
    %v2102 = vpop.permute.xlu0 %2101
    %v2105 = vadd.f32 %v2085, %v2100
    %v2106 = vadd.f32 %v2086, %v2102
    %v2107 = vtanh.pop %v2105
    %v2108 = vtanh.pop %v2106
    %2111 = vrot.lane.b32.xlu0 %v2107, 64
    %v2112 = vpop.permute.xlu0 %2111
    %2113 = vrot.lane.b32.xlu0 %v2108, 64
    %v2114 = vpop.permute.xlu0 %2113
    %v2117 = vmul.f32 %v2080, %v2112
    %v2118 = vmul.f32 %v2082, %v2114
    %2121 = vrot.lane.b32.xlu0 %v2117, 32
    %v2122 = vpop.permute.xlu0 %2121
    %2123 = vrot.lane.b32.xlu0 %v2118, 32
    %v2124 = vpop.permute.xlu0 %2123
    %v2127 = vsel %vm493, %v2122, 0.0
    %v2128 = vsel %vm493, %v2124, 0.0
    %v2129 = vld [vmem:[%s1033] sm:$0xff]
    %v2130 = vld [vmem:[%s1033 + $0x8] sm:$0xff]
    %v2131 = vpack.c.bf16 %v2128, %v2127
    %2132 = vmatprep.subr.bf16.mxu0 0
    %2133 = vmatpush1.bf16.msra.mxu0 %v1492
    %2134 = vmatprep.subr.bf16.mxu0 0
    %2135 = vmatpush1.bf16.msra.mxu0 %v1493
    %2136 = vmatprep.subr.bf16.mxu0 0
    %2137 = vmatpush1.bf16.msra.mxu0 %v1494
    %2138 = vmatprep.subr.bf16.mxu0 0
    %2139 = vmatpush1.bf16.msra.mxu0 %v1495
    %2140 = vmatprep.subr.bf16.mxu0 0
    %2141 = vmatpush1.bf16.msra.mxu0 %v1496
    %2142 = vmatprep.subr.bf16.mxu0 0
    %2143 = vmatpush1.bf16.msra.mxu0 %v1497
    %2144 = vmatprep.subr.bf16.mxu0 0
    %2145 = vmatpush1.bf16.msra.mxu0 %v1498
    %2146 = vmatprep.subr.bf16.mxu0 0
    %2147 = vmatpush1.bf16.msra.mxu0 %v1499
    %2148 = vmatprep.subr.bf16.mxu0 0
    %2149 = vmatpush1.bf16.msra.mxu0 0
    %2150 = vmatprep.subr.bf16.mxu0 0
    %2151 = vmatpush1.bf16.msra.mxu0 0
    %2152 = vmatprep.subr.bf16.mxu0 0
    %2153 = vmatpush1.bf16.msra.mxu0 0
    %2154 = vmatprep.subr.bf16.mxu0 0
    %2155 = vmatpush1.bf16.msra.mxu0 0
    %2156 = vmatprep.subr.bf16.mxu0 0
    %2157 = vmatpush1.bf16.msra.mxu0 0
    %2158 = vmatprep.subr.bf16.mxu0 0
    %2159 = vmatpush1.bf16.msra.mxu0 0
    %2160 = vmatprep.subr.bf16.mxu0 0
    %2161 = vmatpush1.bf16.msra.mxu0 0
    %2162 = vmatprep.subr.bf16.mxu0 0
    %2163 = vmatpush1.bf16.msra.mxu0 0
    %2164 = vmatprep.mubr.bf16.mxu0 0
    %2165 = vmatmul.mubr.bf16.gmra.mrb[0].mxu0 %v2131
    %v2166 = vpop.f32.mrb[0].mxu0
    %v2167 = vadd.f32 0.0, %v2166
    %v2168 = vpop.f32.mrb[0].mxu0
    %v2169 = vpop.f32.mrb[0].mxu0
    %v2170 = vadd.f32 0.0, %v2169
    %v2171 = vpop.f32.mrb[0].mxu0
    %2172 = vdwg.mxu0
    %v2173 = vadd.f32 %v2129, %v2167
    %v2174 = vadd.f32 %v2130, %v2170
    %v2175 = vxor.u32 %v2173, 2147483648
    %v2176 = vxor.u32 %v2174, 2147483648
    %v2177 = vmul.f32 %v2175, 1.442695
    %v2178 = vpow.pop %v2177
    %v2179 = vmul.f32 %v2176, 1.442695
    %v2180 = vpow.pop %v2179
    %v2181 = vadd.f32 %v2178, 1.0
    %v2182 = vadd.f32 %v2180, 1.0
    %v2183 = vrcp.pop %v2181
    %v2184 = vmul.f32 1.0, %v2183
    %v2185 = vrcp.pop %v2182
    %v2186 = vmul.f32 1.0, %v2185
    %v2187 = vtanh.pop %v2173
    %v2188 = vtanh.pop %v2174
    %v2189 = vmul.f32 %v2184, %v2105
    %v2190 = vmul.f32 %v2186, %v2106
    %2193 = vrot.lane.b32.xlu0 %v2187, 64
    %v2194 = vpop.permute.xlu0 %2193
    %2195 = vrot.lane.b32.xlu0 %v2188, 64
    %v2196 = vpop.permute.xlu0 %2195
    %v2199 = vmul.f32 %v2184, %v2194
    %v2200 = vmul.f32 %v2186, %v2196
    %2203 = vrot.lane.b32.xlu0 %v2199, 32
    %v2204 = vpop.permute.xlu0 %2203
    %2205 = vrot.lane.b32.xlu0 %v2200, 32
    %v2206 = vpop.permute.xlu0 %2205
    %v2209 = vadd.f32 %v2189, %v2204
    %v2210 = vadd.f32 %v2190, %v2206
    %v2211 = vtanh.pop %v2209
    %v2212 = vtanh.pop %v2210
    %2215 = vrot.lane.b32.xlu0 %v2211, 64
    %v2216 = vpop.permute.xlu0 %2215
    %2217 = vrot.lane.b32.xlu0 %v2212, 64
    %v2218 = vpop.permute.xlu0 %2217
    %v2221 = vmul.f32 %v2184, %v2216
    %v2222 = vmul.f32 %v2186, %v2218
    %2225 = vrot.lane.b32.xlu0 %v2221, 32
    %v2226 = vpop.permute.xlu0 %2225
    %2227 = vrot.lane.b32.xlu0 %v2222, 32
    %v2228 = vpop.permute.xlu0 %2227
    %v2231 = vsel %vm493, %v2226, 0.0
    %v2232 = vsel %vm493, %v2228, 0.0
    %v2233 = vld [vmem:[%s1140] sm:$0xff]
    %v2234 = vld [vmem:[%s1140 + $0x8] sm:$0xff]
    %v2235 = vpack.c.bf16 %v2232, %v2231
    %2236 = vmatprep.subr.bf16.mxu0 0
    %2237 = vmatpush1.bf16.msra.mxu0 %v1492
    %2238 = vmatprep.subr.bf16.mxu0 0
    %2239 = vmatpush1.bf16.msra.mxu0 %v1493
    %2240 = vmatprep.subr.bf16.mxu0 0
    %2241 = vmatpush1.bf16.msra.mxu0 %v1494
    %2242 = vmatprep.subr.bf16.mxu0 0
    %2243 = vmatpush1.bf16.msra.mxu0 %v1495
    %2244 = vmatprep.subr.bf16.mxu0 0
    %2245 = vmatpush1.bf16.msra.mxu0 %v1496
    %2246 = vmatprep.subr.bf16.mxu0 0
    %2247 = vmatpush1.bf16.msra.mxu0 %v1497
    %2248 = vmatprep.subr.bf16.mxu0 0
    %2249 = vmatpush1.bf16.msra.mxu0 %v1498
    %2250 = vmatprep.subr.bf16.mxu0 0
    %2251 = vmatpush1.bf16.msra.mxu0 %v1499
    %2252 = vmatprep.subr.bf16.mxu0 0
    %2253 = vmatpush1.bf16.msra.mxu0 0
    %2254 = vmatprep.subr.bf16.mxu0 0
    %2255 = vmatpush1.bf16.msra.mxu0 0
    %2256 = vmatprep.subr.bf16.mxu0 0
    %2257 = vmatpush1.bf16.msra.mxu0 0
    %2258 = vmatprep.subr.bf16.mxu0 0
    %2259 = vmatpush1.bf16.msra.mxu0 0
    %2260 = vmatprep.subr.bf16.mxu0 0
    %2261 = vmatpush1.bf16.msra.mxu0 0
    %2262 = vmatprep.subr.bf16.mxu0 0
    %2263 = vmatpush1.bf16.msra.mxu0 0
    %2264 = vmatprep.subr.bf16.mxu0 0
    %2265 = vmatpush1.bf16.msra.mxu0 0
    %2266 = vmatprep.subr.bf16.mxu0 0
    %2267 = vmatpush1.bf16.msra.mxu0 0
    %2268 = vmatprep.mubr.bf16.mxu0 0
    %2269 = vmatmul.mubr.bf16.gmra.mrb[0].mxu0 %v2235
    %v2270 = vpop.f32.mrb[0].mxu0
    %v2271 = vadd.f32 0.0, %v2270
    %v2272 = vpop.f32.mrb[0].mxu0
    %v2273 = vpop.f32.mrb[0].mxu0
    %v2274 = vadd.f32 0.0, %v2273
    %v2275 = vpop.f32.mrb[0].mxu0
    %2276 = vdwg.mxu0
    %v2277 = vadd.f32 %v2233, %v2271
    %v2278 = vadd.f32 %v2234, %v2274
    %v2279 = vxor.u32 %v2277, 2147483648
    %v2280 = vxor.u32 %v2278, 2147483648
    %v2281 = vmul.f32 %v2279, 1.442695
    %v2282 = vpow.pop %v2281
    %v2283 = vmul.f32 %v2280, 1.442695
    %v2284 = vpow.pop %v2283
    %v2285 = vadd.f32 %v2282, 1.0
    %v2286 = vadd.f32 %v2284, 1.0
    %v2287 = vrcp.pop %v2285
    %v2288 = vmul.f32 1.0, %v2287
    %v2289 = vrcp.pop %v2286
    %v2290 = vmul.f32 1.0, %v2289
    %v2291 = vtanh.pop %v2277
    %v2292 = vtanh.pop %v2278
    %v2293 = vmul.f32 %v2288, %v2209
    %v2294 = vmul.f32 %v2290, %v2210
    %2297 = vrot.lane.b32.xlu0 %v2291, 64
    %v2298 = vpop.permute.xlu0 %2297
    %2299 = vrot.lane.b32.xlu0 %v2292, 64
    %v2300 = vpop.permute.xlu0 %2299
    %v2303 = vmul.f32 %v2288, %v2298
    %v2304 = vmul.f32 %v2290, %v2300
    %2307 = vrot.lane.b32.xlu0 %v2303, 32
    %v2308 = vpop.permute.xlu0 %2307
    %2309 = vrot.lane.b32.xlu0 %v2304, 32
    %v2310 = vpop.permute.xlu0 %2309
    %v2313 = vadd.f32 %v2293, %v2308
    %v2314 = vadd.f32 %v2294, %v2310
    %v2315 = vtanh.pop %v2313
    %v2316 = vtanh.pop %v2314
    %2319 = vrot.lane.b32.xlu0 %v2315, 64
    %v2320 = vpop.permute.xlu0 %2319
    %2321 = vrot.lane.b32.xlu0 %v2316, 64
    %v2322 = vpop.permute.xlu0 %2321
    %v2325 = vmul.f32 %v2288, %v2320
    %v2326 = vmul.f32 %v2290, %v2322
    %2329 = vrot.lane.b32.xlu0 %v2325, 32
    %v2330 = vpop.permute.xlu0 %2329
    %2331 = vrot.lane.b32.xlu0 %v2326, 32
    %v2332 = vpop.permute.xlu0 %2331
    %v2335 = vsel %vm493, %v2330, 0.0
    %v2336 = vsel %vm493, %v2332, 0.0
    %v2337 = vpack.c.bf16 %v2336, %v2335
    %v2338 = vld [vmem:[#allocation10] sm:$0xf]
    %v2339 = vld [vmem:[#allocation10 + $0x4] sm:$0xf]
    %v2340 = vld [vmem:[#allocation10 + $0x8] sm:$0xf]
    %v2341 = vld [vmem:[#allocation10 + $0xc] sm:$0xf]
    %v2342 = vld [vmem:[#allocation10 + $0x10] sm:$0xf]
    %v2343 = vld [vmem:[#allocation10 + $0x14] sm:$0xf]
    %v2344 = vld [vmem:[#allocation10 + $0x18] sm:$0xf]
    %v2345 = vld [vmem:[#allocation10 + $0x1c] sm:$0xf]
    %v2346 = vld [vmem:[#allocation10 + $0x20] sm:$0xf]
    %v2347 = vld [vmem:[#allocation10 + $0x24] sm:$0xf]
    %v2348 = vld [vmem:[#allocation10 + $0x28] sm:$0xf]
    %v2349 = vld [vmem:[#allocation10 + $0x2c] sm:$0xf]
    %v2350 = vld [vmem:[#allocation10 + $0x30] sm:$0xf]
    %v2351 = vld [vmem:[#allocation10 + $0x34] sm:$0xf]
    %v2352 = vld [vmem:[#allocation10 + $0x38] sm:$0xf]
    %v2353 = vld [vmem:[#allocation10 + $0x3c] sm:$0xf]
    %v2354 = vld [vmem:[%s5] sm:$0x1]
    %v2356 = vlaneseq
    %v2357 = vshrl.u32 %v2356, 7
    %v2358 = vsub.s32 0, %v2357
    %v2359 = vrot.slane %v2354, %v2358
    %v2377 = vunpack.c.l.b16 %v2338
    %v2378 = vunpack.c.l.b16 %v2339
    %v2379 = vunpack.c.l.b16 %v2340
    %v2380 = vunpack.c.l.b16 %v2341
    %v2381 = vunpack.c.l.b16 %v2342
    %v2382 = vunpack.c.l.b16 %v2343
    %v2383 = vunpack.c.l.b16 %v2344
    %v2384 = vunpack.c.l.b16 %v2345
    %v2385 = vunpack.c.l.b16 %v2346
    %v2386 = vunpack.c.l.b16 %v2347
    %v2387 = vunpack.c.l.b16 %v2348
    %v2388 = vunpack.c.l.b16 %v2349
    %v2389 = vunpack.c.l.b16 %v2350
    %v2390 = vunpack.c.l.b16 %v2351
    %v2391 = vunpack.c.l.b16 %v2352
    %v2392 = vunpack.c.l.b16 %v2353
    %v2393 = vpack.c.b16 %v2378, %v2377
    %v2394 = vpack.c.b16 %v2380, %v2379
    %v2395 = vpack.c.b16 %v2382, %v2381
    %v2396 = vpack.c.b16 %v2384, %v2383
    %v2397 = vpack.c.b16 %v2386, %v2385
    %v2398 = vpack.c.b16 %v2388, %v2387
    %v2399 = vpack.c.b16 %v2390, %v2389
    %v2400 = vpack.c.b16 %v2392, %v2391
    %2409 = vmatprep.subr.bf16.mxu0 0
    %2410 = vmatpush1.bf16.msra.mxu0 %v2393
    %2411 = vmatprep.subr.bf16.mxu0 0
    %2412 = vmatpush1.bf16.msra.mxu0 %v2394
    %2413 = vmatprep.subr.bf16.mxu0 0
    %2414 = vmatpush1.bf16.msra.mxu0 %v2395
    %2415 = vmatprep.subr.bf16.mxu0 0
    %2416 = vmatpush1.bf16.msra.mxu0 %v2396
    %2417 = vmatprep.subr.bf16.mxu0 0
    %2418 = vmatpush1.bf16.msra.mxu0 %v2397
    %2419 = vmatprep.subr.bf16.mxu0 0
    %2420 = vmatpush1.bf16.msra.mxu0 %v2398
    %2421 = vmatprep.subr.bf16.mxu0 0
    %2422 = vmatpush1.bf16.msra.mxu0 %v2399
    %2423 = vmatprep.subr.bf16.mxu0 0
    %2424 = vmatpush1.bf16.msra.mxu0 %v2400
    %2425 = vmatprep.subr.bf16.mxu0 0
    %2426 = vmatpush1.bf16.msra.mxu0 0
    %2427 = vmatprep.subr.bf16.mxu0 0
    %2428 = vmatpush1.bf16.msra.mxu0 0
    %2429 = vmatprep.subr.bf16.mxu0 0
    %2430 = vmatpush1.bf16.msra.mxu0 0
    %2431 = vmatprep.subr.bf16.mxu0 0
    %2432 = vmatpush1.bf16.msra.mxu0 0
    %2433 = vmatprep.subr.bf16.mxu0 0
    %2434 = vmatpush1.bf16.msra.mxu0 0
    %2435 = vmatprep.subr.bf16.mxu0 0
    %2436 = vmatpush1.bf16.msra.mxu0 0
    %2437 = vmatprep.subr.bf16.mxu0 0
    %2438 = vmatpush1.bf16.msra.mxu0 0
    %2439 = vmatprep.subr.bf16.mxu0 0
    %2440 = vmatpush1.bf16.msra.mxu0 0
    %2441 = vmatprep.mubr.bf16.mxu0 0
    %2442 = vmatmul.mubr.bf16.gmra.mrb[0].mxu0 %v2337
    %v2443 = vpop.f32.mrb[0].mxu0
    %v2444 = vadd.f32 %v2359, %v2443
    %v2445 = vpop.f32.mrb[0].mxu0
    %v2446 = vpop.f32.mrb[0].mxu0
    %v2447 = vadd.f32 %v2359, %v2446
    %v2448 = vpop.f32.mrb[0].mxu0
    %2449 = vdwg.mxu0
    %v2450 = vlaneseq
    %v2451 = vand.u32 %v2450, 127
    %vm2452 = vcmp.lt.s32.totalorder %v2451, 10
    %v2453 = vsel %vm2452, %v2444, -inf
    %v2454 = vsel %vm2452, %v2447, -inf
    %2455 = vmax.xlane.f32.xlu0 %v2453
    %v2456 = vpop.xlane.xlu0 %2455
    %2457 = vmax.xlane.f32.xlu0 %v2454
    %v2458 = vpop.xlane.xlu0 %2457
    %v2459 = vsub.f32 %v2453, %v2456
    %v2460 = vsub.f32 %v2454, %v2458
    %v2461 = vmul.f32 %v2459, 1.442695
    %v2462 = vpow.pop %v2461
    %v2463 = vmul.f32 %v2460, 1.442695
    %v2464 = vpow.pop %v2463
    %2465 = vadd.xlane.f32.xlu0 %v2462
    %v2466 = vpop.xlane.xlu0 %2465
    %2467 = vadd.xlane.f32.xlu0 %v2464
    %v2468 = vpop.xlane.xlu0 %2467
    %v2469 = vlog2.pop %v2466
    %v2470 = vmul.f32 %v2469, 0.6931472
    %v2471 = vlog2.pop %v2468
    %v2472 = vmul.f32 %v2471, 0.6931472
    %v2473 = vsub.f32 %v2459, %v2470
    %v2474 = vsub.f32 %v2460, %v2472
    %2475 = vst [vmem:[#allocation12] sm:$0xff] %v2473
    %2476 = vst [vmem:[#allocation12 + $0x8] sm:$0xff] %v2474
    // Predicated region
    $region42: #{tpu_custom_call.1} parent=1 // pred_check
      _
    $region43: #{tpu_custom_call.1} parent=1 // pred_check_branch
      %2478 = sbr.rel (0) target = $region45
    $region44: #{tpu_custom_call.1} parent=1 // pred_region
      %s2480 = ssub.s32 256, 256
      %2481 = vsyncadd [#allocation6], %s2480
      %s2482 = sshll.u32 [#allocation12], 4
      %s2483 = int_to_ptr.vmem [resolvable:$true] %s2482
      %2488 = dma.vmem_to_hbm [thread:$0]  %s2483, 256, %s6, [#allocation6], 128, 128, 8
    $region45: #{tpu_custom_call.1} parent=1 // pred_fallthru
      _
    // Predicated region
    $region46: #{tpu_custom_call.1} parent=1 // pred_check
      _
    $region47: #{tpu_custom_call.1} parent=1 // pred_check_branch
      %2490 = sbr.rel (0) target = $region49
    $region48: #{tpu_custom_call.1} parent=1 // pred_region
      %2491 = dma.done [#allocation6], 256
    $region49: #{tpu_custom_call.1} parent=1 // pred_fallthru
      _
    %2492 = vsyncpa [#allocation5], 1
    %2493 = vsyncpa [#allocation8], 1
    %2494 = vsyncpa [#allocation11], 1
    %2495 = vsyncpa [#allocation6], 1

</llo_original>
